<compile_context>
chip_gen: v5e
topology: v5e:2x2
jax: 0.10.0
libtpu: 0.0.40
codegen_flags: <defaults>
</compile_context>

<pallas_src>
import functools

import jax
import jax.numpy as jnp
from jax.experimental import pallas as pl
from jax.experimental.pallas import tpu as pltpu


def _stnkd_kernel(x_ref, w1_ref, b1_ref, w2_ref, b2_ref, w3_ref, b3_ref,
                  wf1_ref, bf1_ref, wf2_ref, bf2_ref, wf3_ref, bf3_ref,
                  o_ref, g_ref, *, n_points, n_tile):
    n = pl.program_id(1)
    n_last = pl.num_programs(1) - 1

    # (k, NT) channels-major tile -> (NT, k); single 32-bit XLU transpose.
    xt = jnp.transpose(x_ref[0]).astype(jnp.bfloat16)              # (NT, k)

    h = jnp.dot(xt, w1_ref[...], preferred_element_type=jnp.float32)
    h = jnp.maximum(h + b1_ref[...], 0.0)                          # (NT, 64)
    h = jnp.dot(h.astype(jnp.bfloat16), w2_ref[...],
                preferred_element_type=jnp.float32)
    h = jnp.maximum(h + b2_ref[...], 0.0)                          # (NT, 128)
    # Dominant matmul.  conv3's bias + ReLU are applied after the max-pool
    # (both monotone / per-column), so this is a raw dot feeding the row-max.
    h = jnp.dot(h.astype(jnp.bfloat16), w3_ref[...],
                preferred_element_type=jnp.float32)                # (NT, 1024)

    def update_g(hv):
        tile_max = jnp.max(hv, axis=0, keepdims=True)              # (1, 1024)

        @pl.when(n == 0)
        def _():
            g_ref[...] = tile_max

        @pl.when(n > 0)
        def _():
            g_ref[...] = jnp.maximum(g_ref[...], tile_max)

    if n_points % n_tile != 0:
        # Ragged tail: only the last tile has invalid rows (out-of-bounds
        # block lanes hold undefined data).  Mask them to -inf, gated to the
        # last tile only so interior tiles stay mask-free.
        n_tiles_static = (n_points + n_tile - 1) // n_tile
        rem = n_points - (n_tiles_static - 1) * n_tile

        @pl.when(n != n_last)
        def _():
            update_g(h)

        @pl.when(n == n_last)
        def _():
            row = jax.lax.broadcasted_iota(jnp.int32, (n_tile, 1), 0)
            update_g(jnp.where(row < rem, h, -jnp.inf))
    else:
        update_g(h)

    # Fused FC head: runs once per batch row, on the final point tile.
    @pl.when(n == n_last)
    def _():
        g = jnp.maximum(g_ref[...] + b3_ref[...], 0.0)             # (1, 1024)
        f = jnp.dot(g.astype(jnp.bfloat16), wf1_ref[...],
                    preferred_element_type=jnp.float32) + bf1_ref[...]
        f = jnp.maximum(f, 0.0)                                    # (1, 512)
        f = jnp.dot(f.astype(jnp.bfloat16), wf2_ref[...],
                    preferred_element_type=jnp.float32) + bf2_ref[...]
        f = jnp.maximum(f, 0.0)                                    # (1, 256)
        o_ref[0] = (jnp.dot(f.astype(jnp.bfloat16), wf3_ref[...],
                            preferred_element_type=jnp.float32)
                    + bf3_ref[...])                                # (1, k*k)


def stnkd_forward(x_bcn, params, k, *, n_tile=1024):
    """x_bcn: (B, k, N) float32 (PyTorch Conv1d layout). Returns (B, k, k)."""
    B, _, N = x_bcn.shape
    (w1, b1, w2, b2, w3, b3, wf1, bf1, wf2, bf2, wf3, bf3) = params

    if N <= n_tile:
        nt = N                                   # single tile; any N allowed
    else:
        nt = max(128, (n_tile // 128) * 128)     # lane dim must be 128-aligned
    n_tiles = (N + nt - 1) // nt

    consts = [w1, b1, w2, b2, w3, b3, wf1, bf1, wf2, bf2, wf3, bf3]

    def const_spec(a):
        nd = a.ndim
        return pl.BlockSpec(a.shape, lambda b, n, _nd=nd: (0,) * _nd)

    out = pl.pallas_call(
        functools.partial(_stnkd_kernel, n_points=N, n_tile=nt),
        grid=(B, n_tiles),
        in_specs=[pl.BlockSpec((1, k, nt), lambda b, n: (b, 0, n))]
                 + [const_spec(a) for a in consts],
        out_specs=pl.BlockSpec((1, 1, k * k), lambda b, n: (b, 0, 0)),
        out_shape=jax.ShapeDtypeStruct((B, 1, k * k), jnp.float32),
        scratch_shapes=[pltpu.VMEM((1, 1024), jnp.float32)],
        compiler_params=pltpu.CompilerParams(
            dimension_semantics=("parallel", "arbitrary"),
            vmem_limit_bytes=40 * 1024 * 1024),
    )(x_bcn.astype(jnp.float32), *consts)
    return out.reshape(B, k, k)


def init_params(key, k):
    """Deterministic synthetic weights.  BatchNorm (eval mode) is folded into
    the weights/biases; the identity matrix is folded into the fc3 bias; all
    weight matrices are stored in bf16 (f32 MXU accumulation in-kernel)."""
    eps = 1e-5
    keys = iter(jax.random.split(key, 64))

    def linear(cin, cout):
        w = jax.random.normal(next(keys), (cin, cout), jnp.float32) / jnp.sqrt(cin)
        b = 0.1 * jax.random.normal(next(keys), (cout,), jnp.float32)
        return w, b

    def bn(c):
        gamma = 1.0 + 0.1 * jax.random.normal(next(keys), (c,), jnp.float32)
        beta = 0.1 * jax.random.normal(next(keys), (c,), jnp.float32)
        mean = 0.1 * jax.random.normal(next(keys), (c,), jnp.float32)
        var = jnp.abs(jax.random.normal(next(keys), (c,), jnp.float32)) + 0.5
        scale = gamma / jnp.sqrt(var + eps)
        shift = beta - mean * scale
        return scale, shift

    folded = []
    for cin, cout in [(k, 64), (64, 128), (128, 1024), (1024, 512), (512, 256)]:
        w, b = linear(cin, cout)
        scale, shift = bn(cout)
        wf = (w * scale[None, :]).astype(jnp.bfloat16)      # BN scale folded
        bf = (b * scale + shift).reshape(1, cout)           # BN shift folded
        folded.append((wf, bf))

    (w1, b1), (w2, b2), (w3, b3), (wf1, bf1), (wf2, bf2) = folded
    w_fc3, b_fc3 = linear(256, k * k)
    wf3 = w_fc3.astype(jnp.bfloat16)
    bf3 = (b_fc3 + jnp.eye(k, dtype=jnp.float32).reshape(-1)).reshape(1, k * k)

    return (w1, b1, w2, b2, w3, b3, wf1, bf1, wf2, bf2, wf3, bf3)


def reference(x_bcn, params, k):
    """Pure-JAX reference mirroring the kernel's precision recipe."""
    (w1, b1, w2, b2, w3, b3, wf1, bf1, wf2, bf2, wf3, bf3) = params
    x = jnp.transpose(x_bcn, (0, 2, 1)).astype(jnp.bfloat16)       # (B, N, k)
    h = jax.nn.relu(jnp.dot(x, w1, preferred_element_type=jnp.float32) + b1)
    h = jax.nn.relu(jnp.dot(h.astype(jnp.bfloat16), w2,
                            preferred_element_type=jnp.float32) + b2)
    h = jnp.dot(h.astype(jnp.bfloat16), w3, preferred_element_type=jnp.float32)
    g = jax.nn.relu(jnp.max(h, axis=1) + b3)                       # (B, 1024)
    f = jax.nn.relu(jnp.dot(g.astype(jnp.bfloat16), wf1,
                            preferred_element_type=jnp.float32) + bf1)
    f = jax.nn.relu(jnp.dot(f.astype(jnp.bfloat16), wf2,
                            preferred_element_type=jnp.float32) + bf2)
    o = jnp.dot(f.astype(jnp.bfloat16), wf3,
                preferred_element_type=jnp.float32) + bf3
    return o.reshape(-1, k, k)


if __name__ == "__main__":
    key = jax.random.PRNGKey(0)
    kx1, kx2, kp = jax.random.split(key, 3)

    B, k = 2, 16
    params = init_params(kp, k)

    # Case 1: point count divides the tile exactly (two tiles of 128).
    x1 = jax.random.normal(kx1, (B, k, 256), jnp.float32)          # (B, C=k, N)
    out1 = jax.block_until_ready(stnkd_forward(x1, params, k, n_tile=128))
    ref1 = reference(x1, params, k)
    assert out1.shape == (B, k, k), out1.shape
    if not jnp.allclose(out1, ref1, atol=2e-2, rtol=2e-2):
        raise AssertionError(
            "mismatch (even tiles), max err "
            f"{jnp.max(jnp.abs(out1 - ref1))}")

    # Case 2: ragged tail (200 points, tiles of 128 -> last tile masked).
    x2 = jax.random.normal(kx2, (B, k, 200), jnp.float32)
    out2 = jax.block_until_ready(stnkd_forward(x2, params, k, n_tile=128))
    ref2 = reference(x2, params, k)
    if not jnp.allclose(out2, ref2, atol=2e-2, rtol=2e-2):
        raise AssertionError(
            "mismatch (ragged tail), max err "
            f"{jnp.max(jnp.abs(out2 - ref2))}")

    print("KERNEL_OK")
</pallas_src>

<mosaic_0001>
module attributes {stable_mosaic.version = 11 : i64} {
  func.func @_stnkd_kernel(%arg0: i32, %arg1: i32, %arg2: memref<1x16x128xf32, #tpu.memory_space<vmem>>, %arg3: memref<16x64xbf16, #tpu.memory_space<vmem>>, %arg4: memref<1x64xf32, #tpu.memory_space<vmem>>, %arg5: memref<64x128xbf16, #tpu.memory_space<vmem>>, %arg6: memref<1x128xf32, #tpu.memory_space<vmem>>, %arg7: memref<128x1024xbf16, #tpu.memory_space<vmem>>, %arg8: memref<1x1024xf32, #tpu.memory_space<vmem>>, %arg9: memref<1024x512xbf16, #tpu.memory_space<vmem>>, %arg10: memref<1x512xf32, #tpu.memory_space<vmem>>, %arg11: memref<512x256xbf16, #tpu.memory_space<vmem>>, %arg12: memref<1x256xf32, #tpu.memory_space<vmem>>, %arg13: memref<256x256xbf16, #tpu.memory_space<vmem>>, %arg14: memref<1x256xf32, #tpu.memory_space<vmem>>, %arg15: memref<1x1x256xf32, #tpu.memory_space<vmem>>, %arg16: memref<1x1024xf32, #tpu.memory_space<vmem>>) attributes {dimension_semantics = [#tpu.dimension_semantics<parallel>, #tpu.dimension_semantics<arbitrary>], iteration_bounds = array<i64: 2, 2>, scalar_prefetch = 0 : i64, scratch_operands = 1 : i64, tpu.core_type = #tpu.core_type<tc>, window_params = [{transform_indices = @transform_0, window_bounds = array<i64: 1, 16, 128>}, {pipeline_mode = #tpu.pipeline_mode<synchronous>, transform_indices = @transform_1, window_bounds = array<i64: 16, 64>}, {pipeline_mode = #tpu.pipeline_mode<synchronous>, transform_indices = @transform_2, window_bounds = array<i64: 1, 64>}, {pipeline_mode = #tpu.pipeline_mode<synchronous>, transform_indices = @transform_3, window_bounds = array<i64: 64, 128>}, {pipeline_mode = #tpu.pipeline_mode<synchronous>, transform_indices = @transform_4, window_bounds = array<i64: 1, 128>}, {pipeline_mode = #tpu.pipeline_mode<synchronous>, transform_indices = @transform_5, window_bounds = array<i64: 128, 1024>}, {pipeline_mode = #tpu.pipeline_mode<synchronous>, transform_indices = @transform_6, window_bounds = array<i64: 1, 1024>}, {pipeline_mode = #tpu.pipeline_mode<synchronous>, transform_indices = @transform_7, window_bounds = array<i64: 1024, 512>}, {pipeline_mode = #tpu.pipeline_mode<synchronous>, transform_indices = @transform_8, window_bounds = array<i64: 1, 512>}, {pipeline_mode = #tpu.pipeline_mode<synchronous>, transform_indices = @transform_9, window_bounds = array<i64: 512, 256>}, {pipeline_mode = #tpu.pipeline_mode<synchronous>, transform_indices = @transform_10, window_bounds = array<i64: 1, 256>}, {pipeline_mode = #tpu.pipeline_mode<synchronous>, transform_indices = @transform_11, window_bounds = array<i64: 256, 256>}, {pipeline_mode = #tpu.pipeline_mode<synchronous>, transform_indices = @transform_12, window_bounds = array<i64: 1, 256>}, {transform_indices = @transform_13, window_bounds = array<i64: 1, 1, 256>}]} {
    %c0 = arith.constant 0 : index
    %c0_0 = arith.constant 0 : index
    %c0_1 = arith.constant 0 : index
    %0 = vector.load %arg2[%c0, %c0_0, %c0_1] : memref<1x16x128xf32, #tpu.memory_space<vmem>>, vector<1x16x128xf32>
    %1 = vector.shape_cast %0 : vector<1x16x128xf32> to vector<16x128xf32>
    %2 = tpu.transpose %1, [1, 0] : vector<16x128xf32> -> vector<128x16xf32>
    %3 = arith.truncf %2 : vector<128x16xf32> to vector<128x16xbf16>
    %c0_2 = arith.constant 0 : index
    %c0_3 = arith.constant 0 : index
    %4 = vector.load %arg3[%c0_2, %c0_3] : memref<16x64xbf16, #tpu.memory_space<vmem>>, vector<16x64xbf16>
    %cst = arith.constant dense<0.000000e+00> : vector<128x64xf32>
    %5 = tpu.matmul %3, %4, %cst {dimension_numbers = #tpu.dot_dimension_numbers<[1], [0], [0], [1], [0, 0, 1, 1], [], []>} : vector<128x16xbf16>, vector<16x64xbf16>, vector<128x64xf32> -> vector<128x64xf32>
    %c0_4 = arith.constant 0 : index
    %c0_5 = arith.constant 0 : index
    %6 = vector.load %arg4[%c0_4, %c0_5] : memref<1x64xf32, #tpu.memory_space<vmem>>, vector<1x64xf32>
    %7 = vector.broadcast %6 : vector<1x64xf32> to vector<128x64xf32>
    %8 = arith.addf %5, %7 : vector<128x64xf32>
    %cst_6 = arith.constant 0.000000e+00 : f32
    %9 = vector.broadcast %cst_6 : f32 to vector<128x64xf32>
    %10 = arith.maximumf %8, %9 : vector<128x64xf32>
    %11 = arith.truncf %10 : vector<128x64xf32> to vector<128x64xbf16>
    %c0_7 = arith.constant 0 : index
    %c0_8 = arith.constant 0 : index
    %12 = vector.load %arg5[%c0_7, %c0_8] : memref<64x128xbf16, #tpu.memory_space<vmem>>, vector<64x128xbf16>
    %cst_9 = arith.constant dense<0.000000e+00> : vector<128x128xf32>
    %13 = tpu.matmul %11, %12, %cst_9 {dimension_numbers = #tpu.dot_dimension_numbers<[1], [0], [0], [1], [0, 0, 1, 1], [], []>} : vector<128x64xbf16>, vector<64x128xbf16>, vector<128x128xf32> -> vector<128x128xf32>
    %c0_10 = arith.constant 0 : index
    %c0_11 = arith.constant 0 : index
    %14 = vector.load %arg6[%c0_10, %c0_11] : memref<1x128xf32, #tpu.memory_space<vmem>>, vector<1x128xf32>
    %15 = vector.broadcast %14 : vector<1x128xf32> to vector<128x128xf32>
    %16 = arith.addf %13, %15 : vector<128x128xf32>
    %cst_12 = arith.constant 0.000000e+00 : f32
    %17 = vector.broadcast %cst_12 : f32 to vector<128x128xf32>
    %18 = arith.maximumf %16, %17 : vector<128x128xf32>
    %19 = arith.truncf %18 : vector<128x128xf32> to vector<128x128xbf16>
    %c0_13 = arith.constant 0 : index
    %c0_14 = arith.constant 0 : index
    %20 = vector.load %arg7[%c0_13, %c0_14] : memref<128x1024xbf16, #tpu.memory_space<vmem>>, vector<128x1024xbf16>
    %cst_15 = arith.constant dense<0.000000e+00> : vector<128x1024xf32>
    %21 = tpu.matmul %19, %20, %cst_15 {dimension_numbers = #tpu.dot_dimension_numbers<[1], [0], [0], [1], [0, 0, 1, 1], [], []>} : vector<128x128xbf16>, vector<128x1024xbf16>, vector<128x1024xf32> -> vector<128x1024xf32>
    %cst_16 = arith.constant dense<0xFF800000> : vector<1024xf32>
    %22 = vector.multi_reduction <maximumf>, %21, %cst_16 [0] : vector<128x1024xf32> to vector<1024xf32>
    %23 = vector.shape_cast %22 : vector<1024xf32> to vector<1x1024xf32>
    %c0_i32 = arith.constant 0 : i32
    %24 = arith.cmpi eq, %arg1, %c0_i32 : i32
    %25 = arith.extui %24 : i1 to i32
    %c0_i32_17 = arith.constant 0 : i32
    %26 = arith.cmpi ne, %25, %c0_i32_17 : i32
    scf.if %26 {
      %c0_21 = arith.constant 0 : index
      %c0_22 = arith.constant 0 : index
      %33 = vector.load %arg16[%c0_21, %c0_22] : memref<1x1024xf32, #tpu.memory_space<vmem>>, vector<1x1024xf32>
      tpu.vector_store %arg16[%c0_21, %c0_22], %23 {strides = array<i32>} : memref<1x1024xf32, #tpu.memory_space<vmem>>, vector<1x1024xf32>,
    } else {
    }
    %c0_i32_18 = arith.constant 0 : i32
    %27 = arith.cmpi sgt, %arg1, %c0_i32_18 : i32
    %28 = arith.extui %27 : i1 to i32
    %c0_i32_19 = arith.constant 0 : i32
    %29 = arith.cmpi ne, %28, %c0_i32_19 : i32
    scf.if %29 {
      %c0_21 = arith.constant 0 : index
      %c0_22 = arith.constant 0 : index
      %33 = vector.load %arg16[%c0_21, %c0_22] : memref<1x1024xf32, #tpu.memory_space<vmem>>, vector<1x1024xf32>
      %34 = arith.maximumf %33, %23 : vector<1x1024xf32>
      %c0_23 = arith.constant 0 : index
      %c0_24 = arith.constant 0 : index
      %35 = vector.load %arg16[%c0_23, %c0_24] : memref<1x1024xf32, #tpu.memory_space<vmem>>, vector<1x1024xf32>
      tpu.vector_store %arg16[%c0_23, %c0_24], %34 {strides = array<i32>} : memref<1x1024xf32, #tpu.memory_space<vmem>>, vector<1x1024xf32>,
    } else {
    }
    %c1_i32 = arith.constant 1 : i32
    %30 = arith.cmpi eq, %arg1, %c1_i32 : i32
    %31 = arith.extui %30 : i1 to i32
    %c0_i32_20 = arith.constant 0 : i32
    %32 = arith.cmpi ne, %31, %c0_i32_20 : i32
    scf.if %32 {
      %c0_21 = arith.constant 0 : index
      %c0_22 = arith.constant 0 : index
      %33 = vector.load %arg16[%c0_21, %c0_22] : memref<1x1024xf32, #tpu.memory_space<vmem>>, vector<1x1024xf32>
      %c0_23 = arith.constant 0 : index
      %c0_24 = arith.constant 0 : index
      %34 = vector.load %arg8[%c0_23, %c0_24] : memref<1x1024xf32, #tpu.memory_space<vmem>>, vector<1x1024xf32>
      %35 = arith.addf %33, %34 : vector<1x1024xf32>
      %cst_25 = arith.constant 0.000000e+00 : f32
      %36 = vector.broadcast %cst_25 : f32 to vector<1x1024xf32>
      %37 = arith.maximumf %35, %36 : vector<1x1024xf32>
      %38 = arith.truncf %37 : vector<1x1024xf32> to vector<1x1024xbf16>
      %c0_26 = arith.constant 0 : index
      %c0_27 = arith.constant 0 : index
      %39 = vector.load %arg9[%c0_26, %c0_27] : memref<1024x512xbf16, #tpu.memory_space<vmem>>, vector<1024x512xbf16>
      %cst_28 = arith.constant dense<0.000000e+00> : vector<1x512xf32>
      %40 = tpu.matmul %38, %39, %cst_28 {dimension_numbers = #tpu.dot_dimension_numbers<[1], [0], [0], [1], [0, 0, 1, 1], [], []>} : vector<1x1024xbf16>, vector<1024x512xbf16>, vector<1x512xf32> -> vector<1x512xf32>
      %c0_29 = arith.constant 0 : index
      %c0_30 = arith.constant 0 : index
      %41 = vector.load %arg10[%c0_29, %c0_30] : memref<1x512xf32, #tpu.memory_space<vmem>>, vector<1x512xf32>
      %42 = arith.addf %40, %41 : vector<1x512xf32>
      %cst_31 = arith.constant 0.000000e+00 : f32
      %43 = vector.broadcast %cst_31 : f32 to vector<1x512xf32>
      %44 = arith.maximumf %42, %43 : vector<1x512xf32>
      %45 = arith.truncf %44 : vector<1x512xf32> to vector<1x512xbf16>
      %c0_32 = arith.constant 0 : index
      %c0_33 = arith.constant 0 : index
      %46 = vector.load %arg11[%c0_32, %c0_33] : memref<512x256xbf16, #tpu.memory_space<vmem>>, vector<512x256xbf16>
      %cst_34 = arith.constant dense<0.000000e+00> : vector<1x256xf32>
      %47 = tpu.matmul %45, %46, %cst_34 {dimension_numbers = #tpu.dot_dimension_numbers<[1], [0], [0], [1], [0, 0, 1, 1], [], []>} : vector<1x512xbf16>, vector<512x256xbf16>, vector<1x256xf32> -> vector<1x256xf32>
      %c0_35 = arith.constant 0 : index
      %c0_36 = arith.constant 0 : index
      %48 = vector.load %arg12[%c0_35, %c0_36] : memref<1x256xf32, #tpu.memory_space<vmem>>, vector<1x256xf32>
      %49 = arith.addf %47, %48 : vector<1x256xf32>
      %cst_37 = arith.constant 0.000000e+00 : f32
      %50 = vector.broadcast %cst_37 : f32 to vector<1x256xf32>
      %51 = arith.maximumf %49, %50 : vector<1x256xf32>
      %52 = arith.truncf %51 : vector<1x256xf32> to vector<1x256xbf16>
      %c0_38 = arith.constant 0 : index
      %c0_39 = arith.constant 0 : index
      %53 = vector.load %arg13[%c0_38, %c0_39] : memref<256x256xbf16, #tpu.memory_space<vmem>>, vector<256x256xbf16>
      %cst_40 = arith.constant dense<0.000000e+00> : vector<1x256xf32>
      %54 = tpu.matmul %52, %53, %cst_40 {dimension_numbers = #tpu.dot_dimension_numbers<[1], [0], [0], [1], [0, 0, 1, 1], [], []>} : vector<1x256xbf16>, vector<256x256xbf16>, vector<1x256xf32> -> vector<1x256xf32>
      %c0_41 = arith.constant 0 : index
      %c0_42 = arith.constant 0 : index
      %55 = vector.load %arg14[%c0_41, %c0_42] : memref<1x256xf32, #tpu.memory_space<vmem>>, vector<1x256xf32>
      %56 = arith.addf %54, %55 : vector<1x256xf32>
      %c0_43 = arith.constant 0 : index
      %c0_44 = arith.constant 0 : index
      %c0_45 = arith.constant 0 : index
      %57 = vector.load %arg15[%c0_43, %c0_44, %c0_45] : memref<1x1x256xf32, #tpu.memory_space<vmem>>, vector<1x1x256xf32>
      %58 = vector.shape_cast %57 : vector<1x1x256xf32> to vector<1x256xf32>
      %59 = vector.shape_cast %56 : vector<1x256xf32> to vector<1x1x256xf32>
      tpu.vector_store %arg15[%c0_43, %c0_44, %c0_45], %59 {strides = array<i32>} : memref<1x1x256xf32, #tpu.memory_space<vmem>>, vector<1x1x256xf32>,
    } else {
    }
    return
  }
  func.func @transform_0(%arg0: i32, %arg1: i32) -> (i32, i32, i32) {
    %c0_i32 = arith.constant 0 : i32
    %c0_i32_0 = arith.constant 0 : i32
    return %arg0, %c0_i32, %arg1 : i32, i32, i32
  }
  func.func @transform_1(%arg0: i32, %arg1: i32) -> (i32, i32) {
    %c0_i32 = arith.constant 0 : i32
    %c0_i32_0 = arith.constant 0 : i32
    %c0_i32_1 = arith.constant 0 : i32
    return %c0_i32, %c0_i32_0 : i32, i32
  }
  func.func @transform_2(%arg0: i32, %arg1: i32) -> (i32, i32) {
    %c0_i32 = arith.constant 0 : i32
    %c0_i32_0 = arith.constant 0 : i32
    %c0_i32_1 = arith.constant 0 : i32
    return %c0_i32, %c0_i32_0 : i32, i32
  }
  func.func @transform_3(%arg0: i32, %arg1: i32) -> (i32, i32) {
    %c0_i32 = arith.constant 0 : i32
    %c0_i32_0 = arith.constant 0 : i32
    %c0_i32_1 = arith.constant 0 : i32
    return %c0_i32, %c0_i32_0 : i32, i32
  }
  func.func @transform_4(%arg0: i32, %arg1: i32) -> (i32, i32) {
    %c0_i32 = arith.constant 0 : i32
    %c0_i32_0 = arith.constant 0 : i32
    %c0_i32_1 = arith.constant 0 : i32
    return %c0_i32, %c0_i32_0 : i32, i32
  }
  func.func @transform_5(%arg0: i32, %arg1: i32) -> (i32, i32) {
    %c0_i32 = arith.constant 0 : i32
    %c0_i32_0 = arith.constant 0 : i32
    %c0_i32_1 = arith.constant 0 : i32
    return %c0_i32, %c0_i32_0 : i32, i32
  }
  func.func @transform_6(%arg0: i32, %arg1: i32) -> (i32, i32) {
    %c0_i32 = arith.constant 0 : i32
    %c0_i32_0 = arith.constant 0 : i32
    %c0_i32_1 = arith.constant 0 : i32
    return %c0_i32, %c0_i32_0 : i32, i32
  }
  func.func @transform_7(%arg0: i32, %arg1: i32) -> (i32, i32) {
    %c0_i32 = arith.constant 0 : i32
    %c0_i32_0 = arith.constant 0 : i32
    %c0_i32_1 = arith.constant 0 : i32
    return %c0_i32, %c0_i32_0 : i32, i32
  }
  func.func @transform_8(%arg0: i32, %arg1: i32) -> (i32, i32) {
    %c0_i32 = arith.constant 0 : i32
    %c0_i32_0 = arith.constant 0 : i32
    %c0_i32_1 = arith.constant 0 : i32
    return %c0_i32, %c0_i32_0 : i32, i32
  }
  func.func @transform_9(%arg0: i32, %arg1: i32) -> (i32, i32) {
    %c0_i32 = arith.constant 0 : i32
    %c0_i32_0 = arith.constant 0 : i32
    %c0_i32_1 = arith.constant 0 : i32
    return %c0_i32, %c0_i32_0 : i32, i32
  }
  func.func @transform_10(%arg0: i32, %arg1: i32) -> (i32, i32) {
    %c0_i32 = arith.constant 0 : i32
    %c0_i32_0 = arith.constant 0 : i32
    %c0_i32_1 = arith.constant 0 : i32
    return %c0_i32, %c0_i32_0 : i32, i32
  }
  func.func @transform_11(%arg0: i32, %arg1: i32) -> (i32, i32) {
    %c0_i32 = arith.constant 0 : i32
    %c0_i32_0 = arith.constant 0 : i32
    %c0_i32_1 = arith.constant 0 : i32
    return %c0_i32, %c0_i32_0 : i32, i32
  }
  func.func @transform_12(%arg0: i32, %arg1: i32) -> (i32, i32) {
    %c0_i32 = arith.constant 0 : i32
    %c0_i32_0 = arith.constant 0 : i32
    %c0_i32_1 = arith.constant 0 : i32
    return %c0_i32, %c0_i32_0 : i32, i32
  }
  func.func @transform_13(%arg0: i32, %arg1: i32) -> (i32, i32, i32) {
    %c0_i32 = arith.constant 0 : i32
    %c0_i32_0 = arith.constant 0 : i32
    %c0_i32_1 = arith.constant 0 : i32
    return %arg0, %c0_i32, %c0_i32_0 : i32, i32, i32
  }
}

</mosaic_0001>

<llo_original>
// kernel: tpu_custom_call.1
$region0: #{tpu_custom_call.1}
  #allocation0 [shape = 'u32[]', space=smem, size = 0x4, offset = 0x4, fixed_abs, tag = 'smem constant byte address 0x4 - core index']
  #allocation1 [shape = 'u32[72,128]{1,0:T(1,128)}', space=vmem, size = 0x9000, scoped, tag = 'internal scratch']
  #allocation2 [shape = 'f32[1,1024]{1,0:T(1,128)}', space=vmem, size = 0x1000, scoped, tag = 'scratch operand']
  %s0 = inlined_call_operand.hbm [shape: f32[2,16,256], index: 0, kind: input, shape index: {}]
  %s1 = inlined_call_operand.hbm [shape: bf16[16,64], index: 1, kind: input, shape index: {}]
  %s2 = inlined_call_operand.hbm [shape: f32[1,64], index: 2, kind: input, shape index: {}]
  %s3 = inlined_call_operand.hbm [shape: bf16[64,128], index: 3, kind: input, shape index: {}]
  %s4 = inlined_call_operand.hbm [shape: f32[1,128], index: 4, kind: input, shape index: {}]
  %s5 = inlined_call_operand.hbm [shape: bf16[128,1024], index: 5, kind: input, shape index: {}]
  %s6 = inlined_call_operand.hbm [shape: f32[1,1024], index: 6, kind: input, shape index: {}]
  %s7 = inlined_call_operand.hbm [shape: bf16[1024,512], index: 7, kind: input, shape index: {}]
  %s8 = inlined_call_operand.vmem [shape: f32[1,512], index: 8, kind: input, shape index: {}]
  %s9 = inlined_call_operand.hbm [shape: bf16[512,256], index: 9, kind: input, shape index: {}]
  %s10 = inlined_call_operand.vmem [shape: f32[1,256], index: 10, kind: input, shape index: {}]
  %s11 = inlined_call_operand.hbm [shape: bf16[256,256], index: 11, kind: input, shape index: {}]
  %s12 = inlined_call_operand.vmem [shape: f32[1,256], index: 12, kind: input, shape index: {}]
  %s13 = inlined_call_operand.hbm [shape: f32[2,1,256], index: 13, kind: output, shape index: {}]
  %s14 = sld [smem:[#allocation0]]
  $region137: #{tpu_custom_call.1} parent=0
    _
  %s16 = ssub.s32 1, %s14
  %s17 = scalar_select 0, %s16, %s14
  $region1: #{tpu_custom_call.1} parent=0
    #allocation3 [shape = 'u8[16384]{0}', space=vmem, size = 0x4000, scoped, tag = 'input window, operand 0']
    #allocation4 [shape = 's32[2]{0}', space=sflag, size = 0x8, scoped, tag = 'scoped memory for tpu_custom_call.1']
    #allocation5 [shape = 's32[2]{0}', space=sflag, size = 0x8, scoped, tag = 'scoped memory for tpu_custom_call.1']
    #allocation6 [shape = 'u8[4096]{0}', space=vmem, size = 0x1000, scoped, tag = 'input window, operand 1, single buffered']
    #allocation7 [shape = 's32[1]{0}', space=sflag, size = 0x4, scoped, tag = 'scoped memory for tpu_custom_call.1']
    #allocation8 [shape = 'u8[512]{0}', space=vmem, size = 0x400, scoped, tag = 'input window, operand 2, single buffered']
    #allocation9 [shape = 'u8[16384]{0}', space=vmem, size = 0x4000, scoped, tag = 'input window, operand 3, single buffered']
    #allocation10 [shape = 's32[1]{0}', space=sflag, size = 0x4, scoped, tag = 'scoped memory for tpu_custom_call.1']
    #allocation11 [shape = 'u8[512]{0}', space=vmem, size = 0x400, scoped, tag = 'input window, operand 4, single buffered']
    #allocation12 [shape = 'u8[262144]{0}', space=vmem, size = 0x40000, scoped, tag = 'input window, operand 5, single buffered']
    #allocation13 [shape = 's32[1]{0}', space=sflag, size = 0x4, scoped, tag = 'scoped memory for tpu_custom_call.1']
    #allocation14 [shape = 'u8[4096]{0}', space=vmem, size = 0x1000, scoped, tag = 'input window, operand 6, single buffered']
    #allocation15 [shape = 'u8[1048576]{0}', space=vmem, size = 0x100000, scoped, tag = 'input window, operand 7, single buffered']
    #allocation16 [shape = 's32[1]{0}', space=sflag, size = 0x4, scoped, tag = 'scoped memory for tpu_custom_call.1']
    #allocation17 [shape = 'u8[262144]{0}', space=vmem, size = 0x40000, scoped, tag = 'input window, operand 9, single buffered']
    #allocation18 [shape = 'u8[131072]{0}', space=vmem, size = 0x20000, scoped, tag = 'input window, operand 11, single buffered']
    #allocation19 [shape = 's32[1]{0}', space=sflag, size = 0x4, scoped, tag = 'scoped memory for tpu_custom_call.1']
    #allocation20 [shape = 'u8[2048]{0}', space=vmem, size = 0x800, scoped, tag = 'output window, operand 0']
    %18 = vsyncpa [#allocation4], 0
    %s19 = scalar_lea.sflag [#allocation4], 1
    %20 = vsyncpa %s19, 0
    %21 = vsyncpa [#allocation7], 0
    %22 = vsyncpa [#allocation10], 0
    %23 = vsyncpa [#allocation13], 0
    %24 = vsyncpa [#allocation16], 0
    %25 = vsyncpa [#allocation19], 0
    %26 = vsyncpa [#allocation5], 0
    %s27 = scalar_lea.sflag [#allocation5], 1
    %28 = vsyncpa %s27, 0
    loop: start=0, step=1, limit=6
    $region2: #{tpu_custom_call.1} parent=1 // loop_pre_header
      _
    $region3: #{tpu_custom_call.1} parent=1 // loop_header
      %s30 = sphi 0, %s34
      %p31 = scmp.ge.s32.totalorder %s30, 6
      %s37 = sphi 0, %s49
      %s38 = sphi 0, %s45
      %s39 = sphi 0, %s37
      %s40 = sphi 0, %s38
      %s41 = sphi 0, %s39
      %s42 = sphi 0, %s40
      %s54 = sphi 0, %s56
      %s57 = sphi 0, %s54
      %s58 = sphi 0, %s57
      %s74 = sphi 0, %s58
      %s78 = sphi 0, %s78
      %s80 = sphi 0, %s78
      %s81 = sphi 0, %s80
      %s95 = sphi 0, %s81
      %s99 = sphi 0, %s99
      %s101 = sphi 0, %s99
      %s102 = sphi 0, %s101
      %s116 = sphi 0, %s102
      %s120 = sphi 0, %s120
      %s122 = sphi 0, %s120
      %s123 = sphi 0, %s122
      %s137 = sphi 0, %s123
      %s141 = sphi 0, %s141
      %s143 = sphi 0, %s141
      %s144 = sphi 0, %s143
      %s158 = sphi 0, %s144
      %s162 = sphi 0, %s162
      %s164 = sphi 0, %s162
      %s165 = sphi 0, %s164
      %s179 = sphi 0, %s165
      %s183 = sphi 0, %s183
      %s185 = sphi 0, %s183
      %s186 = sphi 0, %s185
      %s200 = sphi 0, %s186
      %s204 = sphi 0, %s204
      %s206 = sphi 0, %s204
      %s207 = sphi 0, %s206
      %s221 = sphi 0, %s207
      %s225 = sphi 0, %s225
      %s227 = sphi 0, %s225
      %s228 = sphi 0, %s227
      %s242 = sphi 0, %s228
      %s246 = sphi 0, %s246
      %s248 = sphi 0, %s246
      %s249 = sphi 0, %s248
      %s263 = sphi 0, %s249
      %s267 = sphi 0, %s267
      %s269 = sphi 0, %s267
      %s270 = sphi 0, %s269
      %s284 = sphi 0, %s270
      %s288 = sphi 0, %s288
      %s290 = sphi 0, %s288
      %s291 = sphi 0, %s290
      %s305 = sphi 0, %s291
      %s309 = sphi 0, %s309
      %s311 = sphi 0, %s309
      %s312 = sphi 0, %s311
      %s326 = sphi 0, %s312
      %s332 = sphi 0, %s334
      %s335 = sphi 0, %s332
      %s336 = sphi 0, %s335
      %s352 = sphi 0, %s336
    $region4: #{tpu_custom_call.1} parent=1 // loop_header_branch
      %33 = sbr.rel (%p31) target = $region8
    $region5: #{tpu_custom_call.1} parent=1 // loop_body
      %s35 = ssub.s32 %s30, 1
      %s36 = ssub.s32 %s30, 2
      %s43 = sadd.s32 1, %s38
      %p44 = scmp.ge.s32.totalorder %s43, 2
      %s45 = scalar_select %p44, 0, %s43
      %s46 = sadd.s32 1, %s37
      %s47 = scalar_select %p44, %s46, %s37
      %p48 = scmp.ge.s32.totalorder %s47, 2
      %s49 = scalar_select %p48, 0, %s47
      %s50 = ssub.s32 %s37, %s49
      %s51 = ssub.s32 %s38, %s45
      %s52 = sor.u32 %s50, %s51
      %p53 = scmp.eq.s32.totalorder %s52, 0
      %s55 = sadd.s32 %s54, 1
      %s56 = scalar_select %p53, %s54, %s55
      %p59 = pneg %p53
      %p60 = scmp.eq.s32.totalorder %s30, 3
      %p61 = por %p59, %p60
      %p62 = scmp.ne.s32.totalorder %s54, %s57
      %p63 = scmp.eq.s32.totalorder %s30, 0
      %p64 = por %p62, %p63
      %p65 = scmp.ne.s32.totalorder %s54, %s57
      %p66 = scmp.eq.s32.totalorder %s35, 3
      %p67 = por %p65, %p66
      %p68 = scmp.ne.s32.totalorder %s57, %s58
      %p69 = scmp.eq.s32.totalorder %s35, 0
      %p70 = por %p68, %p69
      %p71 = scmp.ne.s32.totalorder %s57, %s58
      %p72 = scmp.eq.s32.totalorder %s36, 3
      %p73 = por %p71, %p72
      %p75 = scmp.ne.s32.totalorder %s58, %s74
      %p76 = scmp.eq.s32.totalorder %s36, 0
      %p77 = por %p75, %p76
      %s79 = sadd.s32 %s78, 1
      %p82 = scmp.eq.s32.totalorder %s30, 3
      %p83 = scmp.ne.s32.totalorder %s78, %s80
      %p84 = scmp.eq.s32.totalorder %s30, 0
      %p85 = por %p83, %p84
      %p86 = scmp.ne.s32.totalorder %s78, %s80
      %p87 = scmp.eq.s32.totalorder %s35, 3
      %p88 = por %p86, %p87
      %p89 = scmp.ne.s32.totalorder %s80, %s81
      %p90 = scmp.eq.s32.totalorder %s35, 0
      %p91 = por %p89, %p90
      %p92 = scmp.ne.s32.totalorder %s80, %s81
      %p93 = scmp.eq.s32.totalorder %s36, 3
      %p94 = por %p92, %p93
      %p96 = scmp.ne.s32.totalorder %s81, %s95
      %p97 = scmp.eq.s32.totalorder %s36, 0
      %p98 = por %p96, %p97
      %s100 = sadd.s32 %s99, 1
      %p103 = scmp.eq.s32.totalorder %s30, 3
      %p104 = scmp.ne.s32.totalorder %s99, %s101
      %p105 = scmp.eq.s32.totalorder %s30, 0
      %p106 = por %p104, %p105
      %p107 = scmp.ne.s32.totalorder %s99, %s101
      %p108 = scmp.eq.s32.totalorder %s35, 3
      %p109 = por %p107, %p108
      %p110 = scmp.ne.s32.totalorder %s101, %s102
      %p111 = scmp.eq.s32.totalorder %s35, 0
      %p112 = por %p110, %p111
      %p113 = scmp.ne.s32.totalorder %s101, %s102
      %p114 = scmp.eq.s32.totalorder %s36, 3
      %p115 = por %p113, %p114
      %p117 = scmp.ne.s32.totalorder %s102, %s116
      %p118 = scmp.eq.s32.totalorder %s36, 0
      %p119 = por %p117, %p118
      %s121 = sadd.s32 %s120, 1
      %p124 = scmp.eq.s32.totalorder %s30, 3
      %p125 = scmp.ne.s32.totalorder %s120, %s122
      %p126 = scmp.eq.s32.totalorder %s30, 0
      %p127 = por %p125, %p126
      %p128 = scmp.ne.s32.totalorder %s120, %s122
      %p129 = scmp.eq.s32.totalorder %s35, 3
      %p130 = por %p128, %p129
      %p131 = scmp.ne.s32.totalorder %s122, %s123
      %p132 = scmp.eq.s32.totalorder %s35, 0
      %p133 = por %p131, %p132
      %p134 = scmp.ne.s32.totalorder %s122, %s123
      %p135 = scmp.eq.s32.totalorder %s36, 3
      %p136 = por %p134, %p135
      %p138 = scmp.ne.s32.totalorder %s123, %s137
      %p139 = scmp.eq.s32.totalorder %s36, 0
      %p140 = por %p138, %p139
      %s142 = sadd.s32 %s141, 1
      %p145 = scmp.eq.s32.totalorder %s30, 3
      %p146 = scmp.ne.s32.totalorder %s141, %s143
      %p147 = scmp.eq.s32.totalorder %s30, 0
      %p148 = por %p146, %p147
      %p149 = scmp.ne.s32.totalorder %s141, %s143
      %p150 = scmp.eq.s32.totalorder %s35, 3
      %p151 = por %p149, %p150
      %p152 = scmp.ne.s32.totalorder %s143, %s144
      %p153 = scmp.eq.s32.totalorder %s35, 0
      %p154 = por %p152, %p153
      %p155 = scmp.ne.s32.totalorder %s143, %s144
      %p156 = scmp.eq.s32.totalorder %s36, 3
      %p157 = por %p155, %p156
      %p159 = scmp.ne.s32.totalorder %s144, %s158
      %p160 = scmp.eq.s32.totalorder %s36, 0
      %p161 = por %p159, %p160
      %s163 = sadd.s32 %s162, 1
      %p166 = scmp.eq.s32.totalorder %s30, 3
      %p167 = scmp.ne.s32.totalorder %s162, %s164
      %p168 = scmp.eq.s32.totalorder %s30, 0
      %p169 = por %p167, %p168
      %p170 = scmp.ne.s32.totalorder %s162, %s164
      %p171 = scmp.eq.s32.totalorder %s35, 3
      %p172 = por %p170, %p171
      %p173 = scmp.ne.s32.totalorder %s164, %s165
      %p174 = scmp.eq.s32.totalorder %s35, 0
      %p175 = por %p173, %p174
      %p176 = scmp.ne.s32.totalorder %s164, %s165
      %p177 = scmp.eq.s32.totalorder %s36, 3
      %p178 = por %p176, %p177
      %p180 = scmp.ne.s32.totalorder %s165, %s179
      %p181 = scmp.eq.s32.totalorder %s36, 0
      %p182 = por %p180, %p181
      %s184 = sadd.s32 %s183, 1
      %p187 = scmp.eq.s32.totalorder %s30, 3
      %p188 = scmp.ne.s32.totalorder %s183, %s185
      %p189 = scmp.eq.s32.totalorder %s30, 0
      %p190 = por %p188, %p189
      %p191 = scmp.ne.s32.totalorder %s183, %s185
      %p192 = scmp.eq.s32.totalorder %s35, 3
      %p193 = por %p191, %p192
      %p194 = scmp.ne.s32.totalorder %s185, %s186
      %p195 = scmp.eq.s32.totalorder %s35, 0
      %p196 = por %p194, %p195
      %p197 = scmp.ne.s32.totalorder %s185, %s186
      %p198 = scmp.eq.s32.totalorder %s36, 3
      %p199 = por %p197, %p198
      %p201 = scmp.ne.s32.totalorder %s186, %s200
      %p202 = scmp.eq.s32.totalorder %s36, 0
      %p203 = por %p201, %p202
      %s205 = sadd.s32 %s204, 1
      %p208 = scmp.eq.s32.totalorder %s30, 3
      %p209 = scmp.ne.s32.totalorder %s204, %s206
      %p210 = scmp.eq.s32.totalorder %s30, 0
      %p211 = por %p209, %p210
      %p212 = scmp.ne.s32.totalorder %s204, %s206
      %p213 = scmp.eq.s32.totalorder %s35, 3
      %p214 = por %p212, %p213
      %p215 = scmp.ne.s32.totalorder %s206, %s207
      %p216 = scmp.eq.s32.totalorder %s35, 0
      %p217 = por %p215, %p216
      %p218 = scmp.ne.s32.totalorder %s206, %s207
      %p219 = scmp.eq.s32.totalorder %s36, 3
      %p220 = por %p218, %p219
      %p222 = scmp.ne.s32.totalorder %s207, %s221
      %p223 = scmp.eq.s32.totalorder %s36, 0
      %p224 = por %p222, %p223
      %s226 = sadd.s32 %s225, 1
      %p229 = scmp.eq.s32.totalorder %s30, 3
      %p230 = scmp.ne.s32.totalorder %s225, %s227
      %p231 = scmp.eq.s32.totalorder %s30, 0
      %p232 = por %p230, %p231
      %p233 = scmp.ne.s32.totalorder %s225, %s227
      %p234 = scmp.eq.s32.totalorder %s35, 3
      %p235 = por %p233, %p234
      %p236 = scmp.ne.s32.totalorder %s227, %s228
      %p237 = scmp.eq.s32.totalorder %s35, 0
      %p238 = por %p236, %p237
      %p239 = scmp.ne.s32.totalorder %s227, %s228
      %p240 = scmp.eq.s32.totalorder %s36, 3
      %p241 = por %p239, %p240
      %p243 = scmp.ne.s32.totalorder %s228, %s242
      %p244 = scmp.eq.s32.totalorder %s36, 0
      %p245 = por %p243, %p244
      %s247 = sadd.s32 %s246, 1
      %p250 = scmp.eq.s32.totalorder %s30, 3
      %p251 = scmp.ne.s32.totalorder %s246, %s248
      %p252 = scmp.eq.s32.totalorder %s30, 0
      %p253 = por %p251, %p252
      %p254 = scmp.ne.s32.totalorder %s246, %s248
      %p255 = scmp.eq.s32.totalorder %s35, 3
      %p256 = por %p254, %p255
      %p257 = scmp.ne.s32.totalorder %s248, %s249
      %p258 = scmp.eq.s32.totalorder %s35, 0
      %p259 = por %p257, %p258
      %p260 = scmp.ne.s32.totalorder %s248, %s249
      %p261 = scmp.eq.s32.totalorder %s36, 3
      %p262 = por %p260, %p261
      %p264 = scmp.ne.s32.totalorder %s249, %s263
      %p265 = scmp.eq.s32.totalorder %s36, 0
      %p266 = por %p264, %p265
      %s268 = sadd.s32 %s267, 1
      %p271 = scmp.eq.s32.totalorder %s30, 3
      %p272 = scmp.ne.s32.totalorder %s267, %s269
      %p273 = scmp.eq.s32.totalorder %s30, 0
      %p274 = por %p272, %p273
      %p275 = scmp.ne.s32.totalorder %s267, %s269
      %p276 = scmp.eq.s32.totalorder %s35, 3
      %p277 = por %p275, %p276
      %p278 = scmp.ne.s32.totalorder %s269, %s270
      %p279 = scmp.eq.s32.totalorder %s35, 0
      %p280 = por %p278, %p279
      %p281 = scmp.ne.s32.totalorder %s269, %s270
      %p282 = scmp.eq.s32.totalorder %s36, 3
      %p283 = por %p281, %p282
      %p285 = scmp.ne.s32.totalorder %s270, %s284
      %p286 = scmp.eq.s32.totalorder %s36, 0
      %p287 = por %p285, %p286
      %s289 = sadd.s32 %s288, 1
      %p292 = scmp.eq.s32.totalorder %s30, 3
      %p293 = scmp.ne.s32.totalorder %s288, %s290
      %p294 = scmp.eq.s32.totalorder %s30, 0
      %p295 = por %p293, %p294
      %p296 = scmp.ne.s32.totalorder %s288, %s290
      %p297 = scmp.eq.s32.totalorder %s35, 3
      %p298 = por %p296, %p297
      %p299 = scmp.ne.s32.totalorder %s290, %s291
      %p300 = scmp.eq.s32.totalorder %s35, 0
      %p301 = por %p299, %p300
      %p302 = scmp.ne.s32.totalorder %s290, %s291
      %p303 = scmp.eq.s32.totalorder %s36, 3
      %p304 = por %p302, %p303
      %p306 = scmp.ne.s32.totalorder %s291, %s305
      %p307 = scmp.eq.s32.totalorder %s36, 0
      %p308 = por %p306, %p307
      %s310 = sadd.s32 %s309, 1
      %p313 = scmp.eq.s32.totalorder %s30, 3
      %p314 = scmp.ne.s32.totalorder %s309, %s311
      %p315 = scmp.eq.s32.totalorder %s30, 0
      %p316 = por %p314, %p315
      %p317 = scmp.ne.s32.totalorder %s309, %s311
      %p318 = scmp.eq.s32.totalorder %s35, 3
      %p319 = por %p317, %p318
      %p320 = scmp.ne.s32.totalorder %s311, %s312
      %p321 = scmp.eq.s32.totalorder %s35, 0
      %p322 = por %p320, %p321
      %p323 = scmp.ne.s32.totalorder %s311, %s312
      %p324 = scmp.eq.s32.totalorder %s36, 3
      %p325 = por %p323, %p324
      %p327 = scmp.ne.s32.totalorder %s312, %s326
      %p328 = scmp.eq.s32.totalorder %s36, 0
      %p329 = por %p327, %p328
      %s330 = ssub.s32 %s37, %s49
      %p331 = scmp.eq.s32.totalorder %s330, 0
      %s333 = sadd.s32 %s332, 1
      %s334 = scalar_select %p331, %s332, %s333
      %p337 = pneg %p331
      %p338 = scmp.eq.s32.totalorder %s30, 3
      %p339 = por %p337, %p338
      %p340 = scmp.ne.s32.totalorder %s332, %s335
      %p341 = scmp.eq.s32.totalorder %s30, 0
      %p342 = por %p340, %p341
      %p343 = scmp.ne.s32.totalorder %s332, %s335
      %p344 = scmp.eq.s32.totalorder %s35, 3
      %p345 = por %p343, %p344
      %p346 = scmp.ne.s32.totalorder %s335, %s336
      %p347 = scmp.eq.s32.totalorder %s35, 0
      %p348 = por %p346, %p347
      %p349 = scmp.ne.s32.totalorder %s335, %s336
      %p350 = scmp.eq.s32.totalorder %s36, 3
      %p351 = por %p349, %p350
      %p353 = scmp.ne.s32.totalorder %s336, %s352
      %p354 = scmp.eq.s32.totalorder %s36, 0
      %p355 = por %p353, %p354
      %p356 = scmp.le.s32.totalorder 1, %s30
      %p357 = scmp.lt.s32.totalorder %s30, 5
      %p358 = pnand %p356, %p357
      %p359 = pneg %p358
      // Predicated region
      $region9: #{tpu_custom_call.1} parent=5 // pred_check
        _
      $region10: #{tpu_custom_call.1} parent=5 // pred_check_branch
        %361 = sbr.rel (%p358) target = $region12
      $region11: #{tpu_custom_call.1} parent=5 // pred_region
        %s362 = ssub.s32 %s30, 1
        // Predicated region
        $region13: #{tpu_custom_call.1} parent=11 // pred_check
          %p363 = pneg %p91
        $region14: #{tpu_custom_call.1} parent=11 // pred_check_branch
          %365 = sbr.rel (%p363) target = $region16
        $region15: #{tpu_custom_call.1} parent=11 // pred_region
          %367 = vsyncadd [#allocation7], 0
          %s368 = sshll.u32 %s1, 4
          %s369 = int_to_ptr.hbm [resolvable:$true] %s368
          %s370 = sshll.u32 [#allocation6], 4
          %s371 = int_to_ptr.vmem [resolvable:$true] %s370
          %376 = dma.hbm_to_vmem [thread:$0]  %s369, 128, %s371, [#allocation7], 64, 64, 4
        $region16: #{tpu_custom_call.1} parent=11 // pred_fallthru
          _
        // Predicated region
        $region17: #{tpu_custom_call.1} parent=11 // pred_check
          %p377 = pneg %p112
        $region18: #{tpu_custom_call.1} parent=11 // pred_check_branch
          %379 = sbr.rel (%p377) target = $region20
        $region19: #{tpu_custom_call.1} parent=11 // pred_region
          %381 = vsyncadd [#allocation7], 0
          %s383 = sshll.u32 %s2, 4
          %s384 = int_to_ptr.hbm [resolvable:$true] %s383
          %s385 = sshll.u32 [#allocation8], 4
          %s386 = int_to_ptr.vmem [resolvable:$true] %s385
          %388 = dma.hbm_to_vmem [thread:$0]  %s384, 16, %s386, [#allocation7]
        $region20: #{tpu_custom_call.1} parent=11 // pred_fallthru
          _
        // Predicated region
        $region21: #{tpu_custom_call.1} parent=11 // pred_check
          %p389 = pneg %p133
        $region22: #{tpu_custom_call.1} parent=11 // pred_check_branch
          %391 = sbr.rel (%p389) target = $region24
        $region23: #{tpu_custom_call.1} parent=11 // pred_region
          %393 = vsyncadd [#allocation10], 0
          %s394 = sshll.u32 %s3, 4
          %s395 = int_to_ptr.hbm [resolvable:$true] %s394
          %s396 = sshll.u32 [#allocation9], 4
          %s397 = int_to_ptr.vmem [resolvable:$true] %s396
          %402 = dma.hbm_to_vmem [thread:$0]  %s395, 512, %s397, [#allocation10], 64, 64, 4
        $region24: #{tpu_custom_call.1} parent=11 // pred_fallthru
          _
        // Predicated region
        $region25: #{tpu_custom_call.1} parent=11 // pred_check
          %p403 = pneg %p154
        $region26: #{tpu_custom_call.1} parent=11 // pred_check_branch
          %405 = sbr.rel (%p403) target = $region28
        $region27: #{tpu_custom_call.1} parent=11 // pred_region
          %407 = vsyncadd [#allocation10], 0
          %s409 = sshll.u32 %s4, 4
          %s410 = int_to_ptr.hbm [resolvable:$true] %s409
          %s411 = sshll.u32 [#allocation11], 4
          %s412 = int_to_ptr.vmem [resolvable:$true] %s411
          %414 = dma.hbm_to_vmem [thread:$0]  %s410, 16, %s412, [#allocation10]
        $region28: #{tpu_custom_call.1} parent=11 // pred_fallthru
          _
        // Predicated region
        $region29: #{tpu_custom_call.1} parent=11 // pred_check
          %p415 = pneg %p175
        $region30: #{tpu_custom_call.1} parent=11 // pred_check_branch
          %417 = sbr.rel (%p415) target = $region32
        $region31: #{tpu_custom_call.1} parent=11 // pred_region
          %419 = vsyncadd [#allocation13], 0
          %s420 = sshll.u32 %s5, 4
          %s421 = int_to_ptr.hbm [resolvable:$true] %s420
          %s422 = sshll.u32 [#allocation12], 4
          %s423 = int_to_ptr.vmem [resolvable:$true] %s422
          %428 = dma.hbm_to_vmem [thread:$0]  %s421, 8192, %s423, [#allocation13], 512, 512, 32
        $region32: #{tpu_custom_call.1} parent=11 // pred_fallthru
          _
        // Predicated region
        $region33: #{tpu_custom_call.1} parent=11 // pred_check
          %p429 = pneg %p196
        $region34: #{tpu_custom_call.1} parent=11 // pred_check_branch
          %431 = sbr.rel (%p429) target = $region36
        $region35: #{tpu_custom_call.1} parent=11 // pred_region
          %433 = vsyncadd [#allocation13], 0
          %s435 = sshll.u32 %s6, 4
          %s436 = int_to_ptr.hbm [resolvable:$true] %s435
          %s437 = sshll.u32 [#allocation14], 4
          %s438 = int_to_ptr.vmem [resolvable:$true] %s437
          %440 = dma.hbm_to_vmem [thread:$0]  %s436, 128, %s438, [#allocation13]
        $region36: #{tpu_custom_call.1} parent=11 // pred_fallthru
          _
        // Predicated region
        $region37: #{tpu_custom_call.1} parent=11 // pred_check
          %p441 = pneg %p217
        $region38: #{tpu_custom_call.1} parent=11 // pred_check_branch
          %443 = sbr.rel (%p441) target = $region40
        $region39: #{tpu_custom_call.1} parent=11 // pred_region
          %445 = vsyncadd [#allocation16], 0
          %s446 = sshll.u32 %s7, 4
          %s447 = int_to_ptr.hbm [resolvable:$true] %s446
          %s448 = sshll.u32 [#allocation15], 4
          %s449 = int_to_ptr.vmem [resolvable:$true] %s448
          %454 = dma.hbm_to_vmem [thread:$0]  %s447, 32768, %s449, [#allocation16], 256, 256, 16
        $region40: #{tpu_custom_call.1} parent=11 // pred_fallthru
          _
        // Predicated region
        $region41: #{tpu_custom_call.1} parent=11 // pred_check
          %p455 = pneg %p238
        $region42: #{tpu_custom_call.1} parent=11 // pred_check_branch
          %457 = sbr.rel (%p455) target = $region44
        $region43: #{tpu_custom_call.1} parent=11 // pred_region
          _
        $region44: #{tpu_custom_call.1} parent=11 // pred_fallthru
          _
        // Predicated region
        $region45: #{tpu_custom_call.1} parent=11 // pred_check
          %p458 = pneg %p259
        $region46: #{tpu_custom_call.1} parent=11 // pred_check_branch
          %460 = sbr.rel (%p458) target = $region48
        $region47: #{tpu_custom_call.1} parent=11 // pred_region
          %462 = vsyncadd [#allocation16], 0
          %s463 = sshll.u32 %s9, 4
          %s464 = int_to_ptr.hbm [resolvable:$true] %s463
          %s465 = sshll.u32 [#allocation17], 4
          %s466 = int_to_ptr.vmem [resolvable:$true] %s465
          %471 = dma.hbm_to_vmem [thread:$0]  %s464, 8192, %s466, [#allocation16], 128, 128, 8
        $region48: #{tpu_custom_call.1} parent=11 // pred_fallthru
          _
        // Predicated region
        $region49: #{tpu_custom_call.1} parent=11 // pred_check
          %p472 = pneg %p280
        $region50: #{tpu_custom_call.1} parent=11 // pred_check_branch
          %474 = sbr.rel (%p472) target = $region52
        $region51: #{tpu_custom_call.1} parent=11 // pred_region
          _
        $region52: #{tpu_custom_call.1} parent=11 // pred_fallthru
          _
        // Predicated region
        $region53: #{tpu_custom_call.1} parent=11 // pred_check
          %p475 = pneg %p301
        $region54: #{tpu_custom_call.1} parent=11 // pred_check_branch
          %477 = sbr.rel (%p475) target = $region56
        $region55: #{tpu_custom_call.1} parent=11 // pred_region
          %479 = vsyncadd [#allocation19], 0
          %s480 = sshll.u32 %s11, 4
          %s481 = int_to_ptr.hbm [resolvable:$true] %s480
          %s482 = sshll.u32 [#allocation18], 4
          %s483 = int_to_ptr.vmem [resolvable:$true] %s482
          %488 = dma.hbm_to_vmem [thread:$0]  %s481, 4096, %s483, [#allocation19], 128, 128, 8
        $region56: #{tpu_custom_call.1} parent=11 // pred_fallthru
          _
        // Predicated region
        $region57: #{tpu_custom_call.1} parent=11 // pred_check
          %p489 = pneg %p322
        $region58: #{tpu_custom_call.1} parent=11 // pred_check_branch
          %491 = sbr.rel (%p489) target = $region60
        $region59: #{tpu_custom_call.1} parent=11 // pred_region
          _
        $region60: #{tpu_custom_call.1} parent=11 // pred_fallthru
          _
      $region12: #{tpu_custom_call.1} parent=5 // pred_fallthru
        _
      %p492 = scmp.lt.s32.totalorder %s30, 4
      // Predicated region
      $region61: #{tpu_custom_call.1} parent=5 // pred_check
        %p493 = pneg %p492
      $region62: #{tpu_custom_call.1} parent=5 // pred_check_branch
        %495 = sbr.rel (%p493) target = $region64
      $region63: #{tpu_custom_call.1} parent=5 // pred_region
        // Predicated region
        $region65: #{tpu_custom_call.1} parent=63 // pred_check
          %p496 = pneg %p64
        $region66: #{tpu_custom_call.1} parent=63 // pred_check_branch
          %498 = sbr.rel (%p496) target = $region68
        $region67: #{tpu_custom_call.1} parent=63 // pred_region
          %s499 = sand.u32 %s54, 1
          %s500 = scalar_lea.sflag [#allocation4], %s499
          %s501 = sand.u32 %s54, 1
          %s502 = smul.addr %s501, 16
          %s503 = scalar_lea.vmem [#allocation3], %s502
          %505 = vsyncadd %s500, 0
          %s506 = smul.addr %s37, 4
          %s507 = sadd.s32 %s38, %s506
          %s508 = smul.addr %s507, 8
          %s509 = scalar_lea.hbm %s0, %s508
          %s510 = sshll.u32 %s509, 4
          %s511 = int_to_ptr.hbm [resolvable:$true] %s510
          %s512 = sshll.u32 %s503, 4
          %s513 = int_to_ptr.vmem [resolvable:$true] %s512
          %518 = dma.hbm_to_vmem [thread:$0]  %s511, 256, %s513, %s500, 256, 128, 8
        $region68: #{tpu_custom_call.1} parent=63 // pred_fallthru
          _
      $region64: #{tpu_custom_call.1} parent=5 // pred_fallthru
        _
      %p519 = scmp.le.s32.totalorder 1, %s30
      %p520 = scmp.lt.s32.totalorder %s30, 5
      %p521 = pnand %p519, %p520
      %p522 = pneg %p521
      // Predicated region
      $region69: #{tpu_custom_call.1} parent=5 // pred_check
        _
      $region70: #{tpu_custom_call.1} parent=5 // pred_check_branch
        %524 = sbr.rel (%p521) target = $region72
      $region71: #{tpu_custom_call.1} parent=5 // pred_region
        %s525 = ssub.s32 %s30, 1
        %s526 = sand.u32 %s57, 1
        %s527 = scalar_lea.sflag [#allocation4], %s526
        %s528 = sand.u32 %s57, 1
        %s529 = smul.addr %s528, 16
        %s530 = scalar_lea.vmem [#allocation3], %s529
        // Predicated region
        $region73: #{tpu_custom_call.1} parent=71 // pred_check
          %p531 = pneg %p70
        $region74: #{tpu_custom_call.1} parent=71 // pred_check_branch
          %533 = sbr.rel (%p531) target = $region76
        $region75: #{tpu_custom_call.1} parent=71 // pred_region
          %535 = dma.done %s527, 256
        $region76: #{tpu_custom_call.1} parent=71 // pred_fallthru
          _
        // Predicated region
        $region77: #{tpu_custom_call.1} parent=71 // pred_check
          %p536 = pneg %p91
        $region78: #{tpu_custom_call.1} parent=71 // pred_check_branch
          %538 = sbr.rel (%p536) target = $region80
        $region79: #{tpu_custom_call.1} parent=71 // pred_region
          %540 = dma.done [#allocation7], 128
        $region80: #{tpu_custom_call.1} parent=71 // pred_fallthru
          _
        // Predicated region
        $region81: #{tpu_custom_call.1} parent=71 // pred_check
          %p541 = pneg %p112
        $region82: #{tpu_custom_call.1} parent=71 // pred_check_branch
          %543 = sbr.rel (%p541) target = $region84
        $region83: #{tpu_custom_call.1} parent=71 // pred_region
          %545 = dma.done [#allocation7], 16
        $region84: #{tpu_custom_call.1} parent=71 // pred_fallthru
          _
        // Predicated region
        $region85: #{tpu_custom_call.1} parent=71 // pred_check
          %p546 = pneg %p133
        $region86: #{tpu_custom_call.1} parent=71 // pred_check_branch
          %548 = sbr.rel (%p546) target = $region88
        $region87: #{tpu_custom_call.1} parent=71 // pred_region
          %550 = dma.done [#allocation10], 512
        $region88: #{tpu_custom_call.1} parent=71 // pred_fallthru
          _
        // Predicated region
        $region89: #{tpu_custom_call.1} parent=71 // pred_check
          %p551 = pneg %p154
        $region90: #{tpu_custom_call.1} parent=71 // pred_check_branch
          %553 = sbr.rel (%p551) target = $region92
        $region91: #{tpu_custom_call.1} parent=71 // pred_region
          %555 = dma.done [#allocation10], 16
        $region92: #{tpu_custom_call.1} parent=71 // pred_fallthru
          _
        // Predicated region
        $region93: #{tpu_custom_call.1} parent=71 // pred_check
          %p556 = pneg %p175
        $region94: #{tpu_custom_call.1} parent=71 // pred_check_branch
          %558 = sbr.rel (%p556) target = $region96
        $region95: #{tpu_custom_call.1} parent=71 // pred_region
          %560 = dma.done [#allocation13], 8192
        $region96: #{tpu_custom_call.1} parent=71 // pred_fallthru
          _
        // Predicated region
        $region97: #{tpu_custom_call.1} parent=71 // pred_check
          %p561 = pneg %p196
        $region98: #{tpu_custom_call.1} parent=71 // pred_check_branch
          %563 = sbr.rel (%p561) target = $region100
        $region99: #{tpu_custom_call.1} parent=71 // pred_region
          %565 = dma.done [#allocation13], 128
        $region100: #{tpu_custom_call.1} parent=71 // pred_fallthru
          _
        // Predicated region
        $region101: #{tpu_custom_call.1} parent=71 // pred_check
          %p566 = pneg %p217
        $region102: #{tpu_custom_call.1} parent=71 // pred_check_branch
          %568 = sbr.rel (%p566) target = $region104
        $region103: #{tpu_custom_call.1} parent=71 // pred_region
          %570 = dma.done [#allocation16], 32768
        $region104: #{tpu_custom_call.1} parent=71 // pred_fallthru
          _
        // Predicated region
        $region105: #{tpu_custom_call.1} parent=71 // pred_check
          %p571 = pneg %p259
        $region106: #{tpu_custom_call.1} parent=71 // pred_check_branch
          %573 = sbr.rel (%p571) target = $region108
        $region107: #{tpu_custom_call.1} parent=71 // pred_region
          %575 = dma.done [#allocation16], 8192
        $region108: #{tpu_custom_call.1} parent=71 // pred_fallthru
          _
        // Predicated region
        $region109: #{tpu_custom_call.1} parent=71 // pred_check
          %p576 = pneg %p301
        $region110: #{tpu_custom_call.1} parent=71 // pred_check_branch
          %578 = sbr.rel (%p576) target = $region112
        $region111: #{tpu_custom_call.1} parent=71 // pred_region
          %580 = dma.done [#allocation19], 4096
        $region112: #{tpu_custom_call.1} parent=71 // pred_fallthru
          _
        %s581 = sand.u32 %s57, 1
        %s582 = scalar_lea.sflag [#allocation4], %s581
        %s583 = sand.u32 %s57, 1
        %s584 = smul.addr %s583, 16
        %s585 = scalar_lea.vmem [#allocation3], %s584
        %p586 = pneg %p70
        %p587 = pneg %p67
        %p588 = pneg %p91
        %p589 = pneg %p88
        %p590 = pneg %p112
        %p591 = pneg %p109
        %p592 = pneg %p133
        %p593 = pneg %p130
        %p594 = pneg %p154
        %p595 = pneg %p151
        %p596 = pneg %p175
        %p597 = pneg %p172
        %p598 = pneg %p196
        %p599 = pneg %p193
        %p600 = pneg %p217
        %p601 = pneg %p214
        %p602 = pneg %p238
        %p603 = pneg %p235
        %p604 = pneg %p259
        %p605 = pneg %p256
        %p606 = pneg %p280
        %p607 = pneg %p277
        %p608 = pneg %p301
        %p609 = pneg %p298
        %p610 = pneg %p322
        %p611 = pneg %p319
        %p612 = pneg %p348
        %p613 = pneg %p345
        %s614 = sand.u32 %s335, 1
        %s615 = scalar_lea.sflag [#allocation5], %s614
        %s616 = sand.u32 %s335, 1
        %s617 = smul.addr %s616, 2
        %s618 = scalar_lea.vmem [#allocation20], %s617
        %v620 = vld [vmem:[%s530] sm:$0xff]
        %v621 = vld [vmem:[%s530 + $0x8] sm:$0xff]
        %622 = vxpose.xlu0.b32.start [1/16] %v620, 128
        %623 = vxpose.xlu0.b32.cont [2/16] %v621, 128
        %624 = vxpose.xlu0.b32.cont [3/16] 0.0, 128
        %625 = vxpose.xlu0.b32.cont [4/16] 0.0, 128
        %626 = vxpose.xlu0.b32.cont [5/16] 0.0, 128
        %627 = vxpose.xlu0.b32.cont [6/16] 0.0, 128
        %628 = vxpose.xlu0.b32.cont [7/16] 0.0, 128
        %629 = vxpose.xlu0.b32.cont [8/16] 0.0, 128
        %630 = vxpose.xlu0.b32.cont [9/16] 0.0, 128
        %631 = vxpose.xlu0.b32.cont [10/16] 0.0, 128
        %632 = vxpose.xlu0.b32.cont [11/16] 0.0, 128
        %633 = vxpose.xlu0.b32.cont [12/16] 0.0, 128
        %634 = vxpose.xlu0.b32.cont [13/16] 0.0, 128
        %635 = vxpose.xlu0.b32.cont [14/16] 0.0, 128
        %636 = vxpose.xlu0.b32.cont [15/16] 0.0, 128
        %637 = vxpose.xlu0.b32.end [16/16] 0.0, 128
        %v638 = vpop.trf.xlu0
        %v639 = vpop.trf.xlu0
        %v640 = vpop.trf.xlu0
        %v641 = vpop.trf.xlu0
        %v642 = vpop.trf.xlu0
        %v643 = vpop.trf.xlu0
        %v644 = vpop.trf.xlu0
        %v645 = vpop.trf.xlu0
        %v646 = vpop.trf.xlu0
        %v647 = vpop.trf.xlu0
        %v648 = vpop.trf.xlu0
        %v649 = vpop.trf.xlu0
        %v650 = vpop.trf.xlu0
        %v651 = vpop.trf.xlu0
        %v652 = vpop.trf.xlu0
        %v653 = vpop.trf.xlu0
        %v654 = vpack.c.bf16 %v639, %v638
        %v655 = vpack.c.bf16 %v641, %v640
        %v656 = vpack.c.bf16 %v643, %v642
        %v657 = vpack.c.bf16 %v645, %v644
        %v658 = vpack.c.bf16 %v647, %v646
        %v659 = vpack.c.bf16 %v649, %v648
        %v660 = vpack.c.bf16 %v651, %v650
        %v661 = vpack.c.bf16 %v653, %v652
        %v662 = vld [vmem:[#allocation6] sm:$0xf]
        %v663 = vld [vmem:[#allocation6 + $0x4] sm:$0xf]
        %v664 = vld [vmem:[#allocation8] sm:$0x1]
        %v666 = vperm.slane %v664, 0
        %v670 = vunpack.c.l.b16 %v662
        %v671 = vunpack.c.l.b16 %v663
        %v672 = vpack.c.b16 %v671, %v670
        %vm674 = vcmask 130048
        %v676 = vsel %vm674, %v654, 0
        %v679 = vsel %vm674, %v655, 0
        %v682 = vsel %vm674, %v656, 0
        %v685 = vsel %vm674, %v657, 0
        %v688 = vsel %vm674, %v658, 0
        %v691 = vsel %vm674, %v659, 0
        %v694 = vsel %vm674, %v660, 0
        %v697 = vsel %vm674, %v661, 0
        %699 = vmatpush.bf16.msra.mxu0 0
        %700 = vmatpush.bf16.msra.mxu0 0
        %701 = vmatpush.bf16.msra.mxu0 0
        %702 = vmatpush.bf16.msra.mxu0 0
        %703 = vmatpush.bf16.msra.mxu0 0
        %704 = vmatpush.bf16.msra.mxu0 0
        %705 = vmatpush.bf16.msra.mxu0 0
        %706 = vmatpush.bf16.msra.mxu0 %v672
        %707 = vmatmul.bf16.gmra.mxu0 %v676
        %v708 = vpop.f32.mrf.mxu0
        %v709 = vadd.f32 %v666, %v708
        %v710 = vpop.f32.mrf.mxu0
        %v711 = vadd.f32 %v666, %v710
        %712 = vmatmul.bf16.gmra.mxu0 %v679
        %v713 = vpop.f32.mrf.mxu0
        %v714 = vadd.f32 %v666, %v713
        %v715 = vpop.f32.mrf.mxu0
        %v716 = vadd.f32 %v666, %v715
        %717 = vmatmul.bf16.gmra.mxu0 %v682
        %v718 = vpop.f32.mrf.mxu0
        %v719 = vadd.f32 %v666, %v718
        %v720 = vpop.f32.mrf.mxu0
        %v721 = vadd.f32 %v666, %v720
        %722 = vmatmul.bf16.gmra.mxu0 %v685
        %v723 = vpop.f32.mrf.mxu0
        %v724 = vadd.f32 %v666, %v723
        %v725 = vpop.f32.mrf.mxu0
        %v726 = vadd.f32 %v666, %v725
        %727 = vmatmul.bf16.gmra.mxu0 %v688
        %v728 = vpop.f32.mrf.mxu0
        %v729 = vadd.f32 %v666, %v728
        %v730 = vpop.f32.mrf.mxu0
        %v731 = vadd.f32 %v666, %v730
        %732 = vmatmul.bf16.gmra.mxu0 %v691
        %v733 = vpop.f32.mrf.mxu0
        %v734 = vadd.f32 %v666, %v733
        %v735 = vpop.f32.mrf.mxu0
        %v736 = vadd.f32 %v666, %v735
        %737 = vmatmul.bf16.gmra.mxu0 %v694
        %v738 = vpop.f32.mrf.mxu0
        %v739 = vadd.f32 %v666, %v738
        %v740 = vpop.f32.mrf.mxu0
        %v741 = vadd.f32 %v666, %v740
        %742 = vmatmul.bf16.gmra.mxu0 %v697
        %v743 = vpop.f32.mrf.mxu0
        %v744 = vadd.f32 %v666, %v743
        %v745 = vpop.f32.mrf.mxu0
        %v746 = vadd.f32 %v666, %v745
        %747 = vdwg.mxu0
        %v748 = vmax.f32 %v709, 0.0
        %v749 = vmax.f32 %v711, 0.0
        %v750 = vmax.f32 %v714, 0.0
        %v751 = vmax.f32 %v716, 0.0
        %v752 = vmax.f32 %v719, 0.0
        %v753 = vmax.f32 %v721, 0.0
        %v754 = vmax.f32 %v724, 0.0
        %v755 = vmax.f32 %v726, 0.0
        %v756 = vmax.f32 %v729, 0.0
        %v757 = vmax.f32 %v731, 0.0
        %v758 = vmax.f32 %v734, 0.0
        %v759 = vmax.f32 %v736, 0.0
        %v760 = vmax.f32 %v739, 0.0
        %v761 = vmax.f32 %v741, 0.0
        %v762 = vmax.f32 %v744, 0.0
        %v763 = vmax.f32 %v746, 0.0
        %v764 = vpack.c.bf16 %v749, %v748
        %v765 = vpack.c.bf16 %v751, %v750
        %v766 = vpack.c.bf16 %v753, %v752
        %v767 = vpack.c.bf16 %v755, %v754
        %v768 = vpack.c.bf16 %v757, %v756
        %v769 = vpack.c.bf16 %v759, %v758
        %v770 = vpack.c.bf16 %v761, %v760
        %v771 = vpack.c.bf16 %v763, %v762
        %v772 = vld [vmem:[#allocation9] sm:$0xf]
        %v773 = vld [vmem:[#allocation9 + $0x4] sm:$0xf]
        %v774 = vld [vmem:[#allocation9 + $0x8] sm:$0xf]
        %v775 = vld [vmem:[#allocation9 + $0xc] sm:$0xf]
        %v776 = vld [vmem:[#allocation9 + $0x10] sm:$0xf]
        %v777 = vld [vmem:[#allocation9 + $0x14] sm:$0xf]
        %v778 = vld [vmem:[#allocation9 + $0x18] sm:$0xf]
        %v779 = vld [vmem:[#allocation9 + $0x1c] sm:$0xf]
        %v780 = vld [vmem:[#allocation11] sm:$0x1]
        %v782 = vperm.slane %v780, 0
        %v792 = vunpack.c.l.b16 %v772
        %v793 = vunpack.c.l.b16 %v773
        %v794 = vunpack.c.l.b16 %v774
        %v795 = vunpack.c.l.b16 %v775
        %v796 = vunpack.c.l.b16 %v776
        %v797 = vunpack.c.l.b16 %v777
        %v798 = vunpack.c.l.b16 %v778
        %v799 = vunpack.c.l.b16 %v779
        %v800 = vpack.c.b16 %v793, %v792
        %v801 = vpack.c.b16 %v795, %v794
        %v802 = vpack.c.b16 %v797, %v796
        %v803 = vpack.c.b16 %v799, %v798
        %vm808 = vcmask 523264
        %v810 = vsel %vm808, %v764, 0
        %v813 = vsel %vm808, %v765, 0
        %v816 = vsel %vm808, %v766, 0
        %v819 = vsel %vm808, %v767, 0
        %v822 = vsel %vm808, %v768, 0
        %v825 = vsel %vm808, %v769, 0
        %v828 = vsel %vm808, %v770, 0
        %v831 = vsel %vm808, %v771, 0
        %833 = vmatpush.bf16.msra.mxu0 0
        %834 = vmatpush.bf16.msra.mxu0 0
        %835 = vmatpush.bf16.msra.mxu0 0
        %836 = vmatpush.bf16.msra.mxu0 0
        %837 = vmatpush.bf16.msra.mxu0 %v803
        %838 = vmatpush.bf16.msra.mxu0 %v802
        %839 = vmatpush.bf16.msra.mxu0 %v801
        %840 = vmatpush.bf16.msra.mxu0 %v800
        %841 = vmatmul.bf16.gmra.mxu0 %v810
        %v842 = vpop.f32.mrf.mxu0
        %v843 = vadd.f32 %v782, %v842
        %v844 = vpop.f32.mrf.mxu0
        %v845 = vadd.f32 %v782, %v844
        %846 = vmatmul.bf16.gmra.mxu0 %v813
        %v847 = vpop.f32.mrf.mxu0
        %v848 = vadd.f32 %v782, %v847
        %v849 = vpop.f32.mrf.mxu0
        %v850 = vadd.f32 %v782, %v849
        %851 = vmatmul.bf16.gmra.mxu0 %v816
        %v852 = vpop.f32.mrf.mxu0
        %v853 = vadd.f32 %v782, %v852
        %v854 = vpop.f32.mrf.mxu0
        %v855 = vadd.f32 %v782, %v854
        %856 = vmatmul.bf16.gmra.mxu0 %v819
        %v857 = vpop.f32.mrf.mxu0
        %v858 = vadd.f32 %v782, %v857
        %v859 = vpop.f32.mrf.mxu0
        %v860 = vadd.f32 %v782, %v859
        %861 = vmatmul.bf16.gmra.mxu0 %v822
        %v862 = vpop.f32.mrf.mxu0
        %v863 = vadd.f32 %v782, %v862
        %v864 = vpop.f32.mrf.mxu0
        %v865 = vadd.f32 %v782, %v864
        %866 = vmatmul.bf16.gmra.mxu0 %v825
        %v867 = vpop.f32.mrf.mxu0
        %v868 = vadd.f32 %v782, %v867
        %v869 = vpop.f32.mrf.mxu0
        %v870 = vadd.f32 %v782, %v869
        %871 = vmatmul.bf16.gmra.mxu0 %v828
        %v872 = vpop.f32.mrf.mxu0
        %v873 = vadd.f32 %v782, %v872
        %v874 = vpop.f32.mrf.mxu0
        %v875 = vadd.f32 %v782, %v874
        %876 = vmatmul.bf16.gmra.mxu0 %v831
        %v877 = vpop.f32.mrf.mxu0
        %v878 = vadd.f32 %v782, %v877
        %v879 = vpop.f32.mrf.mxu0
        %v880 = vadd.f32 %v782, %v879
        %881 = vdwg.mxu0
        %v882 = vmax.f32 %v843, 0.0
        %v883 = vmax.f32 %v845, 0.0
        %v884 = vmax.f32 %v848, 0.0
        %v885 = vmax.f32 %v850, 0.0
        %v886 = vmax.f32 %v853, 0.0
        %v887 = vmax.f32 %v855, 0.0
        %v888 = vmax.f32 %v858, 0.0
        %v889 = vmax.f32 %v860, 0.0
        %v890 = vmax.f32 %v863, 0.0
        %v891 = vmax.f32 %v865, 0.0
        %v892 = vmax.f32 %v868, 0.0
        %v893 = vmax.f32 %v870, 0.0
        %v894 = vmax.f32 %v873, 0.0
        %v895 = vmax.f32 %v875, 0.0
        %v896 = vmax.f32 %v878, 0.0
        %v897 = vmax.f32 %v880, 0.0
        %v898 = vpack.c.bf16 %v883, %v882
        %v899 = vpack.c.bf16 %v885, %v884
        %v900 = vpack.c.bf16 %v887, %v886
        %v901 = vpack.c.bf16 %v889, %v888
        %v902 = vpack.c.bf16 %v891, %v890
        %v903 = vpack.c.bf16 %v893, %v892
        %v904 = vpack.c.bf16 %v895, %v894
        %v905 = vpack.c.bf16 %v897, %v896
        %v906 = vld [vmem:[#allocation12] sm:$0xff]
        %v907 = vld [vmem:[#allocation12 + $0x8] sm:$0xff]
        %v908 = vld [vmem:[#allocation12 + $0x10] sm:$0xff]
        %v909 = vld [vmem:[#allocation12 + $0x18] sm:$0xff]
        %v910 = vld [vmem:[#allocation12 + $0x20] sm:$0xff]
        %v911 = vld [vmem:[#allocation12 + $0x28] sm:$0xff]
        %v912 = vld [vmem:[#allocation12 + $0x30] sm:$0xff]
        %v913 = vld [vmem:[#allocation12 + $0x38] sm:$0xff]
        %v914 = vld [vmem:[#allocation12 + $0x40] sm:$0xff]
        %v915 = vld [vmem:[#allocation12 + $0x48] sm:$0xff]
        %v916 = vld [vmem:[#allocation12 + $0x50] sm:$0xff]
        %v917 = vld [vmem:[#allocation12 + $0x58] sm:$0xff]
        %v918 = vld [vmem:[#allocation12 + $0x60] sm:$0xff]
        %v919 = vld [vmem:[#allocation12 + $0x68] sm:$0xff]
        %v920 = vld [vmem:[#allocation12 + $0x70] sm:$0xff]
        %v921 = vld [vmem:[#allocation12 + $0x78] sm:$0xff]
        %v922 = vld [vmem:[#allocation12 + $0x80] sm:$0xff]
        %v923 = vld [vmem:[#allocation12 + $0x88] sm:$0xff]
        %v924 = vld [vmem:[#allocation12 + $0x90] sm:$0xff]
        %v925 = vld [vmem:[#allocation12 + $0x98] sm:$0xff]
        %v926 = vld [vmem:[#allocation12 + $0xa0] sm:$0xff]
        %v927 = vld [vmem:[#allocation12 + $0xa8] sm:$0xff]
        %v928 = vld [vmem:[#allocation12 + $0xb0] sm:$0xff]
        %v929 = vld [vmem:[#allocation12 + $0xb8] sm:$0xff]
        %v930 = vld [vmem:[#allocation12 + $0xc0] sm:$0xff]
        %v931 = vld [vmem:[#allocation12 + $0xc8] sm:$0xff]
        %v932 = vld [vmem:[#allocation12 + $0xd0] sm:$0xff]
        %v933 = vld [vmem:[#allocation12 + $0xd8] sm:$0xff]
        %v934 = vld [vmem:[#allocation12 + $0xe0] sm:$0xff]
        %v935 = vld [vmem:[#allocation12 + $0xe8] sm:$0xff]
        %v936 = vld [vmem:[#allocation12 + $0xf0] sm:$0xff]
        %v937 = vld [vmem:[#allocation12 + $0xf8] sm:$0xff]
        %v938 = vld [vmem:[#allocation12 + $0x100] sm:$0xff]
        %v939 = vld [vmem:[#allocation12 + $0x108] sm:$0xff]
        %v940 = vld [vmem:[#allocation12 + $0x110] sm:$0xff]
        %v941 = vld [vmem:[#allocation12 + $0x118] sm:$0xff]
        %v942 = vld [vmem:[#allocation12 + $0x120] sm:$0xff]
        %v943 = vld [vmem:[#allocation12 + $0x128] sm:$0xff]
        %v944 = vld [vmem:[#allocation12 + $0x130] sm:$0xff]
        %v945 = vld [vmem:[#allocation12 + $0x138] sm:$0xff]
        %v946 = vld [vmem:[#allocation12 + $0x140] sm:$0xff]
        %v947 = vld [vmem:[#allocation12 + $0x148] sm:$0xff]
        %v948 = vld [vmem:[#allocation12 + $0x150] sm:$0xff]
        %v949 = vld [vmem:[#allocation12 + $0x158] sm:$0xff]
        %v950 = vld [vmem:[#allocation12 + $0x160] sm:$0xff]
        %v951 = vld [vmem:[#allocation12 + $0x168] sm:$0xff]
        %v952 = vld [vmem:[#allocation12 + $0x170] sm:$0xff]
        %v953 = vld [vmem:[#allocation12 + $0x178] sm:$0xff]
        %v954 = vld [vmem:[#allocation12 + $0x180] sm:$0xff]
        %v955 = vld [vmem:[#allocation12 + $0x188] sm:$0xff]
        %v956 = vld [vmem:[#allocation12 + $0x190] sm:$0xff]
        %v957 = vld [vmem:[#allocation12 + $0x198] sm:$0xff]
        %v958 = vld [vmem:[#allocation12 + $0x1a0] sm:$0xff]
        %v959 = vld [vmem:[#allocation12 + $0x1a8] sm:$0xff]
        %v960 = vld [vmem:[#allocation12 + $0x1b0] sm:$0xff]
        %v961 = vld [vmem:[#allocation12 + $0x1b8] sm:$0xff]
        %v962 = vld [vmem:[#allocation12 + $0x1c0] sm:$0xff]
        %v963 = vld [vmem:[#allocation12 + $0x1c8] sm:$0xff]
        %v964 = vld [vmem:[#allocation12 + $0x1d0] sm:$0xff]
        %v965 = vld [vmem:[#allocation12 + $0x1d8] sm:$0xff]
        %v966 = vld [vmem:[#allocation12 + $0x1e0] sm:$0xff]
        %v967 = vld [vmem:[#allocation12 + $0x1e8] sm:$0xff]
        %v968 = vld [vmem:[#allocation12 + $0x1f0] sm:$0xff]
        %v969 = vld [vmem:[#allocation12 + $0x1f8] sm:$0xff]
        %v1034 = vunpack.c.l.b16 %v906
        %v1035 = vunpack.c.h.b16 %v906
        %v1036 = vunpack.c.l.b16 %v907
        %v1037 = vunpack.c.h.b16 %v907
        %v1038 = vunpack.c.l.b16 %v908
        %v1039 = vunpack.c.h.b16 %v908
        %v1040 = vunpack.c.l.b16 %v909
        %v1041 = vunpack.c.h.b16 %v909
        %v1042 = vunpack.c.l.b16 %v910
        %v1043 = vunpack.c.h.b16 %v910
        %v1044 = vunpack.c.l.b16 %v911
        %v1045 = vunpack.c.h.b16 %v911
        %v1046 = vunpack.c.l.b16 %v912
        %v1047 = vunpack.c.h.b16 %v912
        %v1048 = vunpack.c.l.b16 %v913
        %v1049 = vunpack.c.h.b16 %v913
        %v1050 = vunpack.c.l.b16 %v914
        %v1051 = vunpack.c.h.b16 %v914
        %v1052 = vunpack.c.l.b16 %v915
        %v1053 = vunpack.c.h.b16 %v915
        %v1054 = vunpack.c.l.b16 %v916
        %v1055 = vunpack.c.h.b16 %v916
        %v1056 = vunpack.c.l.b16 %v917
        %v1057 = vunpack.c.h.b16 %v917
        %v1058 = vunpack.c.l.b16 %v918
        %v1059 = vunpack.c.h.b16 %v918
        %v1060 = vunpack.c.l.b16 %v919
        %v1061 = vunpack.c.h.b16 %v919
        %v1062 = vunpack.c.l.b16 %v920
        %v1063 = vunpack.c.h.b16 %v920
        %v1064 = vunpack.c.l.b16 %v921
        %v1065 = vunpack.c.h.b16 %v921
        %v1066 = vunpack.c.l.b16 %v922
        %v1067 = vunpack.c.h.b16 %v922
        %v1068 = vunpack.c.l.b16 %v923
        %v1069 = vunpack.c.h.b16 %v923
        %v1070 = vunpack.c.l.b16 %v924
        %v1071 = vunpack.c.h.b16 %v924
        %v1072 = vunpack.c.l.b16 %v925
        %v1073 = vunpack.c.h.b16 %v925
        %v1074 = vunpack.c.l.b16 %v926
        %v1075 = vunpack.c.h.b16 %v926
        %v1076 = vunpack.c.l.b16 %v927
        %v1077 = vunpack.c.h.b16 %v927
        %v1078 = vunpack.c.l.b16 %v928
        %v1079 = vunpack.c.h.b16 %v928
        %v1080 = vunpack.c.l.b16 %v929
        %v1081 = vunpack.c.h.b16 %v929
        %v1082 = vunpack.c.l.b16 %v930
        %v1083 = vunpack.c.h.b16 %v930
        %v1084 = vunpack.c.l.b16 %v931
        %v1085 = vunpack.c.h.b16 %v931
        %v1086 = vunpack.c.l.b16 %v932
        %v1087 = vunpack.c.h.b16 %v932
        %v1088 = vunpack.c.l.b16 %v933
        %v1089 = vunpack.c.h.b16 %v933
        %v1090 = vunpack.c.l.b16 %v934
        %v1091 = vunpack.c.h.b16 %v934
        %v1092 = vunpack.c.l.b16 %v935
        %v1093 = vunpack.c.h.b16 %v935
        %v1094 = vunpack.c.l.b16 %v936
        %v1095 = vunpack.c.h.b16 %v936
        %v1096 = vunpack.c.l.b16 %v937
        %v1097 = vunpack.c.h.b16 %v937
        %v1098 = vunpack.c.l.b16 %v938
        %v1099 = vunpack.c.h.b16 %v938
        %v1100 = vunpack.c.l.b16 %v939
        %v1101 = vunpack.c.h.b16 %v939
        %v1102 = vunpack.c.l.b16 %v940
        %v1103 = vunpack.c.h.b16 %v940
        %v1104 = vunpack.c.l.b16 %v941
        %v1105 = vunpack.c.h.b16 %v941
        %v1106 = vunpack.c.l.b16 %v942
        %v1107 = vunpack.c.h.b16 %v942
        %v1108 = vunpack.c.l.b16 %v943
        %v1109 = vunpack.c.h.b16 %v943
        %v1110 = vunpack.c.l.b16 %v944
        %v1111 = vunpack.c.h.b16 %v944
        %v1112 = vunpack.c.l.b16 %v945
        %v1113 = vunpack.c.h.b16 %v945
        %v1114 = vunpack.c.l.b16 %v946
        %v1115 = vunpack.c.h.b16 %v946
        %v1116 = vunpack.c.l.b16 %v947
        %v1117 = vunpack.c.h.b16 %v947
        %v1118 = vunpack.c.l.b16 %v948
        %v1119 = vunpack.c.h.b16 %v948
        %v1120 = vunpack.c.l.b16 %v949
        %v1121 = vunpack.c.h.b16 %v949
        %v1122 = vunpack.c.l.b16 %v950
        %v1123 = vunpack.c.h.b16 %v950
        %v1124 = vunpack.c.l.b16 %v951
        %v1125 = vunpack.c.h.b16 %v951
        %v1126 = vunpack.c.l.b16 %v952
        %v1127 = vunpack.c.h.b16 %v952
        %v1128 = vunpack.c.l.b16 %v953
        %v1129 = vunpack.c.h.b16 %v953
        %v1130 = vunpack.c.l.b16 %v954
        %v1131 = vunpack.c.h.b16 %v954
        %v1132 = vunpack.c.l.b16 %v955
        %v1133 = vunpack.c.h.b16 %v955
        %v1134 = vunpack.c.l.b16 %v956
        %v1135 = vunpack.c.h.b16 %v956
        %v1136 = vunpack.c.l.b16 %v957
        %v1137 = vunpack.c.h.b16 %v957
        %v1138 = vunpack.c.l.b16 %v958
        %v1139 = vunpack.c.h.b16 %v958
        %v1140 = vunpack.c.l.b16 %v959
        %v1141 = vunpack.c.h.b16 %v959
        %v1142 = vunpack.c.l.b16 %v960
        %v1143 = vunpack.c.h.b16 %v960
        %v1144 = vunpack.c.l.b16 %v961
        %v1145 = vunpack.c.h.b16 %v961
        %v1146 = vunpack.c.l.b16 %v962
        %v1147 = vunpack.c.h.b16 %v962
        %v1148 = vunpack.c.l.b16 %v963
        %v1149 = vunpack.c.h.b16 %v963
        %v1150 = vunpack.c.l.b16 %v964
        %v1151 = vunpack.c.h.b16 %v964
        %v1152 = vunpack.c.l.b16 %v965
        %v1153 = vunpack.c.h.b16 %v965
        %v1154 = vunpack.c.l.b16 %v966
        %v1155 = vunpack.c.h.b16 %v966
        %v1156 = vunpack.c.l.b16 %v967
        %v1157 = vunpack.c.h.b16 %v967
        %v1158 = vunpack.c.l.b16 %v968
        %v1159 = vunpack.c.h.b16 %v968
        %v1160 = vunpack.c.l.b16 %v969
        %v1161 = vunpack.c.h.b16 %v969
        %v1162 = vpack.c.b16 %v1042, %v1034
        %v1163 = vpack.c.b16 %v1043, %v1035
        %v1164 = vpack.c.b16 %v1044, %v1036
        %v1165 = vpack.c.b16 %v1045, %v1037
        %v1166 = vpack.c.b16 %v1046, %v1038
        %v1167 = vpack.c.b16 %v1047, %v1039
        %v1168 = vpack.c.b16 %v1048, %v1040
        %v1169 = vpack.c.b16 %v1049, %v1041
        %v1170 = vpack.c.b16 %v1058, %v1050
        %v1171 = vpack.c.b16 %v1059, %v1051
        %v1172 = vpack.c.b16 %v1060, %v1052
        %v1173 = vpack.c.b16 %v1061, %v1053
        %v1174 = vpack.c.b16 %v1062, %v1054
        %v1175 = vpack.c.b16 %v1063, %v1055
        %v1176 = vpack.c.b16 %v1064, %v1056
        %v1177 = vpack.c.b16 %v1065, %v1057
        %v1178 = vpack.c.b16 %v1074, %v1066
        %v1179 = vpack.c.b16 %v1075, %v1067
        %v1180 = vpack.c.b16 %v1076, %v1068
        %v1181 = vpack.c.b16 %v1077, %v1069
        %v1182 = vpack.c.b16 %v1078, %v1070
        %v1183 = vpack.c.b16 %v1079, %v1071
        %v1184 = vpack.c.b16 %v1080, %v1072
        %v1185 = vpack.c.b16 %v1081, %v1073
        %v1186 = vpack.c.b16 %v1090, %v1082
        %v1187 = vpack.c.b16 %v1091, %v1083
        %v1188 = vpack.c.b16 %v1092, %v1084
        %v1189 = vpack.c.b16 %v1093, %v1085
        %v1190 = vpack.c.b16 %v1094, %v1086
        %v1191 = vpack.c.b16 %v1095, %v1087
        %v1192 = vpack.c.b16 %v1096, %v1088
        %v1193 = vpack.c.b16 %v1097, %v1089
        %v1194 = vpack.c.b16 %v1106, %v1098
        %v1195 = vpack.c.b16 %v1107, %v1099
        %v1196 = vpack.c.b16 %v1108, %v1100
        %v1197 = vpack.c.b16 %v1109, %v1101
        %v1198 = vpack.c.b16 %v1110, %v1102
        %v1199 = vpack.c.b16 %v1111, %v1103
        %v1200 = vpack.c.b16 %v1112, %v1104
        %v1201 = vpack.c.b16 %v1113, %v1105
        %v1202 = vpack.c.b16 %v1122, %v1114
        %v1203 = vpack.c.b16 %v1123, %v1115
        %v1204 = vpack.c.b16 %v1124, %v1116
        %v1205 = vpack.c.b16 %v1125, %v1117
        %v1206 = vpack.c.b16 %v1126, %v1118
        %v1207 = vpack.c.b16 %v1127, %v1119
        %v1208 = vpack.c.b16 %v1128, %v1120
        %v1209 = vpack.c.b16 %v1129, %v1121
        %v1210 = vpack.c.b16 %v1138, %v1130
        %v1211 = vpack.c.b16 %v1139, %v1131
        %v1212 = vpack.c.b16 %v1140, %v1132
        %v1213 = vpack.c.b16 %v1141, %v1133
        %v1214 = vpack.c.b16 %v1142, %v1134
        %v1215 = vpack.c.b16 %v1143, %v1135
        %v1216 = vpack.c.b16 %v1144, %v1136
        %v1217 = vpack.c.b16 %v1145, %v1137
        %v1218 = vpack.c.b16 %v1154, %v1146
        %v1219 = vpack.c.b16 %v1155, %v1147
        %v1220 = vpack.c.b16 %v1156, %v1148
        %v1221 = vpack.c.b16 %v1157, %v1149
        %v1222 = vpack.c.b16 %v1158, %v1150
        %v1223 = vpack.c.b16 %v1159, %v1151
        %v1224 = vpack.c.b16 %v1160, %v1152
        %v1225 = vpack.c.b16 %v1161, %v1153
        %1290 = vmatpush.bf16.msra.mxu0 %v1218
        %1291 = vmatpush.bf16.msra.mxu0 %v1210
        %1292 = vmatpush.bf16.msra.mxu0 %v1202
        %1293 = vmatpush.bf16.msra.mxu0 %v1194
        %1294 = vmatpush.bf16.msra.mxu0 %v1186
        %1295 = vmatpush.bf16.msra.mxu0 %v1178
        %1296 = vmatpush.bf16.msra.mxu0 %v1170
        %1297 = vmatpush.bf16.msra.mxu0 %v1162
        %1298 = vmatmul.bf16.gmra.mxu0 %v898
        %v1299 = vpop.f32.mrf.mxu0
        %v1300 = vadd.f32 0.0, %v1299
        %v1301 = vpop.f32.mrf.mxu0
        %v1302 = vadd.f32 0.0, %v1301
        %1303 = vmatmul.bf16.gmra.mxu0 %v899
        %v1304 = vpop.f32.mrf.mxu0
        %v1305 = vadd.f32 0.0, %v1304
        %v1306 = vpop.f32.mrf.mxu0
        %v1307 = vadd.f32 0.0, %v1306
        %1308 = vmatmul.bf16.gmra.mxu0 %v900
        %v1309 = vpop.f32.mrf.mxu0
        %v1310 = vadd.f32 0.0, %v1309
        %v1311 = vpop.f32.mrf.mxu0
        %v1312 = vadd.f32 0.0, %v1311
        %1313 = vmatmul.bf16.gmra.mxu0 %v901
        %v1314 = vpop.f32.mrf.mxu0
        %v1315 = vadd.f32 0.0, %v1314
        %v1316 = vpop.f32.mrf.mxu0
        %v1317 = vadd.f32 0.0, %v1316
        %1318 = vmatmul.bf16.gmra.mxu0 %v902
        %v1319 = vpop.f32.mrf.mxu0
        %v1320 = vadd.f32 0.0, %v1319
        %v1321 = vpop.f32.mrf.mxu0
        %v1322 = vadd.f32 0.0, %v1321
        %1323 = vmatmul.bf16.gmra.mxu0 %v903
        %v1324 = vpop.f32.mrf.mxu0
        %v1325 = vadd.f32 0.0, %v1324
        %v1326 = vpop.f32.mrf.mxu0
        %v1327 = vadd.f32 0.0, %v1326
        %1328 = vmatmul.bf16.gmra.mxu0 %v904
        %v1329 = vpop.f32.mrf.mxu0
        %v1330 = vadd.f32 0.0, %v1329
        %v1331 = vpop.f32.mrf.mxu0
        %v1332 = vadd.f32 0.0, %v1331
        %1333 = vmatmul.bf16.gmra.mxu0 %v905
        %v1334 = vpop.f32.mrf.mxu0
        %v1335 = vadd.f32 0.0, %v1334
        %v1336 = vpop.f32.mrf.mxu0
        %v1337 = vadd.f32 0.0, %v1336
        %1338 = vdwg.mxu0
        %1339 = vmatpush.bf16.msra.mxu0 %v1219
        %1340 = vmatpush.bf16.msra.mxu0 %v1211
        %1341 = vmatpush.bf16.msra.mxu0 %v1203
        %1342 = vmatpush.bf16.msra.mxu0 %v1195
        %1343 = vmatpush.bf16.msra.mxu0 %v1187
        %1344 = vmatpush.bf16.msra.mxu0 %v1179
        %1345 = vmatpush.bf16.msra.mxu0 %v1171
        %1346 = vmatpush.bf16.msra.mxu0 %v1163
        %1347 = vmatmul.bf16.gmra.mxu0 %v898
        %v1348 = vpop.f32.mrf.mxu0
        %v1349 = vadd.f32 0.0, %v1348
        %v1350 = vpop.f32.mrf.mxu0
        %v1351 = vadd.f32 0.0, %v1350
        %1352 = vmatmul.bf16.gmra.mxu0 %v899
        %v1353 = vpop.f32.mrf.mxu0
        %v1354 = vadd.f32 0.0, %v1353
        %v1355 = vpop.f32.mrf.mxu0
        %v1356 = vadd.f32 0.0, %v1355
        %1357 = vmatmul.bf16.gmra.mxu0 %v900
        %v1358 = vpop.f32.mrf.mxu0
        %v1359 = vadd.f32 0.0, %v1358
        %v1360 = vpop.f32.mrf.mxu0
        %v1361 = vadd.f32 0.0, %v1360
        %1362 = vmatmul.bf16.gmra.mxu0 %v901
        %v1363 = vpop.f32.mrf.mxu0
        %v1364 = vadd.f32 0.0, %v1363
        %v1365 = vpop.f32.mrf.mxu0
        %v1366 = vadd.f32 0.0, %v1365
        %1367 = vmatmul.bf16.gmra.mxu0 %v902
        %v1368 = vpop.f32.mrf.mxu0
        %v1369 = vadd.f32 0.0, %v1368
        %v1370 = vpop.f32.mrf.mxu0
        %v1371 = vadd.f32 0.0, %v1370
        %1372 = vmatmul.bf16.gmra.mxu0 %v903
        %v1373 = vpop.f32.mrf.mxu0
        %v1374 = vadd.f32 0.0, %v1373
        %v1375 = vpop.f32.mrf.mxu0
        %v1376 = vadd.f32 0.0, %v1375
        %1377 = vmatmul.bf16.gmra.mxu0 %v904
        %v1378 = vpop.f32.mrf.mxu0
        %v1379 = vadd.f32 0.0, %v1378
        %v1380 = vpop.f32.mrf.mxu0
        %v1381 = vadd.f32 0.0, %v1380
        %1382 = vmatmul.bf16.gmra.mxu0 %v905
        %v1383 = vpop.f32.mrf.mxu0
        %v1384 = vadd.f32 0.0, %v1383
        %v1385 = vpop.f32.mrf.mxu0
        %v1386 = vadd.f32 0.0, %v1385
        %1387 = vdwg.mxu0
        %1388 = vmatpush.bf16.msra.mxu0 %v1220
        %1389 = vmatpush.bf16.msra.mxu0 %v1212
        %1390 = vmatpush.bf16.msra.mxu0 %v1204
        %1391 = vmatpush.bf16.msra.mxu0 %v1196
        %1392 = vmatpush.bf16.msra.mxu0 %v1188
        %1393 = vmatpush.bf16.msra.mxu0 %v1180
        %1394 = vmatpush.bf16.msra.mxu0 %v1172
        %1395 = vmatpush.bf16.msra.mxu0 %v1164
        %1396 = vmatmul.bf16.gmra.mxu0 %v898
        %v1397 = vpop.f32.mrf.mxu0
        %v1398 = vadd.f32 0.0, %v1397
        %v1399 = vpop.f32.mrf.mxu0
        %v1400 = vadd.f32 0.0, %v1399
        %1401 = vmatmul.bf16.gmra.mxu0 %v899
        %v1402 = vpop.f32.mrf.mxu0
        %v1403 = vadd.f32 0.0, %v1402
        %v1404 = vpop.f32.mrf.mxu0
        %v1405 = vadd.f32 0.0, %v1404
        %1406 = vmatmul.bf16.gmra.mxu0 %v900
        %v1407 = vpop.f32.mrf.mxu0
        %v1408 = vadd.f32 0.0, %v1407
        %v1409 = vpop.f32.mrf.mxu0
        %v1410 = vadd.f32 0.0, %v1409
        %1411 = vmatmul.bf16.gmra.mxu0 %v901
        %v1412 = vpop.f32.mrf.mxu0
        %v1413 = vadd.f32 0.0, %v1412
        %v1414 = vpop.f32.mrf.mxu0
        %v1415 = vadd.f32 0.0, %v1414
        %1416 = vmatmul.bf16.gmra.mxu0 %v902
        %v1417 = vpop.f32.mrf.mxu0
        %v1418 = vadd.f32 0.0, %v1417
        %v1419 = vpop.f32.mrf.mxu0
        %v1420 = vadd.f32 0.0, %v1419
        %1421 = vmatmul.bf16.gmra.mxu0 %v903
        %v1422 = vpop.f32.mrf.mxu0
        %v1423 = vadd.f32 0.0, %v1422
        %v1424 = vpop.f32.mrf.mxu0
        %v1425 = vadd.f32 0.0, %v1424
        %1426 = vmatmul.bf16.gmra.mxu0 %v904
        %v1427 = vpop.f32.mrf.mxu0
        %v1428 = vadd.f32 0.0, %v1427
        %v1429 = vpop.f32.mrf.mxu0
        %v1430 = vadd.f32 0.0, %v1429
        %1431 = vmatmul.bf16.gmra.mxu0 %v905
        %v1432 = vpop.f32.mrf.mxu0
        %v1433 = vadd.f32 0.0, %v1432
        %v1434 = vpop.f32.mrf.mxu0
        %v1435 = vadd.f32 0.0, %v1434
        %1436 = vdwg.mxu0
        %1437 = vmatpush.bf16.msra.mxu0 %v1221
        %1438 = vmatpush.bf16.msra.mxu0 %v1213
        %1439 = vmatpush.bf16.msra.mxu0 %v1205
        %1440 = vmatpush.bf16.msra.mxu0 %v1197
        %1441 = vmatpush.bf16.msra.mxu0 %v1189
        %1442 = vmatpush.bf16.msra.mxu0 %v1181
        %1443 = vmatpush.bf16.msra.mxu0 %v1173
        %1444 = vmatpush.bf16.msra.mxu0 %v1165
        %1445 = vmatmul.bf16.gmra.mxu0 %v898
        %v1446 = vpop.f32.mrf.mxu0
        %v1447 = vadd.f32 0.0, %v1446
        %v1448 = vpop.f32.mrf.mxu0
        %v1449 = vadd.f32 0.0, %v1448
        %1450 = vmatmul.bf16.gmra.mxu0 %v899
        %v1451 = vpop.f32.mrf.mxu0
        %v1452 = vadd.f32 0.0, %v1451
        %v1453 = vpop.f32.mrf.mxu0
        %v1454 = vadd.f32 0.0, %v1453
        %1455 = vmatmul.bf16.gmra.mxu0 %v900
        %v1456 = vpop.f32.mrf.mxu0
        %v1457 = vadd.f32 0.0, %v1456
        %v1458 = vpop.f32.mrf.mxu0
        %v1459 = vadd.f32 0.0, %v1458
        %1460 = vmatmul.bf16.gmra.mxu0 %v901
        %v1461 = vpop.f32.mrf.mxu0
        %v1462 = vadd.f32 0.0, %v1461
        %v1463 = vpop.f32.mrf.mxu0
        %v1464 = vadd.f32 0.0, %v1463
        %1465 = vmatmul.bf16.gmra.mxu0 %v902
        %v1466 = vpop.f32.mrf.mxu0
        %v1467 = vadd.f32 0.0, %v1466
        %v1468 = vpop.f32.mrf.mxu0
        %v1469 = vadd.f32 0.0, %v1468
        %1470 = vmatmul.bf16.gmra.mxu0 %v903
        %v1471 = vpop.f32.mrf.mxu0
        %v1472 = vadd.f32 0.0, %v1471
        %v1473 = vpop.f32.mrf.mxu0
        %v1474 = vadd.f32 0.0, %v1473
        %1475 = vmatmul.bf16.gmra.mxu0 %v904
        %v1476 = vpop.f32.mrf.mxu0
        %v1477 = vadd.f32 0.0, %v1476
        %v1478 = vpop.f32.mrf.mxu0
        %v1479 = vadd.f32 0.0, %v1478
        %1480 = vmatmul.bf16.gmra.mxu0 %v905
        %v1481 = vpop.f32.mrf.mxu0
        %v1482 = vadd.f32 0.0, %v1481
        %v1483 = vpop.f32.mrf.mxu0
        %v1484 = vadd.f32 0.0, %v1483
        %1485 = vdwg.mxu0
        %1486 = vmatpush.bf16.msra.mxu0 %v1222
        %1487 = vmatpush.bf16.msra.mxu0 %v1214
        %1488 = vmatpush.bf16.msra.mxu0 %v1206
        %1489 = vmatpush.bf16.msra.mxu0 %v1198
        %1490 = vmatpush.bf16.msra.mxu0 %v1190
        %1491 = vmatpush.bf16.msra.mxu0 %v1182
        %1492 = vmatpush.bf16.msra.mxu0 %v1174
        %1493 = vmatpush.bf16.msra.mxu0 %v1166
        %1494 = vmatmul.bf16.gmra.mxu0 %v898
        %v1495 = vpop.f32.mrf.mxu0
        %v1496 = vadd.f32 0.0, %v1495
        %v1497 = vpop.f32.mrf.mxu0
        %v1498 = vadd.f32 0.0, %v1497
        %1499 = vmatmul.bf16.gmra.mxu0 %v899
        %v1500 = vpop.f32.mrf.mxu0
        %v1501 = vadd.f32 0.0, %v1500
        %v1502 = vpop.f32.mrf.mxu0
        %v1503 = vadd.f32 0.0, %v1502
        %1504 = vmatmul.bf16.gmra.mxu0 %v900
        %v1505 = vpop.f32.mrf.mxu0
        %v1506 = vadd.f32 0.0, %v1505
        %v1507 = vpop.f32.mrf.mxu0
        %v1508 = vadd.f32 0.0, %v1507
        %1509 = vmatmul.bf16.gmra.mxu0 %v901
        %v1510 = vpop.f32.mrf.mxu0
        %v1511 = vadd.f32 0.0, %v1510
        %v1512 = vpop.f32.mrf.mxu0
        %v1513 = vadd.f32 0.0, %v1512
        %1514 = vmatmul.bf16.gmra.mxu0 %v902
        %v1515 = vpop.f32.mrf.mxu0
        %v1516 = vadd.f32 0.0, %v1515
        %v1517 = vpop.f32.mrf.mxu0
        %v1518 = vadd.f32 0.0, %v1517
        %1519 = vmatmul.bf16.gmra.mxu0 %v903
        %v1520 = vpop.f32.mrf.mxu0
        %v1521 = vadd.f32 0.0, %v1520
        %v1522 = vpop.f32.mrf.mxu0
        %v1523 = vadd.f32 0.0, %v1522
        %1524 = vmatmul.bf16.gmra.mxu0 %v904
        %v1525 = vpop.f32.mrf.mxu0
        %v1526 = vadd.f32 0.0, %v1525
        %v1527 = vpop.f32.mrf.mxu0
        %v1528 = vadd.f32 0.0, %v1527
        %1529 = vmatmul.bf16.gmra.mxu0 %v905
        %v1530 = vpop.f32.mrf.mxu0
        %v1531 = vadd.f32 0.0, %v1530
        %v1532 = vpop.f32.mrf.mxu0
        %v1533 = vadd.f32 0.0, %v1532
        %1534 = vdwg.mxu0
        %1535 = vmatpush.bf16.msra.mxu0 %v1223
        %1536 = vmatpush.bf16.msra.mxu0 %v1215
        %1537 = vmatpush.bf16.msra.mxu0 %v1207
        %1538 = vmatpush.bf16.msra.mxu0 %v1199
        %1539 = vmatpush.bf16.msra.mxu0 %v1191
        %1540 = vmatpush.bf16.msra.mxu0 %v1183
        %1541 = vmatpush.bf16.msra.mxu0 %v1175
        %1542 = vmatpush.bf16.msra.mxu0 %v1167
        %1543 = vmatmul.bf16.gmra.mxu0 %v898
        %v1544 = vpop.f32.mrf.mxu0
        %v1545 = vadd.f32 0.0, %v1544
        %v1546 = vpop.f32.mrf.mxu0
        %v1547 = vadd.f32 0.0, %v1546
        %1548 = vmatmul.bf16.gmra.mxu0 %v899
        %v1549 = vpop.f32.mrf.mxu0
        %v1550 = vadd.f32 0.0, %v1549
        %v1551 = vpop.f32.mrf.mxu0
        %v1552 = vadd.f32 0.0, %v1551
        %1553 = vmatmul.bf16.gmra.mxu0 %v900
        %v1554 = vpop.f32.mrf.mxu0
        %v1555 = vadd.f32 0.0, %v1554
        %v1556 = vpop.f32.mrf.mxu0
        %v1557 = vadd.f32 0.0, %v1556
        %1558 = vmatmul.bf16.gmra.mxu0 %v901
        %v1559 = vpop.f32.mrf.mxu0
        %v1560 = vadd.f32 0.0, %v1559
        %v1561 = vpop.f32.mrf.mxu0
        %v1562 = vadd.f32 0.0, %v1561
        %1563 = vmatmul.bf16.gmra.mxu0 %v902
        %v1564 = vpop.f32.mrf.mxu0
        %v1565 = vadd.f32 0.0, %v1564
        %v1566 = vpop.f32.mrf.mxu0
        %v1567 = vadd.f32 0.0, %v1566
        %1568 = vmatmul.bf16.gmra.mxu0 %v903
        %v1569 = vpop.f32.mrf.mxu0
        %v1570 = vadd.f32 0.0, %v1569
        %v1571 = vpop.f32.mrf.mxu0
        %v1572 = vadd.f32 0.0, %v1571
        %1573 = vmatmul.bf16.gmra.mxu0 %v904
        %v1574 = vpop.f32.mrf.mxu0
        %v1575 = vadd.f32 0.0, %v1574
        %v1576 = vpop.f32.mrf.mxu0
        %v1577 = vadd.f32 0.0, %v1576
        %1578 = vmatmul.bf16.gmra.mxu0 %v905
        %v1579 = vpop.f32.mrf.mxu0
        %v1580 = vadd.f32 0.0, %v1579
        %v1581 = vpop.f32.mrf.mxu0
        %v1582 = vadd.f32 0.0, %v1581
        %1583 = vdwg.mxu0
        %1584 = vmatpush.bf16.msra.mxu0 %v1224
        %1585 = vmatpush.bf16.msra.mxu0 %v1216
        %1586 = vmatpush.bf16.msra.mxu0 %v1208
        %1587 = vmatpush.bf16.msra.mxu0 %v1200
        %1588 = vmatpush.bf16.msra.mxu0 %v1192
        %1589 = vmatpush.bf16.msra.mxu0 %v1184
        %1590 = vmatpush.bf16.msra.mxu0 %v1176
        %1591 = vmatpush.bf16.msra.mxu0 %v1168
        %1592 = vmatmul.bf16.gmra.mxu0 %v898
        %v1593 = vpop.f32.mrf.mxu0
        %v1594 = vadd.f32 0.0, %v1593
        %v1595 = vpop.f32.mrf.mxu0
        %v1596 = vadd.f32 0.0, %v1595
        %1597 = vmatmul.bf16.gmra.mxu0 %v899
        %v1598 = vpop.f32.mrf.mxu0
        %v1599 = vadd.f32 0.0, %v1598
        %v1600 = vpop.f32.mrf.mxu0
        %v1601 = vadd.f32 0.0, %v1600
        %1602 = vmatmul.bf16.gmra.mxu0 %v900
        %v1603 = vpop.f32.mrf.mxu0
        %v1604 = vadd.f32 0.0, %v1603
        %v1605 = vpop.f32.mrf.mxu0
        %v1606 = vadd.f32 0.0, %v1605
        %1607 = vmatmul.bf16.gmra.mxu0 %v901
        %v1608 = vpop.f32.mrf.mxu0
        %v1609 = vadd.f32 0.0, %v1608
        %v1610 = vpop.f32.mrf.mxu0
        %v1611 = vadd.f32 0.0, %v1610
        %1612 = vmatmul.bf16.gmra.mxu0 %v902
        %v1613 = vpop.f32.mrf.mxu0
        %v1614 = vadd.f32 0.0, %v1613
        %v1615 = vpop.f32.mrf.mxu0
        %v1616 = vadd.f32 0.0, %v1615
        %1617 = vmatmul.bf16.gmra.mxu0 %v903
        %v1618 = vpop.f32.mrf.mxu0
        %v1619 = vadd.f32 0.0, %v1618
        %v1620 = vpop.f32.mrf.mxu0
        %v1621 = vadd.f32 0.0, %v1620
        %1622 = vmatmul.bf16.gmra.mxu0 %v904
        %v1623 = vpop.f32.mrf.mxu0
        %v1624 = vadd.f32 0.0, %v1623
        %v1625 = vpop.f32.mrf.mxu0
        %v1626 = vadd.f32 0.0, %v1625
        %1627 = vmatmul.bf16.gmra.mxu0 %v905
        %v1628 = vpop.f32.mrf.mxu0
        %v1629 = vadd.f32 0.0, %v1628
        %v1630 = vpop.f32.mrf.mxu0
        %v1631 = vadd.f32 0.0, %v1630
        %1632 = vdwg.mxu0
        %1633 = vmatpush.bf16.msra.mxu0 %v1225
        %1634 = vmatpush.bf16.msra.mxu0 %v1217
        %1635 = vmatpush.bf16.msra.mxu0 %v1209
        %1636 = vmatpush.bf16.msra.mxu0 %v1201
        %1637 = vmatpush.bf16.msra.mxu0 %v1193
        %1638 = vmatpush.bf16.msra.mxu0 %v1185
        %1639 = vmatpush.bf16.msra.mxu0 %v1177
        %1640 = vmatpush.bf16.msra.mxu0 %v1169
        %1641 = vmatmul.bf16.gmra.mxu0 %v898
        %v1642 = vpop.f32.mrf.mxu0
        %v1643 = vadd.f32 0.0, %v1642
        %v1644 = vpop.f32.mrf.mxu0
        %v1645 = vadd.f32 0.0, %v1644
        %1646 = vmatmul.bf16.gmra.mxu0 %v899
        %v1647 = vpop.f32.mrf.mxu0
        %v1648 = vadd.f32 0.0, %v1647
        %v1649 = vpop.f32.mrf.mxu0
        %v1650 = vadd.f32 0.0, %v1649
        %1651 = vmatmul.bf16.gmra.mxu0 %v900
        %v1652 = vpop.f32.mrf.mxu0
        %v1653 = vadd.f32 0.0, %v1652
        %v1654 = vpop.f32.mrf.mxu0
        %v1655 = vadd.f32 0.0, %v1654
        %1656 = vmatmul.bf16.gmra.mxu0 %v901
        %v1657 = vpop.f32.mrf.mxu0
        %v1658 = vadd.f32 0.0, %v1657
        %v1659 = vpop.f32.mrf.mxu0
        %v1660 = vadd.f32 0.0, %v1659
        %1661 = vmatmul.bf16.gmra.mxu0 %v902
        %v1662 = vpop.f32.mrf.mxu0
        %v1663 = vadd.f32 0.0, %v1662
        %v1664 = vpop.f32.mrf.mxu0
        %v1665 = vadd.f32 0.0, %v1664
        %1666 = vmatmul.bf16.gmra.mxu0 %v903
        %v1667 = vpop.f32.mrf.mxu0
        %v1668 = vadd.f32 0.0, %v1667
        %v1669 = vpop.f32.mrf.mxu0
        %v1670 = vadd.f32 0.0, %v1669
        %1671 = vmatmul.bf16.gmra.mxu0 %v904
        %v1672 = vpop.f32.mrf.mxu0
        %v1673 = vadd.f32 0.0, %v1672
        %v1674 = vpop.f32.mrf.mxu0
        %v1675 = vadd.f32 0.0, %v1674
        %1676 = vmatmul.bf16.gmra.mxu0 %v905
        %v1677 = vpop.f32.mrf.mxu0
        %v1678 = vadd.f32 0.0, %v1677
        %v1679 = vpop.f32.mrf.mxu0
        %v1680 = vadd.f32 0.0, %v1679
        %1681 = vdwg.mxu0
        %v1682 = vmax.f32 %v1300, %v1302
        %v1683 = vmax.f32 %v1682, %v1305
        %v1684 = vmax.f32 %v1683, %v1307
        %v1685 = vmax.f32 %v1684, %v1310
        %v1686 = vmax.f32 %v1685, %v1312
        %v1687 = vmax.f32 %v1686, %v1315
        %v1688 = vmax.f32 %v1687, %v1317
        %v1689 = vmax.f32 %v1688, %v1320
        %v1690 = vmax.f32 %v1689, %v1322
        %v1691 = vmax.f32 %v1690, %v1325
        %v1692 = vmax.f32 %v1691, %v1327
        %v1693 = vmax.f32 %v1692, %v1330
        %v1694 = vmax.f32 %v1693, %v1332
        %v1695 = vmax.f32 %v1694, %v1335
        %v1696 = vmax.f32 %v1695, %v1337
        %v1697 = vrot.slane %v1696, 4
        %v1698 = vmax.f32 %v1696, %v1697
        %v1699 = vrot.slane %v1698, 2
        %v1700 = vmax.f32 %v1698, %v1699
        %v1701 = vrot.slane %v1700, 1
        %v1702 = vmax.f32 %v1700, %v1701
        %v1703 = vmax.f32 %v1349, %v1351
        %v1704 = vmax.f32 %v1703, %v1354
        %v1705 = vmax.f32 %v1704, %v1356
        %v1706 = vmax.f32 %v1705, %v1359
        %v1707 = vmax.f32 %v1706, %v1361
        %v1708 = vmax.f32 %v1707, %v1364
        %v1709 = vmax.f32 %v1708, %v1366
        %v1710 = vmax.f32 %v1709, %v1369
        %v1711 = vmax.f32 %v1710, %v1371
        %v1712 = vmax.f32 %v1711, %v1374
        %v1713 = vmax.f32 %v1712, %v1376
        %v1714 = vmax.f32 %v1713, %v1379
        %v1715 = vmax.f32 %v1714, %v1381
        %v1716 = vmax.f32 %v1715, %v1384
        %v1717 = vmax.f32 %v1716, %v1386
        %v1718 = vrot.slane %v1717, 4
        %v1719 = vmax.f32 %v1717, %v1718
        %v1720 = vrot.slane %v1719, 2
        %v1721 = vmax.f32 %v1719, %v1720
        %v1722 = vrot.slane %v1721, 1
        %v1723 = vmax.f32 %v1721, %v1722
        %v1724 = vmax.f32 %v1398, %v1400
        %v1725 = vmax.f32 %v1724, %v1403
        %v1726 = vmax.f32 %v1725, %v1405
        %v1727 = vmax.f32 %v1726, %v1408
        %v1728 = vmax.f32 %v1727, %v1410
        %v1729 = vmax.f32 %v1728, %v1413
        %v1730 = vmax.f32 %v1729, %v1415
        %v1731 = vmax.f32 %v1730, %v1418
        %v1732 = vmax.f32 %v1731, %v1420
        %v1733 = vmax.f32 %v1732, %v1423
        %v1734 = vmax.f32 %v1733, %v1425
        %v1735 = vmax.f32 %v1734, %v1428
        %v1736 = vmax.f32 %v1735, %v1430
        %v1737 = vmax.f32 %v1736, %v1433
        %v1738 = vmax.f32 %v1737, %v1435
        %v1739 = vrot.slane %v1738, 4
        %v1740 = vmax.f32 %v1738, %v1739
        %v1741 = vrot.slane %v1740, 2
        %v1742 = vmax.f32 %v1740, %v1741
        %v1743 = vrot.slane %v1742, 1
        %v1744 = vmax.f32 %v1742, %v1743
        %v1745 = vmax.f32 %v1447, %v1449
        %v1746 = vmax.f32 %v1745, %v1452
        %v1747 = vmax.f32 %v1746, %v1454
        %v1748 = vmax.f32 %v1747, %v1457
        %v1749 = vmax.f32 %v1748, %v1459
        %v1750 = vmax.f32 %v1749, %v1462
        %v1751 = vmax.f32 %v1750, %v1464
        %v1752 = vmax.f32 %v1751, %v1467
        %v1753 = vmax.f32 %v1752, %v1469
        %v1754 = vmax.f32 %v1753, %v1472
        %v1755 = vmax.f32 %v1754, %v1474
        %v1756 = vmax.f32 %v1755, %v1477
        %v1757 = vmax.f32 %v1756, %v1479
        %v1758 = vmax.f32 %v1757, %v1482
        %v1759 = vmax.f32 %v1758, %v1484
        %v1760 = vrot.slane %v1759, 4
        %v1761 = vmax.f32 %v1759, %v1760
        %v1762 = vrot.slane %v1761, 2
        %v1763 = vmax.f32 %v1761, %v1762
        %v1764 = vrot.slane %v1763, 1
        %v1765 = vmax.f32 %v1763, %v1764
        %v1766 = vmax.f32 %v1496, %v1498
        %v1767 = vmax.f32 %v1766, %v1501
        %v1768 = vmax.f32 %v1767, %v1503
        %v1769 = vmax.f32 %v1768, %v1506
        %v1770 = vmax.f32 %v1769, %v1508
        %v1771 = vmax.f32 %v1770, %v1511
        %v1772 = vmax.f32 %v1771, %v1513
        %v1773 = vmax.f32 %v1772, %v1516
        %v1774 = vmax.f32 %v1773, %v1518
        %v1775 = vmax.f32 %v1774, %v1521
        %v1776 = vmax.f32 %v1775, %v1523
        %v1777 = vmax.f32 %v1776, %v1526
        %v1778 = vmax.f32 %v1777, %v1528
        %v1779 = vmax.f32 %v1778, %v1531
        %v1780 = vmax.f32 %v1779, %v1533
        %v1781 = vrot.slane %v1780, 4
        %v1782 = vmax.f32 %v1780, %v1781
        %v1783 = vrot.slane %v1782, 2
        %v1784 = vmax.f32 %v1782, %v1783
        %v1785 = vrot.slane %v1784, 1
        %v1786 = vmax.f32 %v1784, %v1785
        %v1787 = vmax.f32 %v1545, %v1547
        %v1788 = vmax.f32 %v1787, %v1550
        %v1789 = vmax.f32 %v1788, %v1552
        %v1790 = vmax.f32 %v1789, %v1555
        %v1791 = vmax.f32 %v1790, %v1557
        %v1792 = vmax.f32 %v1791, %v1560
        %v1793 = vmax.f32 %v1792, %v1562
        %v1794 = vmax.f32 %v1793, %v1565
        %v1795 = vmax.f32 %v1794, %v1567
        %v1796 = vmax.f32 %v1795, %v1570
        %v1797 = vmax.f32 %v1796, %v1572
        %v1798 = vmax.f32 %v1797, %v1575
        %v1799 = vmax.f32 %v1798, %v1577
        %v1800 = vmax.f32 %v1799, %v1580
        %v1801 = vmax.f32 %v1800, %v1582
        %v1802 = vrot.slane %v1801, 4
        %v1803 = vmax.f32 %v1801, %v1802
        %v1804 = vrot.slane %v1803, 2
        %v1805 = vmax.f32 %v1803, %v1804
        %v1806 = vrot.slane %v1805, 1
        %v1807 = vmax.f32 %v1805, %v1806
        %v1808 = vmax.f32 %v1594, %v1596
        %v1809 = vmax.f32 %v1808, %v1599
        %v1810 = vmax.f32 %v1809, %v1601
        %v1811 = vmax.f32 %v1810, %v1604
        %v1812 = vmax.f32 %v1811, %v1606
        %v1813 = vmax.f32 %v1812, %v1609
        %v1814 = vmax.f32 %v1813, %v1611
        %v1815 = vmax.f32 %v1814, %v1614
        %v1816 = vmax.f32 %v1815, %v1616
        %v1817 = vmax.f32 %v1816, %v1619
        %v1818 = vmax.f32 %v1817, %v1621
        %v1819 = vmax.f32 %v1818, %v1624
        %v1820 = vmax.f32 %v1819, %v1626
        %v1821 = vmax.f32 %v1820, %v1629
        %v1822 = vmax.f32 %v1821, %v1631
        %v1823 = vrot.slane %v1822, 4
        %v1824 = vmax.f32 %v1822, %v1823
        %v1825 = vrot.slane %v1824, 2
        %v1826 = vmax.f32 %v1824, %v1825
        %v1827 = vrot.slane %v1826, 1
        %v1828 = vmax.f32 %v1826, %v1827
        %v1829 = vmax.f32 %v1643, %v1645
        %v1830 = vmax.f32 %v1829, %v1648
        %v1831 = vmax.f32 %v1830, %v1650
        %v1832 = vmax.f32 %v1831, %v1653
        %v1833 = vmax.f32 %v1832, %v1655
        %v1834 = vmax.f32 %v1833, %v1658
        %v1835 = vmax.f32 %v1834, %v1660
        %v1836 = vmax.f32 %v1835, %v1663
        %v1837 = vmax.f32 %v1836, %v1665
        %v1838 = vmax.f32 %v1837, %v1668
        %v1839 = vmax.f32 %v1838, %v1670
        %v1840 = vmax.f32 %v1839, %v1673
        %v1841 = vmax.f32 %v1840, %v1675
        %v1842 = vmax.f32 %v1841, %v1678
        %v1843 = vmax.f32 %v1842, %v1680
        %v1844 = vrot.slane %v1843, 4
        %v1845 = vmax.f32 %v1843, %v1844
        %v1846 = vrot.slane %v1845, 2
        %v1847 = vmax.f32 %v1845, %v1846
        %v1848 = vrot.slane %v1847, 1
        %v1849 = vmax.f32 %v1847, %v1848
        %p1850 = scmp.eq.s32.totalorder %s40, 0
        // Predicated region
        $region113: #{tpu_custom_call.1} parent=71 // pred_check
          %p1851 = pneg %p1850
        $region114: #{tpu_custom_call.1} parent=71 // pred_check_branch
          %1853 = sbr.rel (%p1851) target = $region116
        $region115: #{tpu_custom_call.1} parent=71 // pred_region
          %v1862 = vrot.slane %v1723, 7
          %v1863 = vrot.slane %v1744, 6
          %v1864 = vrot.slane %v1765, 5
          %v1865 = vrot.slane %v1786, 4
          %v1866 = vrot.slane %v1807, 3
          %v1867 = vrot.slane %v1828, 2
          %v1868 = vrot.slane %v1849, 1
          %vm1869 = vcmask 1040384
          %v1870 = vsel %vm1869, %v1702, %v1862
          %vm1871 = vcmask 1042434
          %v1872 = vsel %vm1871, %v1863, %v1864
          %vm1873 = vcmask 1041408
          %v1874 = vsel %vm1873, %v1870, %v1872
          %vm1875 = vcmask 1044484
          %v1876 = vsel %vm1875, %v1865, %v1866
          %vm1877 = vcmask 1046534
          %v1878 = vsel %vm1877, %v1867, %v1868
          %vm1879 = vcmask 1045508
          %v1880 = vsel %vm1879, %v1876, %v1878
          %vm1881 = vcmask 1043456
          %v1882 = vsel %vm1881, %v1874, %v1880
          %1884 = vst [vmem:[#allocation2] sm:$0xff] %v1882
        $region116: #{tpu_custom_call.1} parent=71 // pred_fallthru
          _
        %p1885 = scmp.gt.s32.totalorder %s40, 0
        // Predicated region
        $region117: #{tpu_custom_call.1} parent=71 // pred_check
          %p1886 = pneg %p1885
        $region118: #{tpu_custom_call.1} parent=71 // pred_check_branch
          %1888 = sbr.rel (%p1886) target = $region120
        $region119: #{tpu_custom_call.1} parent=71 // pred_region
          %v1889 = vld [vmem:[#allocation2] sm:$0xff]
          %v1898 = vrot.slane %v1723, 7
          %v1899 = vrot.slane %v1744, 6
          %v1900 = vrot.slane %v1765, 5
          %v1901 = vrot.slane %v1786, 4
          %v1902 = vrot.slane %v1807, 3
          %v1903 = vrot.slane %v1828, 2
          %v1904 = vrot.slane %v1849, 1
          %vm1905 = vcmask 1040384
          %v1906 = vsel %vm1905, %v1702, %v1898
          %vm1907 = vcmask 1042434
          %v1908 = vsel %vm1907, %v1899, %v1900
          %vm1909 = vcmask 1041408
          %v1910 = vsel %vm1909, %v1906, %v1908
          %vm1911 = vcmask 1044484
          %v1912 = vsel %vm1911, %v1901, %v1902
          %vm1913 = vcmask 1046534
          %v1914 = vsel %vm1913, %v1903, %v1904
          %vm1915 = vcmask 1045508
          %v1916 = vsel %vm1915, %v1912, %v1914
          %vm1917 = vcmask 1043456
          %v1918 = vsel %vm1917, %v1910, %v1916
          %v1920 = vmax.f32 %v1889, %v1918
          %1921 = vst [vmem:[#allocation2] sm:$0xff] %v1920
        $region120: #{tpu_custom_call.1} parent=71 // pred_fallthru
          _
        %p1922 = scmp.eq.s32.totalorder %s40, 1
        // Predicated region
        $region121: #{tpu_custom_call.1} parent=71 // pred_check
          %p1923 = pneg %p1922
        $region122: #{tpu_custom_call.1} parent=71 // pred_check_branch
          %1925 = sbr.rel (%p1923) target = $region124
        $region123: #{tpu_custom_call.1} parent=71 // pred_region
          %v1926 = vld [vmem:[#allocation2] sm:$0xff]
          %v1927 = vld [vmem:[#allocation14] sm:$0xff]
          %v1928 = vadd.f32 %v1926, %v1927
          %v1929 = vmax.f32 %v1928, 0.0
          %v1931 = vperm.slane %v1929, 0
          %v1932 = vperm.slane %v1929, 1
          %v1933 = vperm.slane %v1929, 2
          %v1934 = vperm.slane %v1929, 3
          %v1935 = vperm.slane %v1929, 4
          %v1936 = vperm.slane %v1929, 5
          %v1937 = vperm.slane %v1929, 6
          %v1938 = vperm.slane %v1929, 7
          %v1947 = vpack.c.bf16 %v1931, %v1931
          %v1948 = vpack.c.bf16 %v1932, %v1932
          %v1949 = vpack.c.bf16 %v1933, %v1933
          %v1950 = vpack.c.bf16 %v1934, %v1934
          %v1951 = vpack.c.bf16 %v1935, %v1935
          %v1952 = vpack.c.bf16 %v1936, %v1936
          %v1953 = vpack.c.bf16 %v1937, %v1937
          %v1954 = vpack.c.bf16 %v1938, %v1938
          %v1955 = vld [vmem:[#allocation15] sm:$0xff]
          %v1956 = vld [vmem:[#allocation15 + $0x8] sm:$0xff]
          %v1957 = vld [vmem:[#allocation15 + $0x10] sm:$0xff]
          %v1958 = vld [vmem:[#allocation15 + $0x18] sm:$0xff]
          %v1959 = vld [vmem:[#allocation15 + $0x20] sm:$0xff]
          %v1960 = vld [vmem:[#allocation15 + $0x28] sm:$0xff]
          %v1961 = vld [vmem:[#allocation15 + $0x30] sm:$0xff]
          %v1962 = vld [vmem:[#allocation15 + $0x38] sm:$0xff]
          %v1963 = vld [vmem:[#allocation15 + $0x40] sm:$0xff]
          %v1964 = vld [vmem:[#allocation15 + $0x48] sm:$0xff]
          %v1965 = vld [vmem:[#allocation15 + $0x50] sm:$0xff]
          %v1966 = vld [vmem:[#allocation15 + $0x58] sm:$0xff]
          %v1967 = vld [vmem:[#allocation15 + $0x60] sm:$0xff]
          %v1968 = vld [vmem:[#allocation15 + $0x68] sm:$0xff]
          %v1969 = vld [vmem:[#allocation15 + $0x70] sm:$0xff]
          %v1970 = vld [vmem:[#allocation15 + $0x78] sm:$0xff]
          %v1971 = vld [vmem:[#allocation15 + $0x80] sm:$0xff]
          %v1972 = vld [vmem:[#allocation15 + $0x88] sm:$0xff]
          %v1973 = vld [vmem:[#allocation15 + $0x90] sm:$0xff]
          %v1974 = vld [vmem:[#allocation15 + $0x98] sm:$0xff]
          %v1975 = vld [vmem:[#allocation15 + $0xa0] sm:$0xff]
          %v1976 = vld [vmem:[#allocation15 + $0xa8] sm:$0xff]
          %v1977 = vld [vmem:[#allocation15 + $0xb0] sm:$0xff]
          %v1978 = vld [vmem:[#allocation15 + $0xb8] sm:$0xff]
          %v1979 = vld [vmem:[#allocation15 + $0xc0] sm:$0xff]
          %v1980 = vld [vmem:[#allocation15 + $0xc8] sm:$0xff]
          %v1981 = vld [vmem:[#allocation15 + $0xd0] sm:$0xff]
          %v1982 = vld [vmem:[#allocation15 + $0xd8] sm:$0xff]
          %v1983 = vld [vmem:[#allocation15 + $0xe0] sm:$0xff]
          %v1984 = vld [vmem:[#allocation15 + $0xe8] sm:$0xff]
          %v1985 = vld [vmem:[#allocation15 + $0xf0] sm:$0xff]
          %v1986 = vld [vmem:[#allocation15 + $0xf8] sm:$0xff]
          %v1987 = vld [vmem:[#allocation15 + $0x100] sm:$0xff]
          %v1988 = vld [vmem:[#allocation15 + $0x108] sm:$0xff]
          %v1989 = vld [vmem:[#allocation15 + $0x110] sm:$0xff]
          %v1990 = vld [vmem:[#allocation15 + $0x118] sm:$0xff]
          %v1991 = vld [vmem:[#allocation15 + $0x120] sm:$0xff]
          %v1992 = vld [vmem:[#allocation15 + $0x128] sm:$0xff]
          %v1993 = vld [vmem:[#allocation15 + $0x130] sm:$0xff]
          %v1994 = vld [vmem:[#allocation15 + $0x138] sm:$0xff]
          %v1995 = vld [vmem:[#allocation15 + $0x140] sm:$0xff]
          %v1996 = vld [vmem:[#allocation15 + $0x148] sm:$0xff]
          %v1997 = vld [vmem:[#allocation15 + $0x150] sm:$0xff]
          %v1998 = vld [vmem:[#allocation15 + $0x158] sm:$0xff]
          %v1999 = vld [vmem:[#allocation15 + $0x160] sm:$0xff]
          %v2000 = vld [vmem:[#allocation15 + $0x168] sm:$0xff]
          %v2001 = vld [vmem:[#allocation15 + $0x170] sm:$0xff]
          %v2002 = vld [vmem:[#allocation15 + $0x178] sm:$0xff]
          %v2003 = vld [vmem:[#allocation15 + $0x180] sm:$0xff]
          %v2004 = vld [vmem:[#allocation15 + $0x188] sm:$0xff]
          %v2005 = vld [vmem:[#allocation15 + $0x190] sm:$0xff]
          %v2006 = vld [vmem:[#allocation15 + $0x198] sm:$0xff]
          %v2007 = vld [vmem:[#allocation15 + $0x1a0] sm:$0xff]
          %v2008 = vld [vmem:[#allocation15 + $0x1a8] sm:$0xff]
          %v2009 = vld [vmem:[#allocation15 + $0x1b0] sm:$0xff]
          %v2010 = vld [vmem:[#allocation15 + $0x1b8] sm:$0xff]
          %v2011 = vld [vmem:[#allocation15 + $0x1c0] sm:$0xff]
          %v2012 = vld [vmem:[#allocation15 + $0x1c8] sm:$0xff]
          %v2013 = vld [vmem:[#allocation15 + $0x1d0] sm:$0xff]
          %v2014 = vld [vmem:[#allocation15 + $0x1d8] sm:$0xff]
          %v2015 = vld [vmem:[#allocation15 + $0x1e0] sm:$0xff]
          %v2016 = vld [vmem:[#allocation15 + $0x1e8] sm:$0xff]
          %v2017 = vld [vmem:[#allocation15 + $0x1f0] sm:$0xff]
          %v2018 = vld [vmem:[#allocation15 + $0x1f8] sm:$0xff]
          %v2019 = vld [vmem:[#allocation15 + $0x200] sm:$0xff]
          %v2020 = vld [vmem:[#allocation15 + $0x208] sm:$0xff]
          %v2021 = vld [vmem:[#allocation15 + $0x210] sm:$0xff]
          %v2022 = vld [vmem:[#allocation15 + $0x218] sm:$0xff]
          %v2023 = vld [vmem:[#allocation15 + $0x220] sm:$0xff]
          %v2024 = vld [vmem:[#allocation15 + $0x228] sm:$0xff]
          %v2025 = vld [vmem:[#allocation15 + $0x230] sm:$0xff]
          %v2026 = vld [vmem:[#allocation15 + $0x238] sm:$0xff]
          %v2027 = vld [vmem:[#allocation15 + $0x240] sm:$0xff]
          %v2028 = vld [vmem:[#allocation15 + $0x248] sm:$0xff]
          %v2029 = vld [vmem:[#allocation15 + $0x250] sm:$0xff]
          %v2030 = vld [vmem:[#allocation15 + $0x258] sm:$0xff]
          %v2031 = vld [vmem:[#allocation15 + $0x260] sm:$0xff]
          %v2032 = vld [vmem:[#allocation15 + $0x268] sm:$0xff]
          %v2033 = vld [vmem:[#allocation15 + $0x270] sm:$0xff]
          %v2034 = vld [vmem:[#allocation15 + $0x278] sm:$0xff]
          %v2035 = vld [vmem:[#allocation15 + $0x280] sm:$0xff]
          %v2036 = vld [vmem:[#allocation15 + $0x288] sm:$0xff]
          %v2037 = vld [vmem:[#allocation15 + $0x290] sm:$0xff]
          %v2038 = vld [vmem:[#allocation15 + $0x298] sm:$0xff]
          %v2039 = vld [vmem:[#allocation15 + $0x2a0] sm:$0xff]
          %v2040 = vld [vmem:[#allocation15 + $0x2a8] sm:$0xff]
          %v2041 = vld [vmem:[#allocation15 + $0x2b0] sm:$0xff]
          %v2042 = vld [vmem:[#allocation15 + $0x2b8] sm:$0xff]
          %v2043 = vld [vmem:[#allocation15 + $0x2c0] sm:$0xff]
          %v2044 = vld [vmem:[#allocation15 + $0x2c8] sm:$0xff]
          %v2045 = vld [vmem:[#allocation15 + $0x2d0] sm:$0xff]
          %v2046 = vld [vmem:[#allocation15 + $0x2d8] sm:$0xff]
          %v2047 = vld [vmem:[#allocation15 + $0x2e0] sm:$0xff]
          %v2048 = vld [vmem:[#allocation15 + $0x2e8] sm:$0xff]
          %v2049 = vld [vmem:[#allocation15 + $0x2f0] sm:$0xff]
          %v2050 = vld [vmem:[#allocation15 + $0x2f8] sm:$0xff]
          %v2051 = vld [vmem:[#allocation15 + $0x300] sm:$0xff]
          %v2052 = vld [vmem:[#allocation15 + $0x308] sm:$0xff]
          %v2053 = vld [vmem:[#allocation15 + $0x310] sm:$0xff]
          %v2054 = vld [vmem:[#allocation15 + $0x318] sm:$0xff]
          %v2055 = vld [vmem:[#allocation15 + $0x320] sm:$0xff]
          %v2056 = vld [vmem:[#allocation15 + $0x328] sm:$0xff]
          %v2057 = vld [vmem:[#allocation15 + $0x330] sm:$0xff]
          %v2058 = vld [vmem:[#allocation15 + $0x338] sm:$0xff]
          %v2059 = vld [vmem:[#allocation15 + $0x340] sm:$0xff]
          %v2060 = vld [vmem:[#allocation15 + $0x348] sm:$0xff]
          %v2061 = vld [vmem:[#allocation15 + $0x350] sm:$0xff]
          %v2062 = vld [vmem:[#allocation15 + $0x358] sm:$0xff]
          %v2063 = vld [vmem:[#allocation15 + $0x360] sm:$0xff]
          %v2064 = vld [vmem:[#allocation15 + $0x368] sm:$0xff]
          %v2065 = vld [vmem:[#allocation15 + $0x370] sm:$0xff]
          %v2066 = vld [vmem:[#allocation15 + $0x378] sm:$0xff]
          %v2067 = vld [vmem:[#allocation15 + $0x380] sm:$0xff]
          %v2068 = vld [vmem:[#allocation15 + $0x388] sm:$0xff]
          %v2069 = vld [vmem:[#allocation15 + $0x390] sm:$0xff]
          %v2070 = vld [vmem:[#allocation15 + $0x398] sm:$0xff]
          %v2071 = vld [vmem:[#allocation15 + $0x3a0] sm:$0xff]
          %v2072 = vld [vmem:[#allocation15 + $0x3a8] sm:$0xff]
          %v2073 = vld [vmem:[#allocation15 + $0x3b0] sm:$0xff]
          %v2074 = vld [vmem:[#allocation15 + $0x3b8] sm:$0xff]
          %v2075 = vld [vmem:[#allocation15 + $0x3c0] sm:$0xff]
          %v2076 = vld [vmem:[#allocation15 + $0x3c8] sm:$0xff]
          %v2077 = vld [vmem:[#allocation15 + $0x3d0] sm:$0xff]
          %v2078 = vld [vmem:[#allocation15 + $0x3d8] sm:$0xff]
          %v2079 = vld [vmem:[#allocation15 + $0x3e0] sm:$0xff]
          %v2080 = vld [vmem:[#allocation15 + $0x3e8] sm:$0xff]
          %v2081 = vld [vmem:[#allocation15 + $0x3f0] sm:$0xff]
          %v2082 = vld [vmem:[#allocation15 + $0x3f8] sm:$0xff]
          %v2083 = vld [vmem:[#allocation15 + $0x400] sm:$0xff]
          %v2084 = vld [vmem:[#allocation15 + $0x408] sm:$0xff]
          %v2085 = vld [vmem:[#allocation15 + $0x410] sm:$0xff]
          %v2086 = vld [vmem:[#allocation15 + $0x418] sm:$0xff]
          %v2087 = vld [vmem:[#allocation15 + $0x420] sm:$0xff]
          %v2088 = vld [vmem:[#allocation15 + $0x428] sm:$0xff]
          %v2089 = vld [vmem:[#allocation15 + $0x430] sm:$0xff]
          %v2090 = vld [vmem:[#allocation15 + $0x438] sm:$0xff]
          %v2091 = vld [vmem:[#allocation15 + $0x440] sm:$0xff]
          %v2092 = vld [vmem:[#allocation15 + $0x448] sm:$0xff]
          %v2093 = vld [vmem:[#allocation15 + $0x450] sm:$0xff]
          %v2094 = vld [vmem:[#allocation15 + $0x458] sm:$0xff]
          %v2095 = vld [vmem:[#allocation15 + $0x460] sm:$0xff]
          %v2096 = vld [vmem:[#allocation15 + $0x468] sm:$0xff]
          %v2097 = vld [vmem:[#allocation15 + $0x470] sm:$0xff]
          %v2098 = vld [vmem:[#allocation15 + $0x478] sm:$0xff]
          %v2099 = vld [vmem:[#allocation15 + $0x480] sm:$0xff]
          %v2100 = vld [vmem:[#allocation15 + $0x488] sm:$0xff]
          %v2101 = vld [vmem:[#allocation15 + $0x490] sm:$0xff]
          %v2102 = vld [vmem:[#allocation15 + $0x498] sm:$0xff]
          %v2103 = vld [vmem:[#allocation15 + $0x4a0] sm:$0xff]
          %v2104 = vld [vmem:[#allocation15 + $0x4a8] sm:$0xff]
          %v2105 = vld [vmem:[#allocation15 + $0x4b0] sm:$0xff]
          %v2106 = vld [vmem:[#allocation15 + $0x4b8] sm:$0xff]
          %v2107 = vld [vmem:[#allocation15 + $0x4c0] sm:$0xff]
          %v2108 = vld [vmem:[#allocation15 + $0x4c8] sm:$0xff]
          %v2109 = vld [vmem:[#allocation15 + $0x4d0] sm:$0xff]
          %v2110 = vld [vmem:[#allocation15 + $0x4d8] sm:$0xff]
          %v2111 = vld [vmem:[#allocation15 + $0x4e0] sm:$0xff]
          %v2112 = vld [vmem:[#allocation15 + $0x4e8] sm:$0xff]
          %v2113 = vld [vmem:[#allocation15 + $0x4f0] sm:$0xff]
          %v2114 = vld [vmem:[#allocation15 + $0x4f8] sm:$0xff]
          %v2115 = vld [vmem:[#allocation15 + $0x500] sm:$0xff]
          %v2116 = vld [vmem:[#allocation15 + $0x508] sm:$0xff]
          %v2117 = vld [vmem:[#allocation15 + $0x510] sm:$0xff]
          %v2118 = vld [vmem:[#allocation15 + $0x518] sm:$0xff]
          %v2119 = vld [vmem:[#allocation15 + $0x520] sm:$0xff]
          %v2120 = vld [vmem:[#allocation15 + $0x528] sm:$0xff]
          %v2121 = vld [vmem:[#allocation15 + $0x530] sm:$0xff]
          %v2122 = vld [vmem:[#allocation15 + $0x538] sm:$0xff]
          %v2123 = vld [vmem:[#allocation15 + $0x540] sm:$0xff]
          %v2124 = vld [vmem:[#allocation15 + $0x548] sm:$0xff]
          %v2125 = vld [vmem:[#allocation15 + $0x550] sm:$0xff]
          %v2126 = vld [vmem:[#allocation15 + $0x558] sm:$0xff]
          %v2127 = vld [vmem:[#allocation15 + $0x560] sm:$0xff]
          %v2128 = vld [vmem:[#allocation15 + $0x568] sm:$0xff]
          %v2129 = vld [vmem:[#allocation15 + $0x570] sm:$0xff]
          %v2130 = vld [vmem:[#allocation15 + $0x578] sm:$0xff]
          %v2131 = vld [vmem:[#allocation15 + $0x580] sm:$0xff]
          %v2132 = vld [vmem:[#allocation15 + $0x588] sm:$0xff]
          %v2133 = vld [vmem:[#allocation15 + $0x590] sm:$0xff]
          %v2134 = vld [vmem:[#allocation15 + $0x598] sm:$0xff]
          %v2135 = vld [vmem:[#allocation15 + $0x5a0] sm:$0xff]
          %v2136 = vld [vmem:[#allocation15 + $0x5a8] sm:$0xff]
          %v2137 = vld [vmem:[#allocation15 + $0x5b0] sm:$0xff]
          %v2138 = vld [vmem:[#allocation15 + $0x5b8] sm:$0xff]
          %v2139 = vld [vmem:[#allocation15 + $0x5c0] sm:$0xff]
          %v2140 = vld [vmem:[#allocation15 + $0x5c8] sm:$0xff]
          %v2141 = vld [vmem:[#allocation15 + $0x5d0] sm:$0xff]
          %v2142 = vld [vmem:[#allocation15 + $0x5d8] sm:$0xff]
          %v2143 = vld [vmem:[#allocation15 + $0x5e0] sm:$0xff]
          %v2144 = vld [vmem:[#allocation15 + $0x5e8] sm:$0xff]
          %v2145 = vld [vmem:[#allocation15 + $0x5f0] sm:$0xff]
          %v2146 = vld [vmem:[#allocation15 + $0x5f8] sm:$0xff]
          %v2147 = vld [vmem:[#allocation15 + $0x600] sm:$0xff]
          %v2148 = vld [vmem:[#allocation15 + $0x608] sm:$0xff]
          %v2149 = vld [vmem:[#allocation15 + $0x610] sm:$0xff]
          %v2150 = vld [vmem:[#allocation15 + $0x618] sm:$0xff]
          %v2151 = vld [vmem:[#allocation15 + $0x620] sm:$0xff]
          %v2152 = vld [vmem:[#allocation15 + $0x628] sm:$0xff]
          %v2153 = vld [vmem:[#allocation15 + $0x630] sm:$0xff]
          %v2154 = vld [vmem:[#allocation15 + $0x638] sm:$0xff]
          %v2155 = vld [vmem:[#allocation15 + $0x640] sm:$0xff]
          %v2156 = vld [vmem:[#allocation15 + $0x648] sm:$0xff]
          %v2157 = vld [vmem:[#allocation15 + $0x650] sm:$0xff]
          %v2158 = vld [vmem:[#allocation15 + $0x658] sm:$0xff]
          %v2159 = vld [vmem:[#allocation15 + $0x660] sm:$0xff]
          %v2160 = vld [vmem:[#allocation15 + $0x668] sm:$0xff]
          %v2161 = vld [vmem:[#allocation15 + $0x670] sm:$0xff]
          %v2162 = vld [vmem:[#allocation15 + $0x678] sm:$0xff]
          %v2163 = vld [vmem:[#allocation15 + $0x680] sm:$0xff]
          %v2164 = vld [vmem:[#allocation15 + $0x688] sm:$0xff]
          %v2165 = vld [vmem:[#allocation15 + $0x690] sm:$0xff]
          %v2166 = vld [vmem:[#allocation15 + $0x698] sm:$0xff]
          %v2167 = vld [vmem:[#allocation15 + $0x6a0] sm:$0xff]
          %v2168 = vld [vmem:[#allocation15 + $0x6a8] sm:$0xff]
          %v2169 = vld [vmem:[#allocation15 + $0x6b0] sm:$0xff]
          %v2170 = vld [vmem:[#allocation15 + $0x6b8] sm:$0xff]
          %v2171 = vld [vmem:[#allocation15 + $0x6c0] sm:$0xff]
          %v2172 = vld [vmem:[#allocation15 + $0x6c8] sm:$0xff]
          %v2173 = vld [vmem:[#allocation15 + $0x6d0] sm:$0xff]
          %v2174 = vld [vmem:[#allocation15 + $0x6d8] sm:$0xff]
          %v2175 = vld [vmem:[#allocation15 + $0x6e0] sm:$0xff]
          %v2176 = vld [vmem:[#allocation15 + $0x6e8] sm:$0xff]
          %v2177 = vld [vmem:[#allocation15 + $0x6f0] sm:$0xff]
          %v2178 = vld [vmem:[#allocation15 + $0x6f8] sm:$0xff]
          %v2179 = vld [vmem:[#allocation15 + $0x700] sm:$0xff]
          %v2180 = vld [vmem:[#allocation15 + $0x708] sm:$0xff]
          %v2181 = vld [vmem:[#allocation15 + $0x710] sm:$0xff]
          %v2182 = vld [vmem:[#allocation15 + $0x718] sm:$0xff]
          %v2183 = vld [vmem:[#allocation15 + $0x720] sm:$0xff]
          %v2184 = vld [vmem:[#allocation15 + $0x728] sm:$0xff]
          %v2185 = vld [vmem:[#allocation15 + $0x730] sm:$0xff]
          %v2186 = vld [vmem:[#allocation15 + $0x738] sm:$0xff]
          %v2187 = vld [vmem:[#allocation15 + $0x740] sm:$0xff]
          %v2188 = vld [vmem:[#allocation15 + $0x748] sm:$0xff]
          %v2189 = vld [vmem:[#allocation15 + $0x750] sm:$0xff]
          %v2190 = vld [vmem:[#allocation15 + $0x758] sm:$0xff]
          %v2191 = vld [vmem:[#allocation15 + $0x760] sm:$0xff]
          %v2192 = vld [vmem:[#allocation15 + $0x768] sm:$0xff]
          %v2193 = vld [vmem:[#allocation15 + $0x770] sm:$0xff]
          %v2194 = vld [vmem:[#allocation15 + $0x778] sm:$0xff]
          %v2195 = vld [vmem:[#allocation15 + $0x780] sm:$0xff]
          %v2196 = vld [vmem:[#allocation15 + $0x788] sm:$0xff]
          %v2197 = vld [vmem:[#allocation15 + $0x790] sm:$0xff]
          %v2198 = vld [vmem:[#allocation15 + $0x798] sm:$0xff]
          %v2199 = vld [vmem:[#allocation15 + $0x7a0] sm:$0xff]
          %v2200 = vld [vmem:[#allocation15 + $0x7a8] sm:$0xff]
          %v2201 = vld [vmem:[#allocation15 + $0x7b0] sm:$0xff]
          %v2202 = vld [vmem:[#allocation15 + $0x7b8] sm:$0xff]
          %v2203 = vld [vmem:[#allocation15 + $0x7c0] sm:$0xff]
          %v2204 = vld [vmem:[#allocation15 + $0x7c8] sm:$0xff]
          %v2205 = vld [vmem:[#allocation15 + $0x7d0] sm:$0xff]
          %v2206 = vld [vmem:[#allocation15 + $0x7d8] sm:$0xff]
          %v2207 = vld [vmem:[#allocation15 + $0x7e0] sm:$0xff]
          %v2208 = vld [vmem:[#allocation15 + $0x7e8] sm:$0xff]
          %v2209 = vld [vmem:[#allocation15 + $0x7f0] sm:$0xff]
          %v2210 = vld [vmem:[#allocation15 + $0x7f8] sm:$0xff]
          %v2211 = vld [vmem:[%s8] sm:$0xf]
          %v2468 = vunpack.c.l.b16 %v1955
          %v2469 = vunpack.c.h.b16 %v1955
          %v2470 = vunpack.c.l.b16 %v1956
          %v2471 = vunpack.c.h.b16 %v1956
          %v2472 = vunpack.c.l.b16 %v1957
          %v2473 = vunpack.c.h.b16 %v1957
          %v2474 = vunpack.c.l.b16 %v1958
          %v2475 = vunpack.c.h.b16 %v1958
          %v2476 = vunpack.c.l.b16 %v1959
          %v2477 = vunpack.c.h.b16 %v1959
          %v2478 = vunpack.c.l.b16 %v1960
          %v2479 = vunpack.c.h.b16 %v1960
          %v2480 = vunpack.c.l.b16 %v1961
          %v2481 = vunpack.c.h.b16 %v1961
          %v2482 = vunpack.c.l.b16 %v1962
          %v2483 = vunpack.c.h.b16 %v1962
          %v2484 = vunpack.c.l.b16 %v1963
          %v2485 = vunpack.c.h.b16 %v1963
          %v2486 = vunpack.c.l.b16 %v1964
          %v2487 = vunpack.c.h.b16 %v1964
          %v2488 = vunpack.c.l.b16 %v1965
          %v2489 = vunpack.c.h.b16 %v1965
          %v2490 = vunpack.c.l.b16 %v1966
          %v2491 = vunpack.c.h.b16 %v1966
          %v2492 = vunpack.c.l.b16 %v1967
          %v2493 = vunpack.c.h.b16 %v1967
          %v2494 = vunpack.c.l.b16 %v1968
          %v2495 = vunpack.c.h.b16 %v1968
          %v2496 = vunpack.c.l.b16 %v1969
          %v2497 = vunpack.c.h.b16 %v1969
          %v2498 = vunpack.c.l.b16 %v1970
          %v2499 = vunpack.c.h.b16 %v1970
          %v2500 = vunpack.c.l.b16 %v1971
          %v2501 = vunpack.c.h.b16 %v1971
          %v2502 = vunpack.c.l.b16 %v1972
          %v2503 = vunpack.c.h.b16 %v1972
          %v2504 = vunpack.c.l.b16 %v1973
          %v2505 = vunpack.c.h.b16 %v1973
          %v2506 = vunpack.c.l.b16 %v1974
          %v2507 = vunpack.c.h.b16 %v1974
          %v2508 = vunpack.c.l.b16 %v1975
          %v2509 = vunpack.c.h.b16 %v1975
          %v2510 = vunpack.c.l.b16 %v1976
          %v2511 = vunpack.c.h.b16 %v1976
          %v2512 = vunpack.c.l.b16 %v1977
          %v2513 = vunpack.c.h.b16 %v1977
          %v2514 = vunpack.c.l.b16 %v1978
          %v2515 = vunpack.c.h.b16 %v1978
          %v2516 = vunpack.c.l.b16 %v1979
          %v2517 = vunpack.c.h.b16 %v1979
          %v2518 = vunpack.c.l.b16 %v1980
          %v2519 = vunpack.c.h.b16 %v1980
          %v2520 = vunpack.c.l.b16 %v1981
          %v2521 = vunpack.c.h.b16 %v1981
          %v2522 = vunpack.c.l.b16 %v1982
          %v2523 = vunpack.c.h.b16 %v1982
          %v2524 = vunpack.c.l.b16 %v1983
          %v2525 = vunpack.c.h.b16 %v1983
          %v2526 = vunpack.c.l.b16 %v1984
          %v2527 = vunpack.c.h.b16 %v1984
          %v2528 = vunpack.c.l.b16 %v1985
          %v2529 = vunpack.c.h.b16 %v1985
          %v2530 = vunpack.c.l.b16 %v1986
          %v2531 = vunpack.c.h.b16 %v1986
          %v2532 = vunpack.c.l.b16 %v1987
          %v2533 = vunpack.c.h.b16 %v1987
          %v2534 = vunpack.c.l.b16 %v1988
          %v2535 = vunpack.c.h.b16 %v1988
          %v2536 = vunpack.c.l.b16 %v1989
          %v2537 = vunpack.c.h.b16 %v1989
          %v2538 = vunpack.c.l.b16 %v1990
          %v2539 = vunpack.c.h.b16 %v1990
          %v2540 = vunpack.c.l.b16 %v1991
          %v2541 = vunpack.c.h.b16 %v1991
          %v2542 = vunpack.c.l.b16 %v1992
          %v2543 = vunpack.c.h.b16 %v1992
          %v2544 = vunpack.c.l.b16 %v1993
          %v2545 = vunpack.c.h.b16 %v1993
          %v2546 = vunpack.c.l.b16 %v1994
          %v2547 = vunpack.c.h.b16 %v1994
          %v2548 = vunpack.c.l.b16 %v1995
          %v2549 = vunpack.c.h.b16 %v1995
          %v2550 = vunpack.c.l.b16 %v1996
          %v2551 = vunpack.c.h.b16 %v1996
          %v2552 = vunpack.c.l.b16 %v1997
          %v2553 = vunpack.c.h.b16 %v1997
          %v2554 = vunpack.c.l.b16 %v1998
          %v2555 = vunpack.c.h.b16 %v1998
          %v2556 = vunpack.c.l.b16 %v1999
          %v2557 = vunpack.c.h.b16 %v1999
          %v2558 = vunpack.c.l.b16 %v2000
          %v2559 = vunpack.c.h.b16 %v2000
          %v2560 = vunpack.c.l.b16 %v2001
          %v2561 = vunpack.c.h.b16 %v2001
          %v2562 = vunpack.c.l.b16 %v2002
          %v2563 = vunpack.c.h.b16 %v2002
          %v2564 = vunpack.c.l.b16 %v2003
          %v2565 = vunpack.c.h.b16 %v2003
          %v2566 = vunpack.c.l.b16 %v2004
          %v2567 = vunpack.c.h.b16 %v2004
          %v2568 = vunpack.c.l.b16 %v2005
          %v2569 = vunpack.c.h.b16 %v2005
          %v2570 = vunpack.c.l.b16 %v2006
          %v2571 = vunpack.c.h.b16 %v2006
          %v2572 = vunpack.c.l.b16 %v2007
          %v2573 = vunpack.c.h.b16 %v2007
          %v2574 = vunpack.c.l.b16 %v2008
          %v2575 = vunpack.c.h.b16 %v2008
          %v2576 = vunpack.c.l.b16 %v2009
          %v2577 = vunpack.c.h.b16 %v2009
          %v2578 = vunpack.c.l.b16 %v2010
          %v2579 = vunpack.c.h.b16 %v2010
          %v2580 = vunpack.c.l.b16 %v2011
          %v2581 = vunpack.c.h.b16 %v2011
          %v2582 = vunpack.c.l.b16 %v2012
          %v2583 = vunpack.c.h.b16 %v2012
          %v2584 = vunpack.c.l.b16 %v2013
          %v2585 = vunpack.c.h.b16 %v2013
          %v2586 = vunpack.c.l.b16 %v2014
          %v2587 = vunpack.c.h.b16 %v2014
          %v2588 = vunpack.c.l.b16 %v2015
          %v2589 = vunpack.c.h.b16 %v2015
          %v2590 = vunpack.c.l.b16 %v2016
          %v2591 = vunpack.c.h.b16 %v2016
          %v2592 = vunpack.c.l.b16 %v2017
          %v2593 = vunpack.c.h.b16 %v2017
          %v2594 = vunpack.c.l.b16 %v2018
          %v2595 = vunpack.c.h.b16 %v2018
          %v2596 = vunpack.c.l.b16 %v2019
          %v2597 = vunpack.c.h.b16 %v2019
          %v2598 = vunpack.c.l.b16 %v2020
          %v2599 = vunpack.c.h.b16 %v2020
          %v2600 = vunpack.c.l.b16 %v2021
          %v2601 = vunpack.c.h.b16 %v2021
          %v2602 = vunpack.c.l.b16 %v2022
          %v2603 = vunpack.c.h.b16 %v2022
          %v2604 = vunpack.c.l.b16 %v2023
          %v2605 = vunpack.c.h.b16 %v2023
          %v2606 = vunpack.c.l.b16 %v2024
          %v2607 = vunpack.c.h.b16 %v2024
          %v2608 = vunpack.c.l.b16 %v2025
          %v2609 = vunpack.c.h.b16 %v2025
          %v2610 = vunpack.c.l.b16 %v2026
          %v2611 = vunpack.c.h.b16 %v2026
          %v2612 = vunpack.c.l.b16 %v2027
          %v2613 = vunpack.c.h.b16 %v2027
          %v2614 = vunpack.c.l.b16 %v2028
          %v2615 = vunpack.c.h.b16 %v2028
          %v2616 = vunpack.c.l.b16 %v2029
          %v2617 = vunpack.c.h.b16 %v2029
          %v2618 = vunpack.c.l.b16 %v2030
          %v2619 = vunpack.c.h.b16 %v2030
          %v2620 = vunpack.c.l.b16 %v2031
          %v2621 = vunpack.c.h.b16 %v2031
          %v2622 = vunpack.c.l.b16 %v2032
          %v2623 = vunpack.c.h.b16 %v2032
          %v2624 = vunpack.c.l.b16 %v2033
          %v2625 = vunpack.c.h.b16 %v2033
          %v2626 = vunpack.c.l.b16 %v2034
          %v2627 = vunpack.c.h.b16 %v2034
          %v2628 = vunpack.c.l.b16 %v2035
          %v2629 = vunpack.c.h.b16 %v2035
          %v2630 = vunpack.c.l.b16 %v2036
          %v2631 = vunpack.c.h.b16 %v2036
          %v2632 = vunpack.c.l.b16 %v2037
          %v2633 = vunpack.c.h.b16 %v2037
          %v2634 = vunpack.c.l.b16 %v2038
          %v2635 = vunpack.c.h.b16 %v2038
          %v2636 = vunpack.c.l.b16 %v2039
          %v2637 = vunpack.c.h.b16 %v2039
          %v2638 = vunpack.c.l.b16 %v2040
          %v2639 = vunpack.c.h.b16 %v2040
          %v2640 = vunpack.c.l.b16 %v2041
          %v2641 = vunpack.c.h.b16 %v2041
          %v2642 = vunpack.c.l.b16 %v2042
          %v2643 = vunpack.c.h.b16 %v2042
          %v2644 = vunpack.c.l.b16 %v2043
          %v2645 = vunpack.c.h.b16 %v2043
          %v2646 = vunpack.c.l.b16 %v2044
          %v2647 = vunpack.c.h.b16 %v2044
          %v2648 = vunpack.c.l.b16 %v2045
          %v2649 = vunpack.c.h.b16 %v2045
          %v2650 = vunpack.c.l.b16 %v2046
          %v2651 = vunpack.c.h.b16 %v2046
          %v2652 = vunpack.c.l.b16 %v2047
          %v2653 = vunpack.c.h.b16 %v2047
          %v2654 = vunpack.c.l.b16 %v2048
          %v2655 = vunpack.c.h.b16 %v2048
          %v2656 = vunpack.c.l.b16 %v2049
          %v2657 = vunpack.c.h.b16 %v2049
          %v2658 = vunpack.c.l.b16 %v2050
          %v2659 = vunpack.c.h.b16 %v2050
          %v2660 = vunpack.c.l.b16 %v2051
          %v2661 = vunpack.c.h.b16 %v2051
          %v2662 = vunpack.c.l.b16 %v2052
          %v2663 = vunpack.c.h.b16 %v2052
          %v2664 = vunpack.c.l.b16 %v2053
          %v2665 = vunpack.c.h.b16 %v2053
          %v2666 = vunpack.c.l.b16 %v2054
          %v2667 = vunpack.c.h.b16 %v2054
          %v2668 = vunpack.c.l.b16 %v2055
          %v2669 = vunpack.c.h.b16 %v2055
          %v2670 = vunpack.c.l.b16 %v2056
          %v2671 = vunpack.c.h.b16 %v2056
          %v2672 = vunpack.c.l.b16 %v2057
          %v2673 = vunpack.c.h.b16 %v2057
          %v2674 = vunpack.c.l.b16 %v2058
          %v2675 = vunpack.c.h.b16 %v2058
          %v2676 = vunpack.c.l.b16 %v2059
          %v2677 = vunpack.c.h.b16 %v2059
          %v2678 = vunpack.c.l.b16 %v2060
          %v2679 = vunpack.c.h.b16 %v2060
          %v2680 = vunpack.c.l.b16 %v2061
          %v2681 = vunpack.c.h.b16 %v2061
          %v2682 = vunpack.c.l.b16 %v2062
          %v2683 = vunpack.c.h.b16 %v2062
          %v2684 = vunpack.c.l.b16 %v2063
          %v2685 = vunpack.c.h.b16 %v2063
          %v2686 = vunpack.c.l.b16 %v2064
          %v2687 = vunpack.c.h.b16 %v2064
          %v2688 = vunpack.c.l.b16 %v2065
          %v2689 = vunpack.c.h.b16 %v2065
          %v2690 = vunpack.c.l.b16 %v2066
          %v2691 = vunpack.c.h.b16 %v2066
          %v2692 = vunpack.c.l.b16 %v2067
          %v2693 = vunpack.c.h.b16 %v2067
          %v2694 = vunpack.c.l.b16 %v2068
          %v2695 = vunpack.c.h.b16 %v2068
          %v2696 = vunpack.c.l.b16 %v2069
          %v2697 = vunpack.c.h.b16 %v2069
          %v2698 = vunpack.c.l.b16 %v2070
          %v2699 = vunpack.c.h.b16 %v2070
          %v2700 = vunpack.c.l.b16 %v2071
          %v2701 = vunpack.c.h.b16 %v2071
          %v2702 = vunpack.c.l.b16 %v2072
          %v2703 = vunpack.c.h.b16 %v2072
          %v2704 = vunpack.c.l.b16 %v2073
          %v2705 = vunpack.c.h.b16 %v2073
          %v2706 = vunpack.c.l.b16 %v2074
          %v2707 = vunpack.c.h.b16 %v2074
          %v2708 = vunpack.c.l.b16 %v2075
          %v2709 = vunpack.c.h.b16 %v2075
          %v2710 = vunpack.c.l.b16 %v2076
          %v2711 = vunpack.c.h.b16 %v2076
          %v2712 = vunpack.c.l.b16 %v2077
          %v2713 = vunpack.c.h.b16 %v2077
          %v2714 = vunpack.c.l.b16 %v2078
          %v2715 = vunpack.c.h.b16 %v2078
          %v2716 = vunpack.c.l.b16 %v2079
          %v2717 = vunpack.c.h.b16 %v2079
          %v2718 = vunpack.c.l.b16 %v2080
          %v2719 = vunpack.c.h.b16 %v2080
          %v2720 = vunpack.c.l.b16 %v2081
          %v2721 = vunpack.c.h.b16 %v2081
          %v2722 = vunpack.c.l.b16 %v2082
          %v2723 = vunpack.c.h.b16 %v2082
          %v2724 = vunpack.c.l.b16 %v2083
          %v2725 = vunpack.c.h.b16 %v2083
          %v2726 = vunpack.c.l.b16 %v2084
          %v2727 = vunpack.c.h.b16 %v2084
          %v2728 = vunpack.c.l.b16 %v2085
          %v2729 = vunpack.c.h.b16 %v2085
          %v2730 = vunpack.c.l.b16 %v2086
          %v2731 = vunpack.c.h.b16 %v2086
          %v2732 = vunpack.c.l.b16 %v2087
          %v2733 = vunpack.c.h.b16 %v2087
          %v2734 = vunpack.c.l.b16 %v2088
          %v2735 = vunpack.c.h.b16 %v2088
          %v2736 = vunpack.c.l.b16 %v2089
          %v2737 = vunpack.c.h.b16 %v2089
          %v2738 = vunpack.c.l.b16 %v2090
          %v2739 = vunpack.c.h.b16 %v2090
          %v2740 = vunpack.c.l.b16 %v2091
          %v2741 = vunpack.c.h.b16 %v2091
          %v2742 = vunpack.c.l.b16 %v2092
          %v2743 = vunpack.c.h.b16 %v2092
          %v2744 = vunpack.c.l.b16 %v2093
          %v2745 = vunpack.c.h.b16 %v2093
          %v2746 = vunpack.c.l.b16 %v2094
          %v2747 = vunpack.c.h.b16 %v2094
          %v2748 = vunpack.c.l.b16 %v2095
          %v2749 = vunpack.c.h.b16 %v2095
          %v2750 = vunpack.c.l.b16 %v2096
          %v2751 = vunpack.c.h.b16 %v2096
          %v2752 = vunpack.c.l.b16 %v2097
          %v2753 = vunpack.c.h.b16 %v2097
          %v2754 = vunpack.c.l.b16 %v2098
          %v2755 = vunpack.c.h.b16 %v2098
          %v2756 = vunpack.c.l.b16 %v2099
          %v2757 = vunpack.c.h.b16 %v2099
          %v2758 = vunpack.c.l.b16 %v2100
          %v2759 = vunpack.c.h.b16 %v2100
          %v2760 = vunpack.c.l.b16 %v2101
          %v2761 = vunpack.c.h.b16 %v2101
          %v2762 = vunpack.c.l.b16 %v2102
          %v2763 = vunpack.c.h.b16 %v2102
          %v2764 = vunpack.c.l.b16 %v2103
          %v2765 = vunpack.c.h.b16 %v2103
          %v2766 = vunpack.c.l.b16 %v2104
          %v2767 = vunpack.c.h.b16 %v2104
          %v2768 = vunpack.c.l.b16 %v2105
          %v2769 = vunpack.c.h.b16 %v2105
          %v2770 = vunpack.c.l.b16 %v2106
          %v2771 = vunpack.c.h.b16 %v2106
          %v2772 = vunpack.c.l.b16 %v2107
          %v2773 = vunpack.c.h.b16 %v2107
          %v2774 = vunpack.c.l.b16 %v2108
          %v2775 = vunpack.c.h.b16 %v2108
          %v2776 = vunpack.c.l.b16 %v2109
          %v2777 = vunpack.c.h.b16 %v2109
          %v2778 = vunpack.c.l.b16 %v2110
          %v2779 = vunpack.c.h.b16 %v2110
          %v2780 = vunpack.c.l.b16 %v2111
          %v2781 = vunpack.c.h.b16 %v2111
          %v2782 = vunpack.c.l.b16 %v2112
          %v2783 = vunpack.c.h.b16 %v2112
          %v2784 = vunpack.c.l.b16 %v2113
          %v2785 = vunpack.c.h.b16 %v2113
          %v2786 = vunpack.c.l.b16 %v2114
          %v2787 = vunpack.c.h.b16 %v2114
          %v2788 = vunpack.c.l.b16 %v2115
          %v2789 = vunpack.c.h.b16 %v2115
          %v2790 = vunpack.c.l.b16 %v2116
          %v2791 = vunpack.c.h.b16 %v2116
          %v2792 = vunpack.c.l.b16 %v2117
          %v2793 = vunpack.c.h.b16 %v2117
          %v2794 = vunpack.c.l.b16 %v2118
          %v2795 = vunpack.c.h.b16 %v2118
          %v2796 = vunpack.c.l.b16 %v2119
          %v2797 = vunpack.c.h.b16 %v2119
          %v2798 = vunpack.c.l.b16 %v2120
          %v2799 = vunpack.c.h.b16 %v2120
          %v2800 = vunpack.c.l.b16 %v2121
          %v2801 = vunpack.c.h.b16 %v2121
          %v2802 = vunpack.c.l.b16 %v2122
          %v2803 = vunpack.c.h.b16 %v2122
          %v2804 = vunpack.c.l.b16 %v2123
          %v2805 = vunpack.c.h.b16 %v2123
          %v2806 = vunpack.c.l.b16 %v2124
          %v2807 = vunpack.c.h.b16 %v2124
          %v2808 = vunpack.c.l.b16 %v2125
          %v2809 = vunpack.c.h.b16 %v2125
          %v2810 = vunpack.c.l.b16 %v2126
          %v2811 = vunpack.c.h.b16 %v2126
          %v2812 = vunpack.c.l.b16 %v2127
          %v2813 = vunpack.c.h.b16 %v2127
          %v2814 = vunpack.c.l.b16 %v2128
          %v2815 = vunpack.c.h.b16 %v2128
          %v2816 = vunpack.c.l.b16 %v2129
          %v2817 = vunpack.c.h.b16 %v2129
          %v2818 = vunpack.c.l.b16 %v2130
          %v2819 = vunpack.c.h.b16 %v2130
          %v2820 = vunpack.c.l.b16 %v2131
          %v2821 = vunpack.c.h.b16 %v2131
          %v2822 = vunpack.c.l.b16 %v2132
          %v2823 = vunpack.c.h.b16 %v2132
          %v2824 = vunpack.c.l.b16 %v2133
          %v2825 = vunpack.c.h.b16 %v2133
          %v2826 = vunpack.c.l.b16 %v2134
          %v2827 = vunpack.c.h.b16 %v2134
          %v2828 = vunpack.c.l.b16 %v2135
          %v2829 = vunpack.c.h.b16 %v2135
          %v2830 = vunpack.c.l.b16 %v2136
          %v2831 = vunpack.c.h.b16 %v2136
          %v2832 = vunpack.c.l.b16 %v2137
          %v2833 = vunpack.c.h.b16 %v2137
          %v2834 = vunpack.c.l.b16 %v2138
          %v2835 = vunpack.c.h.b16 %v2138
          %v2836 = vunpack.c.l.b16 %v2139
          %v2837 = vunpack.c.h.b16 %v2139
          %v2838 = vunpack.c.l.b16 %v2140
          %v2839 = vunpack.c.h.b16 %v2140
          %v2840 = vunpack.c.l.b16 %v2141
          %v2841 = vunpack.c.h.b16 %v2141
          %v2842 = vunpack.c.l.b16 %v2142
          %v2843 = vunpack.c.h.b16 %v2142
          %v2844 = vunpack.c.l.b16 %v2143
          %v2845 = vunpack.c.h.b16 %v2143
          %v2846 = vunpack.c.l.b16 %v2144
          %v2847 = vunpack.c.h.b16 %v2144
          %v2848 = vunpack.c.l.b16 %v2145
          %v2849 = vunpack.c.h.b16 %v2145
          %v2850 = vunpack.c.l.b16 %v2146
          %v2851 = vunpack.c.h.b16 %v2146
          %v2852 = vunpack.c.l.b16 %v2147
          %v2853 = vunpack.c.h.b16 %v2147
          %v2854 = vunpack.c.l.b16 %v2148
          %v2855 = vunpack.c.h.b16 %v2148
          %v2856 = vunpack.c.l.b16 %v2149
          %v2857 = vunpack.c.h.b16 %v2149
          %v2858 = vunpack.c.l.b16 %v2150
          %v2859 = vunpack.c.h.b16 %v2150
          %v2860 = vunpack.c.l.b16 %v2151
          %v2861 = vunpack.c.h.b16 %v2151
          %v2862 = vunpack.c.l.b16 %v2152
          %v2863 = vunpack.c.h.b16 %v2152
          %v2864 = vunpack.c.l.b16 %v2153
          %v2865 = vunpack.c.h.b16 %v2153
          %v2866 = vunpack.c.l.b16 %v2154
          %v2867 = vunpack.c.h.b16 %v2154
          %v2868 = vunpack.c.l.b16 %v2155
          %v2869 = vunpack.c.h.b16 %v2155
          %v2870 = vunpack.c.l.b16 %v2156
          %v2871 = vunpack.c.h.b16 %v2156
          %v2872 = vunpack.c.l.b16 %v2157
          %v2873 = vunpack.c.h.b16 %v2157
          %v2874 = vunpack.c.l.b16 %v2158
          %v2875 = vunpack.c.h.b16 %v2158
          %v2876 = vunpack.c.l.b16 %v2159
          %v2877 = vunpack.c.h.b16 %v2159
          %v2878 = vunpack.c.l.b16 %v2160
          %v2879 = vunpack.c.h.b16 %v2160
          %v2880 = vunpack.c.l.b16 %v2161
          %v2881 = vunpack.c.h.b16 %v2161
          %v2882 = vunpack.c.l.b16 %v2162
          %v2883 = vunpack.c.h.b16 %v2162
          %v2884 = vunpack.c.l.b16 %v2163
          %v2885 = vunpack.c.h.b16 %v2163
          %v2886 = vunpack.c.l.b16 %v2164
          %v2887 = vunpack.c.h.b16 %v2164
          %v2888 = vunpack.c.l.b16 %v2165
          %v2889 = vunpack.c.h.b16 %v2165
          %v2890 = vunpack.c.l.b16 %v2166
          %v2891 = vunpack.c.h.b16 %v2166
          %v2892 = vunpack.c.l.b16 %v2167
          %v2893 = vunpack.c.h.b16 %v2167
          %v2894 = vunpack.c.l.b16 %v2168
          %v2895 = vunpack.c.h.b16 %v2168
          %v2896 = vunpack.c.l.b16 %v2169
          %v2897 = vunpack.c.h.b16 %v2169
          %v2898 = vunpack.c.l.b16 %v2170
          %v2899 = vunpack.c.h.b16 %v2170
          %v2900 = vunpack.c.l.b16 %v2171
          %v2901 = vunpack.c.h.b16 %v2171
          %v2902 = vunpack.c.l.b16 %v2172
          %v2903 = vunpack.c.h.b16 %v2172
          %v2904 = vunpack.c.l.b16 %v2173
          %v2905 = vunpack.c.h.b16 %v2173
          %v2906 = vunpack.c.l.b16 %v2174
          %v2907 = vunpack.c.h.b16 %v2174
          %v2908 = vunpack.c.l.b16 %v2175
          %v2909 = vunpack.c.h.b16 %v2175
          %v2910 = vunpack.c.l.b16 %v2176
          %v2911 = vunpack.c.h.b16 %v2176
          %v2912 = vunpack.c.l.b16 %v2177
          %v2913 = vunpack.c.h.b16 %v2177
          %v2914 = vunpack.c.l.b16 %v2178
          %v2915 = vunpack.c.h.b16 %v2178
          %v2916 = vunpack.c.l.b16 %v2179
          %v2917 = vunpack.c.h.b16 %v2179
          %v2918 = vunpack.c.l.b16 %v2180
          %v2919 = vunpack.c.h.b16 %v2180
          %v2920 = vunpack.c.l.b16 %v2181
          %v2921 = vunpack.c.h.b16 %v2181
          %v2922 = vunpack.c.l.b16 %v2182
          %v2923 = vunpack.c.h.b16 %v2182
          %v2924 = vunpack.c.l.b16 %v2183
          %v2925 = vunpack.c.h.b16 %v2183
          %v2926 = vunpack.c.l.b16 %v2184
          %v2927 = vunpack.c.h.b16 %v2184
          %v2928 = vunpack.c.l.b16 %v2185
          %v2929 = vunpack.c.h.b16 %v2185
          %v2930 = vunpack.c.l.b16 %v2186
          %v2931 = vunpack.c.h.b16 %v2186
          %v2932 = vunpack.c.l.b16 %v2187
          %v2933 = vunpack.c.h.b16 %v2187
          %v2934 = vunpack.c.l.b16 %v2188
          %v2935 = vunpack.c.h.b16 %v2188
          %v2936 = vunpack.c.l.b16 %v2189
          %v2937 = vunpack.c.h.b16 %v2189
          %v2938 = vunpack.c.l.b16 %v2190
          %v2939 = vunpack.c.h.b16 %v2190
          %v2940 = vunpack.c.l.b16 %v2191
          %v2941 = vunpack.c.h.b16 %v2191
          %v2942 = vunpack.c.l.b16 %v2192
          %v2943 = vunpack.c.h.b16 %v2192
          %v2944 = vunpack.c.l.b16 %v2193
          %v2945 = vunpack.c.h.b16 %v2193
          %v2946 = vunpack.c.l.b16 %v2194
          %v2947 = vunpack.c.h.b16 %v2194
          %v2948 = vunpack.c.l.b16 %v2195
          %v2949 = vunpack.c.h.b16 %v2195
          %v2950 = vunpack.c.l.b16 %v2196
          %v2951 = vunpack.c.h.b16 %v2196
          %v2952 = vunpack.c.l.b16 %v2197
          %v2953 = vunpack.c.h.b16 %v2197
          %v2954 = vunpack.c.l.b16 %v2198
          %v2955 = vunpack.c.h.b16 %v2198
          %v2956 = vunpack.c.l.b16 %v2199
          %v2957 = vunpack.c.h.b16 %v2199
          %v2958 = vunpack.c.l.b16 %v2200
          %v2959 = vunpack.c.h.b16 %v2200
          %v2960 = vunpack.c.l.b16 %v2201
          %v2961 = vunpack.c.h.b16 %v2201
          %v2962 = vunpack.c.l.b16 %v2202
          %v2963 = vunpack.c.h.b16 %v2202
          %v2964 = vunpack.c.l.b16 %v2203
          %v2965 = vunpack.c.h.b16 %v2203
          %v2966 = vunpack.c.l.b16 %v2204
          %v2967 = vunpack.c.h.b16 %v2204
          %v2968 = vunpack.c.l.b16 %v2205
          %v2969 = vunpack.c.h.b16 %v2205
          %v2970 = vunpack.c.l.b16 %v2206
          %v2971 = vunpack.c.h.b16 %v2206
          %v2972 = vunpack.c.l.b16 %v2207
          %v2973 = vunpack.c.h.b16 %v2207
          %v2974 = vunpack.c.l.b16 %v2208
          %v2975 = vunpack.c.h.b16 %v2208
          %v2976 = vunpack.c.l.b16 %v2209
          %v2977 = vunpack.c.h.b16 %v2209
          %v2978 = vunpack.c.l.b16 %v2210
          %v2979 = vunpack.c.h.b16 %v2210
          %v2980 = vpack.c.b16 %v2472, %v2468
          %v2981 = vpack.c.b16 %v2473, %v2469
          %v2982 = vpack.c.b16 %v2474, %v2470
          %v2983 = vpack.c.b16 %v2475, %v2471
          %v2984 = vpack.c.b16 %v2480, %v2476
          %v2985 = vpack.c.b16 %v2481, %v2477
          %v2986 = vpack.c.b16 %v2482, %v2478
          %v2987 = vpack.c.b16 %v2483, %v2479
          %v2988 = vpack.c.b16 %v2488, %v2484
          %v2989 = vpack.c.b16 %v2489, %v2485
          %v2990 = vpack.c.b16 %v2490, %v2486
          %v2991 = vpack.c.b16 %v2491, %v2487
          %v2992 = vpack.c.b16 %v2496, %v2492
          %v2993 = vpack.c.b16 %v2497, %v2493
          %v2994 = vpack.c.b16 %v2498, %v2494
          %v2995 = vpack.c.b16 %v2499, %v2495
          %v2996 = vpack.c.b16 %v2504, %v2500
          %v2997 = vpack.c.b16 %v2505, %v2501
          %v2998 = vpack.c.b16 %v2506, %v2502
          %v2999 = vpack.c.b16 %v2507, %v2503
          %v3000 = vpack.c.b16 %v2512, %v2508
          %v3001 = vpack.c.b16 %v2513, %v2509
          %v3002 = vpack.c.b16 %v2514, %v2510
          %v3003 = vpack.c.b16 %v2515, %v2511
          %v3004 = vpack.c.b16 %v2520, %v2516
          %v3005 = vpack.c.b16 %v2521, %v2517
          %v3006 = vpack.c.b16 %v2522, %v2518
          %v3007 = vpack.c.b16 %v2523, %v2519
          %v3008 = vpack.c.b16 %v2528, %v2524
          %v3009 = vpack.c.b16 %v2529, %v2525
          %v3010 = vpack.c.b16 %v2530, %v2526
          %v3011 = vpack.c.b16 %v2531, %v2527
          %v3012 = vpack.c.b16 %v2536, %v2532
          %v3013 = vpack.c.b16 %v2537, %v2533
          %v3014 = vpack.c.b16 %v2538, %v2534
          %v3015 = vpack.c.b16 %v2539, %v2535
          %v3016 = vpack.c.b16 %v2544, %v2540
          %v3017 = vpack.c.b16 %v2545, %v2541
          %v3018 = vpack.c.b16 %v2546, %v2542
          %v3019 = vpack.c.b16 %v2547, %v2543
          %v3020 = vpack.c.b16 %v2552, %v2548
          %v3021 = vpack.c.b16 %v2553, %v2549
          %v3022 = vpack.c.b16 %v2554, %v2550
          %v3023 = vpack.c.b16 %v2555, %v2551
          %v3024 = vpack.c.b16 %v2560, %v2556
          %v3025 = vpack.c.b16 %v2561, %v2557
          %v3026 = vpack.c.b16 %v2562, %v2558
          %v3027 = vpack.c.b16 %v2563, %v2559
          %v3028 = vpack.c.b16 %v2568, %v2564
          %v3029 = vpack.c.b16 %v2569, %v2565
          %v3030 = vpack.c.b16 %v2570, %v2566
          %v3031 = vpack.c.b16 %v2571, %v2567
          %v3032 = vpack.c.b16 %v2576, %v2572
          %v3033 = vpack.c.b16 %v2577, %v2573
          %v3034 = vpack.c.b16 %v2578, %v2574
          %v3035 = vpack.c.b16 %v2579, %v2575
          %v3036 = vpack.c.b16 %v2584, %v2580
          %v3037 = vpack.c.b16 %v2585, %v2581
          %v3038 = vpack.c.b16 %v2586, %v2582
          %v3039 = vpack.c.b16 %v2587, %v2583
          %v3040 = vpack.c.b16 %v2592, %v2588
          %v3041 = vpack.c.b16 %v2593, %v2589
          %v3042 = vpack.c.b16 %v2594, %v2590
          %v3043 = vpack.c.b16 %v2595, %v2591
          %v3044 = vpack.c.b16 %v2600, %v2596
          %v3045 = vpack.c.b16 %v2601, %v2597
          %v3046 = vpack.c.b16 %v2602, %v2598
          %v3047 = vpack.c.b16 %v2603, %v2599
          %v3048 = vpack.c.b16 %v2608, %v2604
          %v3049 = vpack.c.b16 %v2609, %v2605
          %v3050 = vpack.c.b16 %v2610, %v2606
          %v3051 = vpack.c.b16 %v2611, %v2607
          %v3052 = vpack.c.b16 %v2616, %v2612
          %v3053 = vpack.c.b16 %v2617, %v2613
          %v3054 = vpack.c.b16 %v2618, %v2614
          %v3055 = vpack.c.b16 %v2619, %v2615
          %v3056 = vpack.c.b16 %v2624, %v2620
          %v3057 = vpack.c.b16 %v2625, %v2621
          %v3058 = vpack.c.b16 %v2626, %v2622
          %v3059 = vpack.c.b16 %v2627, %v2623
          %v3060 = vpack.c.b16 %v2632, %v2628
          %v3061 = vpack.c.b16 %v2633, %v2629
          %v3062 = vpack.c.b16 %v2634, %v2630
          %v3063 = vpack.c.b16 %v2635, %v2631
          %v3064 = vpack.c.b16 %v2640, %v2636
          %v3065 = vpack.c.b16 %v2641, %v2637
          %v3066 = vpack.c.b16 %v2642, %v2638
          %v3067 = vpack.c.b16 %v2643, %v2639
          %v3068 = vpack.c.b16 %v2648, %v2644
          %v3069 = vpack.c.b16 %v2649, %v2645
          %v3070 = vpack.c.b16 %v2650, %v2646
          %v3071 = vpack.c.b16 %v2651, %v2647
          %v3072 = vpack.c.b16 %v2656, %v2652
          %v3073 = vpack.c.b16 %v2657, %v2653
          %v3074 = vpack.c.b16 %v2658, %v2654
          %v3075 = vpack.c.b16 %v2659, %v2655
          %v3076 = vpack.c.b16 %v2664, %v2660
          %v3077 = vpack.c.b16 %v2665, %v2661
          %v3078 = vpack.c.b16 %v2666, %v2662
          %v3079 = vpack.c.b16 %v2667, %v2663
          %v3080 = vpack.c.b16 %v2672, %v2668
          %v3081 = vpack.c.b16 %v2673, %v2669
          %v3082 = vpack.c.b16 %v2674, %v2670
          %v3083 = vpack.c.b16 %v2675, %v2671
          %v3084 = vpack.c.b16 %v2680, %v2676
          %v3085 = vpack.c.b16 %v2681, %v2677
          %v3086 = vpack.c.b16 %v2682, %v2678
          %v3087 = vpack.c.b16 %v2683, %v2679
          %v3088 = vpack.c.b16 %v2688, %v2684
          %v3089 = vpack.c.b16 %v2689, %v2685
          %v3090 = vpack.c.b16 %v2690, %v2686
          %v3091 = vpack.c.b16 %v2691, %v2687
          %v3092 = vpack.c.b16 %v2696, %v2692
          %v3093 = vpack.c.b16 %v2697, %v2693
          %v3094 = vpack.c.b16 %v2698, %v2694
          %v3095 = vpack.c.b16 %v2699, %v2695
          %v3096 = vpack.c.b16 %v2704, %v2700
          %v3097 = vpack.c.b16 %v2705, %v2701
          %v3098 = vpack.c.b16 %v2706, %v2702
          %v3099 = vpack.c.b16 %v2707, %v2703
          %v3100 = vpack.c.b16 %v2712, %v2708
          %v3101 = vpack.c.b16 %v2713, %v2709
          %v3102 = vpack.c.b16 %v2714, %v2710
          %v3103 = vpack.c.b16 %v2715, %v2711
          %v3104 = vpack.c.b16 %v2720, %v2716
          %v3105 = vpack.c.b16 %v2721, %v2717
          %v3106 = vpack.c.b16 %v2722, %v2718
          %v3107 = vpack.c.b16 %v2723, %v2719
          %v3108 = vpack.c.b16 %v2728, %v2724
          %v3109 = vpack.c.b16 %v2729, %v2725
          %v3110 = vpack.c.b16 %v2730, %v2726
          %v3111 = vpack.c.b16 %v2731, %v2727
          %v3112 = vpack.c.b16 %v2736, %v2732
          %v3113 = vpack.c.b16 %v2737, %v2733
          %v3114 = vpack.c.b16 %v2738, %v2734
          %v3115 = vpack.c.b16 %v2739, %v2735
          %v3116 = vpack.c.b16 %v2744, %v2740
          %v3117 = vpack.c.b16 %v2745, %v2741
          %v3118 = vpack.c.b16 %v2746, %v2742
          %v3119 = vpack.c.b16 %v2747, %v2743
          %v3120 = vpack.c.b16 %v2752, %v2748
          %v3121 = vpack.c.b16 %v2753, %v2749
          %v3122 = vpack.c.b16 %v2754, %v2750
          %v3123 = vpack.c.b16 %v2755, %v2751
          %v3124 = vpack.c.b16 %v2760, %v2756
          %v3125 = vpack.c.b16 %v2761, %v2757
          %v3126 = vpack.c.b16 %v2762, %v2758
          %v3127 = vpack.c.b16 %v2763, %v2759
          %v3128 = vpack.c.b16 %v2768, %v2764
          %v3129 = vpack.c.b16 %v2769, %v2765
          %v3130 = vpack.c.b16 %v2770, %v2766
          %v3131 = vpack.c.b16 %v2771, %v2767
          %v3132 = vpack.c.b16 %v2776, %v2772
          %v3133 = vpack.c.b16 %v2777, %v2773
          %v3134 = vpack.c.b16 %v2778, %v2774
          %v3135 = vpack.c.b16 %v2779, %v2775
          %v3136 = vpack.c.b16 %v2784, %v2780
          %v3137 = vpack.c.b16 %v2785, %v2781
          %v3138 = vpack.c.b16 %v2786, %v2782
          %v3139 = vpack.c.b16 %v2787, %v2783
          %v3140 = vpack.c.b16 %v2792, %v2788
          %v3141 = vpack.c.b16 %v2793, %v2789
          %v3142 = vpack.c.b16 %v2794, %v2790
          %v3143 = vpack.c.b16 %v2795, %v2791
          %v3144 = vpack.c.b16 %v2800, %v2796
          %v3145 = vpack.c.b16 %v2801, %v2797
          %v3146 = vpack.c.b16 %v2802, %v2798
          %v3147 = vpack.c.b16 %v2803, %v2799
          %v3148 = vpack.c.b16 %v2808, %v2804
          %v3149 = vpack.c.b16 %v2809, %v2805
          %v3150 = vpack.c.b16 %v2810, %v2806
          %v3151 = vpack.c.b16 %v2811, %v2807
          %v3152 = vpack.c.b16 %v2816, %v2812
          %v3153 = vpack.c.b16 %v2817, %v2813
          %v3154 = vpack.c.b16 %v2818, %v2814
          %v3155 = vpack.c.b16 %v2819, %v2815
          %v3156 = vpack.c.b16 %v2824, %v2820
          %v3157 = vpack.c.b16 %v2825, %v2821
          %v3158 = vpack.c.b16 %v2826, %v2822
          %v3159 = vpack.c.b16 %v2827, %v2823
          %v3160 = vpack.c.b16 %v2832, %v2828
          %v3161 = vpack.c.b16 %v2833, %v2829
          %v3162 = vpack.c.b16 %v2834, %v2830
          %v3163 = vpack.c.b16 %v2835, %v2831
          %v3164 = vpack.c.b16 %v2840, %v2836
          %v3165 = vpack.c.b16 %v2841, %v2837
          %v3166 = vpack.c.b16 %v2842, %v2838
          %v3167 = vpack.c.b16 %v2843, %v2839
          %v3168 = vpack.c.b16 %v2848, %v2844
          %v3169 = vpack.c.b16 %v2849, %v2845
          %v3170 = vpack.c.b16 %v2850, %v2846
          %v3171 = vpack.c.b16 %v2851, %v2847
          %v3172 = vpack.c.b16 %v2856, %v2852
          %v3173 = vpack.c.b16 %v2857, %v2853
          %v3174 = vpack.c.b16 %v2858, %v2854
          %v3175 = vpack.c.b16 %v2859, %v2855
          %v3176 = vpack.c.b16 %v2864, %v2860
          %v3177 = vpack.c.b16 %v2865, %v2861
          %v3178 = vpack.c.b16 %v2866, %v2862
          %v3179 = vpack.c.b16 %v2867, %v2863
          %v3180 = vpack.c.b16 %v2872, %v2868
          %v3181 = vpack.c.b16 %v2873, %v2869
          %v3182 = vpack.c.b16 %v2874, %v2870
          %v3183 = vpack.c.b16 %v2875, %v2871
          %v3184 = vpack.c.b16 %v2880, %v2876
          %v3185 = vpack.c.b16 %v2881, %v2877
          %v3186 = vpack.c.b16 %v2882, %v2878
          %v3187 = vpack.c.b16 %v2883, %v2879
          %v3188 = vpack.c.b16 %v2888, %v2884
          %v3189 = vpack.c.b16 %v2889, %v2885
          %v3190 = vpack.c.b16 %v2890, %v2886
          %v3191 = vpack.c.b16 %v2891, %v2887
          %v3192 = vpack.c.b16 %v2896, %v2892
          %v3193 = vpack.c.b16 %v2897, %v2893
          %v3194 = vpack.c.b16 %v2898, %v2894
          %v3195 = vpack.c.b16 %v2899, %v2895
          %v3196 = vpack.c.b16 %v2904, %v2900
          %v3197 = vpack.c.b16 %v2905, %v2901
          %v3198 = vpack.c.b16 %v2906, %v2902
          %v3199 = vpack.c.b16 %v2907, %v2903
          %v3200 = vpack.c.b16 %v2912, %v2908
          %v3201 = vpack.c.b16 %v2913, %v2909
          %v3202 = vpack.c.b16 %v2914, %v2910
          %v3203 = vpack.c.b16 %v2915, %v2911
          %v3204 = vpack.c.b16 %v2920, %v2916
          %v3205 = vpack.c.b16 %v2921, %v2917
          %v3206 = vpack.c.b16 %v2922, %v2918
          %v3207 = vpack.c.b16 %v2923, %v2919
          %v3208 = vpack.c.b16 %v2928, %v2924
          %v3209 = vpack.c.b16 %v2929, %v2925
          %v3210 = vpack.c.b16 %v2930, %v2926
          %v3211 = vpack.c.b16 %v2931, %v2927
          %v3212 = vpack.c.b16 %v2936, %v2932
          %v3213 = vpack.c.b16 %v2937, %v2933
          %v3214 = vpack.c.b16 %v2938, %v2934
          %v3215 = vpack.c.b16 %v2939, %v2935
          %v3216 = vpack.c.b16 %v2944, %v2940
          %v3217 = vpack.c.b16 %v2945, %v2941
          %v3218 = vpack.c.b16 %v2946, %v2942
          %v3219 = vpack.c.b16 %v2947, %v2943
          %v3220 = vpack.c.b16 %v2952, %v2948
          %v3221 = vpack.c.b16 %v2953, %v2949
          %v3222 = vpack.c.b16 %v2954, %v2950
          %v3223 = vpack.c.b16 %v2955, %v2951
          %v3224 = vpack.c.b16 %v2960, %v2956
          %v3225 = vpack.c.b16 %v2961, %v2957
          %v3226 = vpack.c.b16 %v2962, %v2958
          %v3227 = vpack.c.b16 %v2963, %v2959
          %v3228 = vpack.c.b16 %v2968, %v2964
          %v3229 = vpack.c.b16 %v2969, %v2965
          %v3230 = vpack.c.b16 %v2970, %v2966
          %v3231 = vpack.c.b16 %v2971, %v2967
          %v3232 = vpack.c.b16 %v2976, %v2972
          %v3233 = vpack.c.b16 %v2977, %v2973
          %v3234 = vpack.c.b16 %v2978, %v2974
          %v3235 = vpack.c.b16 %v2979, %v2975
          %v3493 = vperm.slane %v2211, 0
          %v3494 = vperm.slane %v2211, 1
          %v3495 = vperm.slane %v2211, 2
          %v3496 = vperm.slane %v2211, 3
          %3501 = vmatpush.bf16.msra.mxu0 %v3008
          %3502 = vmatpush.bf16.msra.mxu0 %v3004
          %3503 = vmatpush.bf16.msra.mxu0 %v3000
          %3504 = vmatpush.bf16.msra.mxu0 %v2996
          %3505 = vmatpush.bf16.msra.mxu0 %v2992
          %3506 = vmatpush.bf16.msra.mxu0 %v2988
          %3507 = vmatpush.bf16.msra.mxu0 %v2984
          %3508 = vmatpush.bf16.msra.mxu0 %v2980
          %3509 = vmatmul.bf16.gmra.mxu0 %v1947
          %v3510 = vpop.f32.mrf.mxu0
          %v3511 = vadd.f32 %v3493, %v3510
          %v3512 = vpop.f32.mrf.mxu0
          %3513 = vdwg.mxu0
          %3514 = vmatpush.bf16.msra.mxu0 %v3040
          %3515 = vmatpush.bf16.msra.mxu0 %v3036
          %3516 = vmatpush.bf16.msra.mxu0 %v3032
          %3517 = vmatpush.bf16.msra.mxu0 %v3028
          %3518 = vmatpush.bf16.msra.mxu0 %v3024
          %3519 = vmatpush.bf16.msra.mxu0 %v3020
          %3520 = vmatpush.bf16.msra.mxu0 %v3016
          %3521 = vmatpush.bf16.msra.mxu0 %v3012
          %3522 = vmatmul.bf16.gmra.mxu0 %v1948
          %v3523 = vpop.f32.mrf.mxu0
          %v3524 = vadd.f32 %v3511, %v3523
          %v3525 = vpop.f32.mrf.mxu0
          %3526 = vdwg.mxu0
          %3527 = vmatpush.bf16.msra.mxu0 %v3072
          %3528 = vmatpush.bf16.msra.mxu0 %v3068
          %3529 = vmatpush.bf16.msra.mxu0 %v3064
          %3530 = vmatpush.bf16.msra.mxu0 %v3060
          %3531 = vmatpush.bf16.msra.mxu0 %v3056
          %3532 = vmatpush.bf16.msra.mxu0 %v3052
          %3533 = vmatpush.bf16.msra.mxu0 %v3048
          %3534 = vmatpush.bf16.msra.mxu0 %v3044
          %3535 = vmatmul.bf16.gmra.mxu0 %v1949
          %v3536 = vpop.f32.mrf.mxu0
          %v3537 = vadd.f32 %v3524, %v3536
          %v3538 = vpop.f32.mrf.mxu0
          %3539 = vdwg.mxu0
          %3540 = vmatpush.bf16.msra.mxu0 %v3104
          %3541 = vmatpush.bf16.msra.mxu0 %v3100
          %3542 = vmatpush.bf16.msra.mxu0 %v3096
          %3543 = vmatpush.bf16.msra.mxu0 %v3092
          %3544 = vmatpush.bf16.msra.mxu0 %v3088
          %3545 = vmatpush.bf16.msra.mxu0 %v3084
          %3546 = vmatpush.bf16.msra.mxu0 %v3080
          %3547 = vmatpush.bf16.msra.mxu0 %v3076
          %3548 = vmatmul.bf16.gmra.mxu0 %v1950
          %v3549 = vpop.f32.mrf.mxu0
          %v3550 = vadd.f32 %v3537, %v3549
          %v3551 = vpop.f32.mrf.mxu0
          %3552 = vdwg.mxu0
          %3553 = vmatpush.bf16.msra.mxu0 %v3136
          %3554 = vmatpush.bf16.msra.mxu0 %v3132
          %3555 = vmatpush.bf16.msra.mxu0 %v3128
          %3556 = vmatpush.bf16.msra.mxu0 %v3124
          %3557 = vmatpush.bf16.msra.mxu0 %v3120
          %3558 = vmatpush.bf16.msra.mxu0 %v3116
          %3559 = vmatpush.bf16.msra.mxu0 %v3112
          %3560 = vmatpush.bf16.msra.mxu0 %v3108
          %3561 = vmatmul.bf16.gmra.mxu0 %v1951
          %v3562 = vpop.f32.mrf.mxu0
          %v3563 = vadd.f32 %v3550, %v3562
          %v3564 = vpop.f32.mrf.mxu0
          %3565 = vdwg.mxu0
          %3566 = vmatpush.bf16.msra.mxu0 %v3168
          %3567 = vmatpush.bf16.msra.mxu0 %v3164
          %3568 = vmatpush.bf16.msra.mxu0 %v3160
          %3569 = vmatpush.bf16.msra.mxu0 %v3156
          %3570 = vmatpush.bf16.msra.mxu0 %v3152
          %3571 = vmatpush.bf16.msra.mxu0 %v3148
          %3572 = vmatpush.bf16.msra.mxu0 %v3144
          %3573 = vmatpush.bf16.msra.mxu0 %v3140
          %3574 = vmatmul.bf16.gmra.mxu0 %v1952
          %v3575 = vpop.f32.mrf.mxu0
          %v3576 = vadd.f32 %v3563, %v3575
          %v3577 = vpop.f32.mrf.mxu0
          %3578 = vdwg.mxu0
          %3579 = vmatpush.bf16.msra.mxu0 %v3200
          %3580 = vmatpush.bf16.msra.mxu0 %v3196
          %3581 = vmatpush.bf16.msra.mxu0 %v3192
          %3582 = vmatpush.bf16.msra.mxu0 %v3188
          %3583 = vmatpush.bf16.msra.mxu0 %v3184
          %3584 = vmatpush.bf16.msra.mxu0 %v3180
          %3585 = vmatpush.bf16.msra.mxu0 %v3176
          %3586 = vmatpush.bf16.msra.mxu0 %v3172
          %3587 = vmatmul.bf16.gmra.mxu0 %v1953
          %v3588 = vpop.f32.mrf.mxu0
          %v3589 = vadd.f32 %v3576, %v3588
          %v3590 = vpop.f32.mrf.mxu0
          %3591 = vdwg.mxu0
          %3592 = vmatpush.bf16.msra.mxu0 %v3232
          %3593 = vmatpush.bf16.msra.mxu0 %v3228
          %3594 = vmatpush.bf16.msra.mxu0 %v3224
          %3595 = vmatpush.bf16.msra.mxu0 %v3220
          %3596 = vmatpush.bf16.msra.mxu0 %v3216
          %3597 = vmatpush.bf16.msra.mxu0 %v3212
          %3598 = vmatpush.bf16.msra.mxu0 %v3208
          %3599 = vmatpush.bf16.msra.mxu0 %v3204
          %3600 = vmatmul.bf16.gmra.mxu0 %v1954
          %v3601 = vpop.f32.mrf.mxu0
          %v3602 = vadd.f32 %v3589, %v3601
          %v3603 = vpop.f32.mrf.mxu0
          %3604 = vdwg.mxu0
          %3605 = vmatpush.bf16.msra.mxu0 %v3009
          %3606 = vmatpush.bf16.msra.mxu0 %v3005
          %3607 = vmatpush.bf16.msra.mxu0 %v3001
          %3608 = vmatpush.bf16.msra.mxu0 %v2997
          %3609 = vmatpush.bf16.msra.mxu0 %v2993
          %3610 = vmatpush.bf16.msra.mxu0 %v2989
          %3611 = vmatpush.bf16.msra.mxu0 %v2985
          %3612 = vmatpush.bf16.msra.mxu0 %v2981
          %3613 = vmatmul.bf16.gmra.mxu0 %v1947
          %v3614 = vpop.f32.mrf.mxu0
          %v3615 = vadd.f32 %v3494, %v3614
          %v3616 = vpop.f32.mrf.mxu0
          %3617 = vdwg.mxu0
          %3618 = vmatpush.bf16.msra.mxu0 %v3041
          %3619 = vmatpush.bf16.msra.mxu0 %v3037
          %3620 = vmatpush.bf16.msra.mxu0 %v3033
          %3621 = vmatpush.bf16.msra.mxu0 %v3029
          %3622 = vmatpush.bf16.msra.mxu0 %v3025
          %3623 = vmatpush.bf16.msra.mxu0 %v3021
          %3624 = vmatpush.bf16.msra.mxu0 %v3017
          %3625 = vmatpush.bf16.msra.mxu0 %v3013
          %3626 = vmatmul.bf16.gmra.mxu0 %v1948
          %v3627 = vpop.f32.mrf.mxu0
          %v3628 = vadd.f32 %v3615, %v3627
          %v3629 = vpop.f32.mrf.mxu0
          %3630 = vdwg.mxu0
          %3631 = vmatpush.bf16.msra.mxu0 %v3073
          %3632 = vmatpush.bf16.msra.mxu0 %v3069
          %3633 = vmatpush.bf16.msra.mxu0 %v3065
          %3634 = vmatpush.bf16.msra.mxu0 %v3061
          %3635 = vmatpush.bf16.msra.mxu0 %v3057
          %3636 = vmatpush.bf16.msra.mxu0 %v3053
          %3637 = vmatpush.bf16.msra.mxu0 %v3049
          %3638 = vmatpush.bf16.msra.mxu0 %v3045
          %3639 = vmatmul.bf16.gmra.mxu0 %v1949
          %v3640 = vpop.f32.mrf.mxu0
          %v3641 = vadd.f32 %v3628, %v3640
          %v3642 = vpop.f32.mrf.mxu0
          %3643 = vdwg.mxu0
          %3644 = vmatpush.bf16.msra.mxu0 %v3105
          %3645 = vmatpush.bf16.msra.mxu0 %v3101
          %3646 = vmatpush.bf16.msra.mxu0 %v3097
          %3647 = vmatpush.bf16.msra.mxu0 %v3093
          %3648 = vmatpush.bf16.msra.mxu0 %v3089
          %3649 = vmatpush.bf16.msra.mxu0 %v3085
          %3650 = vmatpush.bf16.msra.mxu0 %v3081
          %3651 = vmatpush.bf16.msra.mxu0 %v3077
          %3652 = vmatmul.bf16.gmra.mxu0 %v1950
          %v3653 = vpop.f32.mrf.mxu0
          %v3654 = vadd.f32 %v3641, %v3653
          %v3655 = vpop.f32.mrf.mxu0
          %3656 = vdwg.mxu0
          %3657 = vmatpush.bf16.msra.mxu0 %v3137
          %3658 = vmatpush.bf16.msra.mxu0 %v3133
          %3659 = vmatpush.bf16.msra.mxu0 %v3129
          %3660 = vmatpush.bf16.msra.mxu0 %v3125
          %3661 = vmatpush.bf16.msra.mxu0 %v3121
          %3662 = vmatpush.bf16.msra.mxu0 %v3117
          %3663 = vmatpush.bf16.msra.mxu0 %v3113
          %3664 = vmatpush.bf16.msra.mxu0 %v3109
          %3665 = vmatmul.bf16.gmra.mxu0 %v1951
          %v3666 = vpop.f32.mrf.mxu0
          %v3667 = vadd.f32 %v3654, %v3666
          %v3668 = vpop.f32.mrf.mxu0
          %3669 = vdwg.mxu0
          %3670 = vmatpush.bf16.msra.mxu0 %v3169
          %3671 = vmatpush.bf16.msra.mxu0 %v3165
          %3672 = vmatpush.bf16.msra.mxu0 %v3161
          %3673 = vmatpush.bf16.msra.mxu0 %v3157
          %3674 = vmatpush.bf16.msra.mxu0 %v3153
          %3675 = vmatpush.bf16.msra.mxu0 %v3149
          %3676 = vmatpush.bf16.msra.mxu0 %v3145
          %3677 = vmatpush.bf16.msra.mxu0 %v3141
          %3678 = vmatmul.bf16.gmra.mxu0 %v1952
          %v3679 = vpop.f32.mrf.mxu0
          %v3680 = vadd.f32 %v3667, %v3679
          %v3681 = vpop.f32.mrf.mxu0
          %3682 = vdwg.mxu0
          %3683 = vmatpush.bf16.msra.mxu0 %v3201
          %3684 = vmatpush.bf16.msra.mxu0 %v3197
          %3685 = vmatpush.bf16.msra.mxu0 %v3193
          %3686 = vmatpush.bf16.msra.mxu0 %v3189
          %3687 = vmatpush.bf16.msra.mxu0 %v3185
          %3688 = vmatpush.bf16.msra.mxu0 %v3181
          %3689 = vmatpush.bf16.msra.mxu0 %v3177
          %3690 = vmatpush.bf16.msra.mxu0 %v3173
          %3691 = vmatmul.bf16.gmra.mxu0 %v1953
          %v3692 = vpop.f32.mrf.mxu0
          %v3693 = vadd.f32 %v3680, %v3692
          %v3694 = vpop.f32.mrf.mxu0
          %3695 = vdwg.mxu0
          %3696 = vmatpush.bf16.msra.mxu0 %v3233
          %3697 = vmatpush.bf16.msra.mxu0 %v3229
          %3698 = vmatpush.bf16.msra.mxu0 %v3225
          %3699 = vmatpush.bf16.msra.mxu0 %v3221
          %3700 = vmatpush.bf16.msra.mxu0 %v3217
          %3701 = vmatpush.bf16.msra.mxu0 %v3213
          %3702 = vmatpush.bf16.msra.mxu0 %v3209
          %3703 = vmatpush.bf16.msra.mxu0 %v3205
          %3704 = vmatmul.bf16.gmra.mxu0 %v1954
          %v3705 = vpop.f32.mrf.mxu0
          %v3706 = vadd.f32 %v3693, %v3705
          %v3707 = vpop.f32.mrf.mxu0
          %3708 = vdwg.mxu0
          %3709 = vmatpush.bf16.msra.mxu0 %v3010
          %3710 = vmatpush.bf16.msra.mxu0 %v3006
          %3711 = vmatpush.bf16.msra.mxu0 %v3002
          %3712 = vmatpush.bf16.msra.mxu0 %v2998
          %3713 = vmatpush.bf16.msra.mxu0 %v2994
          %3714 = vmatpush.bf16.msra.mxu0 %v2990
          %3715 = vmatpush.bf16.msra.mxu0 %v2986
          %3716 = vmatpush.bf16.msra.mxu0 %v2982
          %3717 = vmatmul.bf16.gmra.mxu0 %v1947
          %v3718 = vpop.f32.mrf.mxu0
          %v3719 = vadd.f32 %v3495, %v3718
          %v3720 = vpop.f32.mrf.mxu0
          %3721 = vdwg.mxu0
          %3722 = vmatpush.bf16.msra.mxu0 %v3042
          %3723 = vmatpush.bf16.msra.mxu0 %v3038
          %3724 = vmatpush.bf16.msra.mxu0 %v3034
          %3725 = vmatpush.bf16.msra.mxu0 %v3030
          %3726 = vmatpush.bf16.msra.mxu0 %v3026
          %3727 = vmatpush.bf16.msra.mxu0 %v3022
          %3728 = vmatpush.bf16.msra.mxu0 %v3018
          %3729 = vmatpush.bf16.msra.mxu0 %v3014
          %3730 = vmatmul.bf16.gmra.mxu0 %v1948
          %v3731 = vpop.f32.mrf.mxu0
          %v3732 = vadd.f32 %v3719, %v3731
          %v3733 = vpop.f32.mrf.mxu0
          %3734 = vdwg.mxu0
          %3735 = vmatpush.bf16.msra.mxu0 %v3074
          %3736 = vmatpush.bf16.msra.mxu0 %v3070
          %3737 = vmatpush.bf16.msra.mxu0 %v3066
          %3738 = vmatpush.bf16.msra.mxu0 %v3062
          %3739 = vmatpush.bf16.msra.mxu0 %v3058
          %3740 = vmatpush.bf16.msra.mxu0 %v3054
          %3741 = vmatpush.bf16.msra.mxu0 %v3050
          %3742 = vmatpush.bf16.msra.mxu0 %v3046
          %3743 = vmatmul.bf16.gmra.mxu0 %v1949
          %v3744 = vpop.f32.mrf.mxu0
          %v3745 = vadd.f32 %v3732, %v3744
          %v3746 = vpop.f32.mrf.mxu0
          %3747 = vdwg.mxu0
          %3748 = vmatpush.bf16.msra.mxu0 %v3106
          %3749 = vmatpush.bf16.msra.mxu0 %v3102
          %3750 = vmatpush.bf16.msra.mxu0 %v3098
          %3751 = vmatpush.bf16.msra.mxu0 %v3094
          %3752 = vmatpush.bf16.msra.mxu0 %v3090
          %3753 = vmatpush.bf16.msra.mxu0 %v3086
          %3754 = vmatpush.bf16.msra.mxu0 %v3082
          %3755 = vmatpush.bf16.msra.mxu0 %v3078
          %3756 = vmatmul.bf16.gmra.mxu0 %v1950
          %v3757 = vpop.f32.mrf.mxu0
          %v3758 = vadd.f32 %v3745, %v3757
          %v3759 = vpop.f32.mrf.mxu0
          %3760 = vdwg.mxu0
          %3761 = vmatpush.bf16.msra.mxu0 %v3138
          %3762 = vmatpush.bf16.msra.mxu0 %v3134
          %3763 = vmatpush.bf16.msra.mxu0 %v3130
          %3764 = vmatpush.bf16.msra.mxu0 %v3126
          %3765 = vmatpush.bf16.msra.mxu0 %v3122
          %3766 = vmatpush.bf16.msra.mxu0 %v3118
          %3767 = vmatpush.bf16.msra.mxu0 %v3114
          %3768 = vmatpush.bf16.msra.mxu0 %v3110
          %3769 = vmatmul.bf16.gmra.mxu0 %v1951
          %v3770 = vpop.f32.mrf.mxu0
          %v3771 = vadd.f32 %v3758, %v3770
          %v3772 = vpop.f32.mrf.mxu0
          %3773 = vdwg.mxu0
          %3774 = vmatpush.bf16.msra.mxu0 %v3170
          %3775 = vmatpush.bf16.msra.mxu0 %v3166
          %3776 = vmatpush.bf16.msra.mxu0 %v3162
          %3777 = vmatpush.bf16.msra.mxu0 %v3158
          %3778 = vmatpush.bf16.msra.mxu0 %v3154
          %3779 = vmatpush.bf16.msra.mxu0 %v3150
          %3780 = vmatpush.bf16.msra.mxu0 %v3146
          %3781 = vmatpush.bf16.msra.mxu0 %v3142
          %3782 = vmatmul.bf16.gmra.mxu0 %v1952
          %v3783 = vpop.f32.mrf.mxu0
          %v3784 = vadd.f32 %v3771, %v3783
          %v3785 = vpop.f32.mrf.mxu0
          %3786 = vdwg.mxu0
          %3787 = vmatpush.bf16.msra.mxu0 %v3202
          %3788 = vmatpush.bf16.msra.mxu0 %v3198
          %3789 = vmatpush.bf16.msra.mxu0 %v3194
          %3790 = vmatpush.bf16.msra.mxu0 %v3190
          %3791 = vmatpush.bf16.msra.mxu0 %v3186
          %3792 = vmatpush.bf16.msra.mxu0 %v3182
          %3793 = vmatpush.bf16.msra.mxu0 %v3178
          %3794 = vmatpush.bf16.msra.mxu0 %v3174
          %3795 = vmatmul.bf16.gmra.mxu0 %v1953
          %v3796 = vpop.f32.mrf.mxu0
          %v3797 = vadd.f32 %v3784, %v3796
          %v3798 = vpop.f32.mrf.mxu0
          %3799 = vdwg.mxu0
          %3800 = vmatpush.bf16.msra.mxu0 %v3234
          %3801 = vmatpush.bf16.msra.mxu0 %v3230
          %3802 = vmatpush.bf16.msra.mxu0 %v3226
          %3803 = vmatpush.bf16.msra.mxu0 %v3222
          %3804 = vmatpush.bf16.msra.mxu0 %v3218
          %3805 = vmatpush.bf16.msra.mxu0 %v3214
          %3806 = vmatpush.bf16.msra.mxu0 %v3210
          %3807 = vmatpush.bf16.msra.mxu0 %v3206
          %3808 = vmatmul.bf16.gmra.mxu0 %v1954
          %v3809 = vpop.f32.mrf.mxu0
          %v3810 = vadd.f32 %v3797, %v3809
          %v3811 = vpop.f32.mrf.mxu0
          %3812 = vdwg.mxu0
          %3813 = vmatpush.bf16.msra.mxu0 %v3011
          %3814 = vmatpush.bf16.msra.mxu0 %v3007
          %3815 = vmatpush.bf16.msra.mxu0 %v3003
          %3816 = vmatpush.bf16.msra.mxu0 %v2999
          %3817 = vmatpush.bf16.msra.mxu0 %v2995
          %3818 = vmatpush.bf16.msra.mxu0 %v2991
          %3819 = vmatpush.bf16.msra.mxu0 %v2987
          %3820 = vmatpush.bf16.msra.mxu0 %v2983
          %3821 = vmatmul.bf16.gmra.mxu0 %v1947
          %v3822 = vpop.f32.mrf.mxu0
          %v3823 = vadd.f32 %v3496, %v3822
          %v3824 = vpop.f32.mrf.mxu0
          %3825 = vdwg.mxu0
          %3826 = vmatpush.bf16.msra.mxu0 %v3043
          %3827 = vmatpush.bf16.msra.mxu0 %v3039
          %3828 = vmatpush.bf16.msra.mxu0 %v3035
          %3829 = vmatpush.bf16.msra.mxu0 %v3031
          %3830 = vmatpush.bf16.msra.mxu0 %v3027
          %3831 = vmatpush.bf16.msra.mxu0 %v3023
          %3832 = vmatpush.bf16.msra.mxu0 %v3019
          %3833 = vmatpush.bf16.msra.mxu0 %v3015
          %3834 = vmatmul.bf16.gmra.mxu0 %v1948
          %v3835 = vpop.f32.mrf.mxu0
          %v3836 = vadd.f32 %v3823, %v3835
          %v3837 = vpop.f32.mrf.mxu0
          %3838 = vdwg.mxu0
          %3839 = vmatpush.bf16.msra.mxu0 %v3075
          %3840 = vmatpush.bf16.msra.mxu0 %v3071
          %3841 = vmatpush.bf16.msra.mxu0 %v3067
          %3842 = vmatpush.bf16.msra.mxu0 %v3063
          %3843 = vmatpush.bf16.msra.mxu0 %v3059
          %3844 = vmatpush.bf16.msra.mxu0 %v3055
          %3845 = vmatpush.bf16.msra.mxu0 %v3051
          %3846 = vmatpush.bf16.msra.mxu0 %v3047
          %3847 = vmatmul.bf16.gmra.mxu0 %v1949
          %v3848 = vpop.f32.mrf.mxu0
          %v3849 = vadd.f32 %v3836, %v3848
          %v3850 = vpop.f32.mrf.mxu0
          %3851 = vdwg.mxu0
          %3852 = vmatpush.bf16.msra.mxu0 %v3107
          %3853 = vmatpush.bf16.msra.mxu0 %v3103
          %3854 = vmatpush.bf16.msra.mxu0 %v3099
          %3855 = vmatpush.bf16.msra.mxu0 %v3095
          %3856 = vmatpush.bf16.msra.mxu0 %v3091
          %3857 = vmatpush.bf16.msra.mxu0 %v3087
          %3858 = vmatpush.bf16.msra.mxu0 %v3083
          %3859 = vmatpush.bf16.msra.mxu0 %v3079
          %3860 = vmatmul.bf16.gmra.mxu0 %v1950
          %v3861 = vpop.f32.mrf.mxu0
          %v3862 = vadd.f32 %v3849, %v3861
          %v3863 = vpop.f32.mrf.mxu0
          %3864 = vdwg.mxu0
          %3865 = vmatpush.bf16.msra.mxu0 %v3139
          %3866 = vmatpush.bf16.msra.mxu0 %v3135
          %3867 = vmatpush.bf16.msra.mxu0 %v3131
          %3868 = vmatpush.bf16.msra.mxu0 %v3127
          %3869 = vmatpush.bf16.msra.mxu0 %v3123
          %3870 = vmatpush.bf16.msra.mxu0 %v3119
          %3871 = vmatpush.bf16.msra.mxu0 %v3115
          %3872 = vmatpush.bf16.msra.mxu0 %v3111
          %3873 = vmatmul.bf16.gmra.mxu0 %v1951
          %v3874 = vpop.f32.mrf.mxu0
          %v3875 = vadd.f32 %v3862, %v3874
          %v3876 = vpop.f32.mrf.mxu0
          %3877 = vdwg.mxu0
          %3878 = vmatpush.bf16.msra.mxu0 %v3171
          %3879 = vmatpush.bf16.msra.mxu0 %v3167
          %3880 = vmatpush.bf16.msra.mxu0 %v3163
          %3881 = vmatpush.bf16.msra.mxu0 %v3159
          %3882 = vmatpush.bf16.msra.mxu0 %v3155
          %3883 = vmatpush.bf16.msra.mxu0 %v3151
          %3884 = vmatpush.bf16.msra.mxu0 %v3147
          %3885 = vmatpush.bf16.msra.mxu0 %v3143
          %3886 = vmatmul.bf16.gmra.mxu0 %v1952
          %v3887 = vpop.f32.mrf.mxu0
          %v3888 = vadd.f32 %v3875, %v3887
          %v3889 = vpop.f32.mrf.mxu0
          %3890 = vdwg.mxu0
          %3891 = vmatpush.bf16.msra.mxu0 %v3203
          %3892 = vmatpush.bf16.msra.mxu0 %v3199
          %3893 = vmatpush.bf16.msra.mxu0 %v3195
          %3894 = vmatpush.bf16.msra.mxu0 %v3191
          %3895 = vmatpush.bf16.msra.mxu0 %v3187
          %3896 = vmatpush.bf16.msra.mxu0 %v3183
          %3897 = vmatpush.bf16.msra.mxu0 %v3179
          %3898 = vmatpush.bf16.msra.mxu0 %v3175
          %3899 = vmatmul.bf16.gmra.mxu0 %v1953
          %v3900 = vpop.f32.mrf.mxu0
          %v3901 = vadd.f32 %v3888, %v3900
          %v3902 = vpop.f32.mrf.mxu0
          %3903 = vdwg.mxu0
          %3904 = vmatpush.bf16.msra.mxu0 %v3235
          %3905 = vmatpush.bf16.msra.mxu0 %v3231
          %3906 = vmatpush.bf16.msra.mxu0 %v3227
          %3907 = vmatpush.bf16.msra.mxu0 %v3223
          %3908 = vmatpush.bf16.msra.mxu0 %v3219
          %3909 = vmatpush.bf16.msra.mxu0 %v3215
          %3910 = vmatpush.bf16.msra.mxu0 %v3211
          %3911 = vmatpush.bf16.msra.mxu0 %v3207
          %3912 = vmatmul.bf16.gmra.mxu0 %v1954
          %v3913 = vpop.f32.mrf.mxu0
          %v3914 = vadd.f32 %v3901, %v3913
          %v3915 = vpop.f32.mrf.mxu0
          %3916 = vdwg.mxu0
          %v3917 = vmax.f32 %v3602, 0.0
          %v3918 = vmax.f32 %v3706, 0.0
          %v3919 = vmax.f32 %v3810, 0.0
          %v3920 = vmax.f32 %v3914, 0.0
          %v3921 = vpack.c.bf16 %v3917, %v3917
          %v3922 = vpack.c.bf16 %v3918, %v3918
          %v3923 = vpack.c.bf16 %v3919, %v3919
          %v3924 = vpack.c.bf16 %v3920, %v3920
          %v3925 = vld [vmem:[#allocation17] sm:$0xff]
          %v3926 = vld [vmem:[#allocation17 + $0x8] sm:$0xff]
          %v3927 = vld [vmem:[#allocation17 + $0x10] sm:$0xff]
          %v3928 = vld [vmem:[#allocation17 + $0x18] sm:$0xff]
          %v3929 = vld [vmem:[#allocation17 + $0x20] sm:$0xff]
          %v3930 = vld [vmem:[#allocation17 + $0x28] sm:$0xff]
          %v3931 = vld [vmem:[#allocation17 + $0x30] sm:$0xff]
          %v3932 = vld [vmem:[#allocation17 + $0x38] sm:$0xff]
          %v3933 = vld [vmem:[#allocation17 + $0x40] sm:$0xff]
          %v3934 = vld [vmem:[#allocation17 + $0x48] sm:$0xff]
          %v3935 = vld [vmem:[#allocation17 + $0x50] sm:$0xff]
          %v3936 = vld [vmem:[#allocation17 + $0x58] sm:$0xff]
          %v3937 = vld [vmem:[#allocation17 + $0x60] sm:$0xff]
          %v3938 = vld [vmem:[#allocation17 + $0x68] sm:$0xff]
          %v3939 = vld [vmem:[#allocation17 + $0x70] sm:$0xff]
          %v3940 = vld [vmem:[#allocation17 + $0x78] sm:$0xff]
          %v3941 = vld [vmem:[#allocation17 + $0x80] sm:$0xff]
          %v3942 = vld [vmem:[#allocation17 + $0x88] sm:$0xff]
          %v3943 = vld [vmem:[#allocation17 + $0x90] sm:$0xff]
          %v3944 = vld [vmem:[#allocation17 + $0x98] sm:$0xff]
          %v3945 = vld [vmem:[#allocation17 + $0xa0] sm:$0xff]
          %v3946 = vld [vmem:[#allocation17 + $0xa8] sm:$0xff]
          %v3947 = vld [vmem:[#allocation17 + $0xb0] sm:$0xff]
          %v3948 = vld [vmem:[#allocation17 + $0xb8] sm:$0xff]
          %v3949 = vld [vmem:[#allocation17 + $0xc0] sm:$0xff]
          %v3950 = vld [vmem:[#allocation17 + $0xc8] sm:$0xff]
          %v3951 = vld [vmem:[#allocation17 + $0xd0] sm:$0xff]
          %v3952 = vld [vmem:[#allocation17 + $0xd8] sm:$0xff]
          %v3953 = vld [vmem:[#allocation17 + $0xe0] sm:$0xff]
          %v3954 = vld [vmem:[#allocation17 + $0xe8] sm:$0xff]
          %v3955 = vld [vmem:[#allocation17 + $0xf0] sm:$0xff]
          %v3956 = vld [vmem:[#allocation17 + $0xf8] sm:$0xff]
          %v3957 = vld [vmem:[#allocation17 + $0x100] sm:$0xff]
          %v3958 = vld [vmem:[#allocation17 + $0x108] sm:$0xff]
          %v3959 = vld [vmem:[#allocation17 + $0x110] sm:$0xff]
          %v3960 = vld [vmem:[#allocation17 + $0x118] sm:$0xff]
          %v3961 = vld [vmem:[#allocation17 + $0x120] sm:$0xff]
          %v3962 = vld [vmem:[#allocation17 + $0x128] sm:$0xff]
          %v3963 = vld [vmem:[#allocation17 + $0x130] sm:$0xff]
          %v3964 = vld [vmem:[#allocation17 + $0x138] sm:$0xff]
          %v3965 = vld [vmem:[#allocation17 + $0x140] sm:$0xff]
          %v3966 = vld [vmem:[#allocation17 + $0x148] sm:$0xff]
          %v3967 = vld [vmem:[#allocation17 + $0x150] sm:$0xff]
          %v3968 = vld [vmem:[#allocation17 + $0x158] sm:$0xff]
          %v3969 = vld [vmem:[#allocation17 + $0x160] sm:$0xff]
          %v3970 = vld [vmem:[#allocation17 + $0x168] sm:$0xff]
          %v3971 = vld [vmem:[#allocation17 + $0x170] sm:$0xff]
          %v3972 = vld [vmem:[#allocation17 + $0x178] sm:$0xff]
          %v3973 = vld [vmem:[#allocation17 + $0x180] sm:$0xff]
          %v3974 = vld [vmem:[#allocation17 + $0x188] sm:$0xff]
          %v3975 = vld [vmem:[#allocation17 + $0x190] sm:$0xff]
          %v3976 = vld [vmem:[#allocation17 + $0x198] sm:$0xff]
          %v3977 = vld [vmem:[#allocation17 + $0x1a0] sm:$0xff]
          %v3978 = vld [vmem:[#allocation17 + $0x1a8] sm:$0xff]
          %v3979 = vld [vmem:[#allocation17 + $0x1b0] sm:$0xff]
          %v3980 = vld [vmem:[#allocation17 + $0x1b8] sm:$0xff]
          %v3981 = vld [vmem:[#allocation17 + $0x1c0] sm:$0xff]
          %v3982 = vld [vmem:[#allocation17 + $0x1c8] sm:$0xff]
          %v3983 = vld [vmem:[#allocation17 + $0x1d0] sm:$0xff]
          %v3984 = vld [vmem:[#allocation17 + $0x1d8] sm:$0xff]
          %v3985 = vld [vmem:[#allocation17 + $0x1e0] sm:$0xff]
          %v3986 = vld [vmem:[#allocation17 + $0x1e8] sm:$0xff]
          %v3987 = vld [vmem:[#allocation17 + $0x1f0] sm:$0xff]
          %v3988 = vld [vmem:[#allocation17 + $0x1f8] sm:$0xff]
          %v3989 = vld [vmem:[%s10] sm:$0x3]
          %v4054 = vunpack.c.l.b16 %v3925
          %v4055 = vunpack.c.h.b16 %v3925
          %v4056 = vunpack.c.l.b16 %v3926
          %v4057 = vunpack.c.h.b16 %v3926
          %v4058 = vunpack.c.l.b16 %v3927
          %v4059 = vunpack.c.h.b16 %v3927
          %v4060 = vunpack.c.l.b16 %v3928
          %v4061 = vunpack.c.h.b16 %v3928
          %v4062 = vunpack.c.l.b16 %v3929
          %v4063 = vunpack.c.h.b16 %v3929
          %v4064 = vunpack.c.l.b16 %v3930
          %v4065 = vunpack.c.h.b16 %v3930
          %v4066 = vunpack.c.l.b16 %v3931
          %v4067 = vunpack.c.h.b16 %v3931
          %v4068 = vunpack.c.l.b16 %v3932
          %v4069 = vunpack.c.h.b16 %v3932
          %v4070 = vunpack.c.l.b16 %v3933
          %v4071 = vunpack.c.h.b16 %v3933
          %v4072 = vunpack.c.l.b16 %v3934
          %v4073 = vunpack.c.h.b16 %v3934
          %v4074 = vunpack.c.l.b16 %v3935
          %v4075 = vunpack.c.h.b16 %v3935
          %v4076 = vunpack.c.l.b16 %v3936
          %v4077 = vunpack.c.h.b16 %v3936
          %v4078 = vunpack.c.l.b16 %v3937
          %v4079 = vunpack.c.h.b16 %v3937
          %v4080 = vunpack.c.l.b16 %v3938
          %v4081 = vunpack.c.h.b16 %v3938
          %v4082 = vunpack.c.l.b16 %v3939
          %v4083 = vunpack.c.h.b16 %v3939
          %v4084 = vunpack.c.l.b16 %v3940
          %v4085 = vunpack.c.h.b16 %v3940
          %v4086 = vunpack.c.l.b16 %v3941
          %v4087 = vunpack.c.h.b16 %v3941
          %v4088 = vunpack.c.l.b16 %v3942
          %v4089 = vunpack.c.h.b16 %v3942
          %v4090 = vunpack.c.l.b16 %v3943
          %v4091 = vunpack.c.h.b16 %v3943
          %v4092 = vunpack.c.l.b16 %v3944
          %v4093 = vunpack.c.h.b16 %v3944
          %v4094 = vunpack.c.l.b16 %v3945
          %v4095 = vunpack.c.h.b16 %v3945
          %v4096 = vunpack.c.l.b16 %v3946
          %v4097 = vunpack.c.h.b16 %v3946
          %v4098 = vunpack.c.l.b16 %v3947
          %v4099 = vunpack.c.h.b16 %v3947
          %v4100 = vunpack.c.l.b16 %v3948
          %v4101 = vunpack.c.h.b16 %v3948
          %v4102 = vunpack.c.l.b16 %v3949
          %v4103 = vunpack.c.h.b16 %v3949
          %v4104 = vunpack.c.l.b16 %v3950
          %v4105 = vunpack.c.h.b16 %v3950
          %v4106 = vunpack.c.l.b16 %v3951
          %v4107 = vunpack.c.h.b16 %v3951
          %v4108 = vunpack.c.l.b16 %v3952
          %v4109 = vunpack.c.h.b16 %v3952
          %v4110 = vunpack.c.l.b16 %v3953
          %v4111 = vunpack.c.h.b16 %v3953
          %v4112 = vunpack.c.l.b16 %v3954
          %v4113 = vunpack.c.h.b16 %v3954
          %v4114 = vunpack.c.l.b16 %v3955
          %v4115 = vunpack.c.h.b16 %v3955
          %v4116 = vunpack.c.l.b16 %v3956
          %v4117 = vunpack.c.h.b16 %v3956
          %v4118 = vunpack.c.l.b16 %v3957
          %v4119 = vunpack.c.h.b16 %v3957
          %v4120 = vunpack.c.l.b16 %v3958
          %v4121 = vunpack.c.h.b16 %v3958
          %v4122 = vunpack.c.l.b16 %v3959
          %v4123 = vunpack.c.h.b16 %v3959
          %v4124 = vunpack.c.l.b16 %v3960
          %v4125 = vunpack.c.h.b16 %v3960
          %v4126 = vunpack.c.l.b16 %v3961
          %v4127 = vunpack.c.h.b16 %v3961
          %v4128 = vunpack.c.l.b16 %v3962
          %v4129 = vunpack.c.h.b16 %v3962
          %v4130 = vunpack.c.l.b16 %v3963
          %v4131 = vunpack.c.h.b16 %v3963
          %v4132 = vunpack.c.l.b16 %v3964
          %v4133 = vunpack.c.h.b16 %v3964
          %v4134 = vunpack.c.l.b16 %v3965
          %v4135 = vunpack.c.h.b16 %v3965
          %v4136 = vunpack.c.l.b16 %v3966
          %v4137 = vunpack.c.h.b16 %v3966
          %v4138 = vunpack.c.l.b16 %v3967
          %v4139 = vunpack.c.h.b16 %v3967
          %v4140 = vunpack.c.l.b16 %v3968
          %v4141 = vunpack.c.h.b16 %v3968
          %v4142 = vunpack.c.l.b16 %v3969
          %v4143 = vunpack.c.h.b16 %v3969
          %v4144 = vunpack.c.l.b16 %v3970
          %v4145 = vunpack.c.h.b16 %v3970
          %v4146 = vunpack.c.l.b16 %v3971
          %v4147 = vunpack.c.h.b16 %v3971
          %v4148 = vunpack.c.l.b16 %v3972
          %v4149 = vunpack.c.h.b16 %v3972
          %v4150 = vunpack.c.l.b16 %v3973
          %v4151 = vunpack.c.h.b16 %v3973
          %v4152 = vunpack.c.l.b16 %v3974
          %v4153 = vunpack.c.h.b16 %v3974
          %v4154 = vunpack.c.l.b16 %v3975
          %v4155 = vunpack.c.h.b16 %v3975
          %v4156 = vunpack.c.l.b16 %v3976
          %v4157 = vunpack.c.h.b16 %v3976
          %v4158 = vunpack.c.l.b16 %v3977
          %v4159 = vunpack.c.h.b16 %v3977
          %v4160 = vunpack.c.l.b16 %v3978
          %v4161 = vunpack.c.h.b16 %v3978
          %v4162 = vunpack.c.l.b16 %v3979
          %v4163 = vunpack.c.h.b16 %v3979
          %v4164 = vunpack.c.l.b16 %v3980
          %v4165 = vunpack.c.h.b16 %v3980
          %v4166 = vunpack.c.l.b16 %v3981
          %v4167 = vunpack.c.h.b16 %v3981
          %v4168 = vunpack.c.l.b16 %v3982
          %v4169 = vunpack.c.h.b16 %v3982
          %v4170 = vunpack.c.l.b16 %v3983
          %v4171 = vunpack.c.h.b16 %v3983
          %v4172 = vunpack.c.l.b16 %v3984
          %v4173 = vunpack.c.h.b16 %v3984
          %v4174 = vunpack.c.l.b16 %v3985
          %v4175 = vunpack.c.h.b16 %v3985
          %v4176 = vunpack.c.l.b16 %v3986
          %v4177 = vunpack.c.h.b16 %v3986
          %v4178 = vunpack.c.l.b16 %v3987
          %v4179 = vunpack.c.h.b16 %v3987
          %v4180 = vunpack.c.l.b16 %v3988
          %v4181 = vunpack.c.h.b16 %v3988
          %v4182 = vpack.c.b16 %v4056, %v4054
          %v4183 = vpack.c.b16 %v4057, %v4055
          %v4184 = vpack.c.b16 %v4060, %v4058
          %v4185 = vpack.c.b16 %v4061, %v4059
          %v4186 = vpack.c.b16 %v4064, %v4062
          %v4187 = vpack.c.b16 %v4065, %v4063
          %v4188 = vpack.c.b16 %v4068, %v4066
          %v4189 = vpack.c.b16 %v4069, %v4067
          %v4190 = vpack.c.b16 %v4072, %v4070
          %v4191 = vpack.c.b16 %v4073, %v4071
          %v4192 = vpack.c.b16 %v4076, %v4074
          %v4193 = vpack.c.b16 %v4077, %v4075
          %v4194 = vpack.c.b16 %v4080, %v4078
          %v4195 = vpack.c.b16 %v4081, %v4079
          %v4196 = vpack.c.b16 %v4084, %v4082
          %v4197 = vpack.c.b16 %v4085, %v4083
          %v4198 = vpack.c.b16 %v4088, %v4086
          %v4199 = vpack.c.b16 %v4089, %v4087
          %v4200 = vpack.c.b16 %v4092, %v4090
          %v4201 = vpack.c.b16 %v4093, %v4091
          %v4202 = vpack.c.b16 %v4096, %v4094
          %v4203 = vpack.c.b16 %v4097, %v4095
          %v4204 = vpack.c.b16 %v4100, %v4098
          %v4205 = vpack.c.b16 %v4101, %v4099
          %v4206 = vpack.c.b16 %v4104, %v4102
          %v4207 = vpack.c.b16 %v4105, %v4103
          %v4208 = vpack.c.b16 %v4108, %v4106
          %v4209 = vpack.c.b16 %v4109, %v4107
          %v4210 = vpack.c.b16 %v4112, %v4110
          %v4211 = vpack.c.b16 %v4113, %v4111
          %v4212 = vpack.c.b16 %v4116, %v4114
          %v4213 = vpack.c.b16 %v4117, %v4115
          %v4214 = vpack.c.b16 %v4120, %v4118
          %v4215 = vpack.c.b16 %v4121, %v4119
          %v4216 = vpack.c.b16 %v4124, %v4122
          %v4217 = vpack.c.b16 %v4125, %v4123
          %v4218 = vpack.c.b16 %v4128, %v4126
          %v4219 = vpack.c.b16 %v4129, %v4127
          %v4220 = vpack.c.b16 %v4132, %v4130
          %v4221 = vpack.c.b16 %v4133, %v4131
          %v4222 = vpack.c.b16 %v4136, %v4134
          %v4223 = vpack.c.b16 %v4137, %v4135
          %v4224 = vpack.c.b16 %v4140, %v4138
          %v4225 = vpack.c.b16 %v4141, %v4139
          %v4226 = vpack.c.b16 %v4144, %v4142
          %v4227 = vpack.c.b16 %v4145, %v4143
          %v4228 = vpack.c.b16 %v4148, %v4146
          %v4229 = vpack.c.b16 %v4149, %v4147
          %v4230 = vpack.c.b16 %v4152, %v4150
          %v4231 = vpack.c.b16 %v4153, %v4151
          %v4232 = vpack.c.b16 %v4156, %v4154
          %v4233 = vpack.c.b16 %v4157, %v4155
          %v4234 = vpack.c.b16 %v4160, %v4158
          %v4235 = vpack.c.b16 %v4161, %v4159
          %v4236 = vpack.c.b16 %v4164, %v4162
          %v4237 = vpack.c.b16 %v4165, %v4163
          %v4238 = vpack.c.b16 %v4168, %v4166
          %v4239 = vpack.c.b16 %v4169, %v4167
          %v4240 = vpack.c.b16 %v4172, %v4170
          %v4241 = vpack.c.b16 %v4173, %v4171
          %v4242 = vpack.c.b16 %v4176, %v4174
          %v4243 = vpack.c.b16 %v4177, %v4175
          %v4244 = vpack.c.b16 %v4180, %v4178
          %v4245 = vpack.c.b16 %v4181, %v4179
          %v4311 = vperm.slane %v3989, 0
          %v4312 = vperm.slane %v3989, 1
          %4315 = vmatpush.bf16.msra.mxu0 %v4196
          %4316 = vmatpush.bf16.msra.mxu0 %v4194
          %4317 = vmatpush.bf16.msra.mxu0 %v4192
          %4318 = vmatpush.bf16.msra.mxu0 %v4190
          %4319 = vmatpush.bf16.msra.mxu0 %v4188
          %4320 = vmatpush.bf16.msra.mxu0 %v4186
          %4321 = vmatpush.bf16.msra.mxu0 %v4184
          %4322 = vmatpush.bf16.msra.mxu0 %v4182
          %4323 = vmatmul.bf16.gmra.mxu0 %v3921
          %v4324 = vpop.f32.mrf.mxu0
          %v4325 = vadd.f32 %v4311, %v4324
          %v4326 = vpop.f32.mrf.mxu0
          %4327 = vdwg.mxu0
          %4328 = vmatpush.bf16.msra.mxu0 %v4212
          %4329 = vmatpush.bf16.msra.mxu0 %v4210
          %4330 = vmatpush.bf16.msra.mxu0 %v4208
          %4331 = vmatpush.bf16.msra.mxu0 %v4206
          %4332 = vmatpush.bf16.msra.mxu0 %v4204
          %4333 = vmatpush.bf16.msra.mxu0 %v4202
          %4334 = vmatpush.bf16.msra.mxu0 %v4200
          %4335 = vmatpush.bf16.msra.mxu0 %v4198
          %4336 = vmatmul.bf16.gmra.mxu0 %v3922
          %v4337 = vpop.f32.mrf.mxu0
          %v4338 = vadd.f32 %v4325, %v4337
          %v4339 = vpop.f32.mrf.mxu0
          %4340 = vdwg.mxu0
          %4341 = vmatpush.bf16.msra.mxu0 %v4228
          %4342 = vmatpush.bf16.msra.mxu0 %v4226
          %4343 = vmatpush.bf16.msra.mxu0 %v4224
          %4344 = vmatpush.bf16.msra.mxu0 %v4222
          %4345 = vmatpush.bf16.msra.mxu0 %v4220
          %4346 = vmatpush.bf16.msra.mxu0 %v4218
          %4347 = vmatpush.bf16.msra.mxu0 %v4216
          %4348 = vmatpush.bf16.msra.mxu0 %v4214
          %4349 = vmatmul.bf16.gmra.mxu0 %v3923
          %v4350 = vpop.f32.mrf.mxu0
          %v4351 = vadd.f32 %v4338, %v4350
          %v4352 = vpop.f32.mrf.mxu0
          %4353 = vdwg.mxu0
          %4354 = vmatpush.bf16.msra.mxu0 %v4244
          %4355 = vmatpush.bf16.msra.mxu0 %v4242
          %4356 = vmatpush.bf16.msra.mxu0 %v4240
          %4357 = vmatpush.bf16.msra.mxu0 %v4238
          %4358 = vmatpush.bf16.msra.mxu0 %v4236
          %4359 = vmatpush.bf16.msra.mxu0 %v4234
          %4360 = vmatpush.bf16.msra.mxu0 %v4232
          %4361 = vmatpush.bf16.msra.mxu0 %v4230
          %4362 = vmatmul.bf16.gmra.mxu0 %v3924
          %v4363 = vpop.f32.mrf.mxu0
          %v4364 = vadd.f32 %v4351, %v4363
          %v4365 = vpop.f32.mrf.mxu0
          %4366 = vdwg.mxu0
          %4367 = vmatpush.bf16.msra.mxu0 %v4197
          %4368 = vmatpush.bf16.msra.mxu0 %v4195
          %4369 = vmatpush.bf16.msra.mxu0 %v4193
          %4370 = vmatpush.bf16.msra.mxu0 %v4191
          %4371 = vmatpush.bf16.msra.mxu0 %v4189
          %4372 = vmatpush.bf16.msra.mxu0 %v4187
          %4373 = vmatpush.bf16.msra.mxu0 %v4185
          %4374 = vmatpush.bf16.msra.mxu0 %v4183
          %4375 = vmatmul.bf16.gmra.mxu0 %v3921
          %v4376 = vpop.f32.mrf.mxu0
          %v4377 = vadd.f32 %v4312, %v4376
          %v4378 = vpop.f32.mrf.mxu0
          %4379 = vdwg.mxu0
          %4380 = vmatpush.bf16.msra.mxu0 %v4213
          %4381 = vmatpush.bf16.msra.mxu0 %v4211
          %4382 = vmatpush.bf16.msra.mxu0 %v4209
          %4383 = vmatpush.bf16.msra.mxu0 %v4207
          %4384 = vmatpush.bf16.msra.mxu0 %v4205
          %4385 = vmatpush.bf16.msra.mxu0 %v4203
          %4386 = vmatpush.bf16.msra.mxu0 %v4201
          %4387 = vmatpush.bf16.msra.mxu0 %v4199
          %4388 = vmatmul.bf16.gmra.mxu0 %v3922
          %v4389 = vpop.f32.mrf.mxu0
          %v4390 = vadd.f32 %v4377, %v4389
          %v4391 = vpop.f32.mrf.mxu0
          %4392 = vdwg.mxu0
          %4393 = vmatpush.bf16.msra.mxu0 %v4229
          %4394 = vmatpush.bf16.msra.mxu0 %v4227
          %4395 = vmatpush.bf16.msra.mxu0 %v4225
          %4396 = vmatpush.bf16.msra.mxu0 %v4223
          %4397 = vmatpush.bf16.msra.mxu0 %v4221
          %4398 = vmatpush.bf16.msra.mxu0 %v4219
          %4399 = vmatpush.bf16.msra.mxu0 %v4217
          %4400 = vmatpush.bf16.msra.mxu0 %v4215
          %4401 = vmatmul.bf16.gmra.mxu0 %v3923
          %v4402 = vpop.f32.mrf.mxu0
          %v4403 = vadd.f32 %v4390, %v4402
          %v4404 = vpop.f32.mrf.mxu0
          %4405 = vdwg.mxu0
          %4406 = vmatpush.bf16.msra.mxu0 %v4245
          %4407 = vmatpush.bf16.msra.mxu0 %v4243
          %4408 = vmatpush.bf16.msra.mxu0 %v4241
          %4409 = vmatpush.bf16.msra.mxu0 %v4239
          %4410 = vmatpush.bf16.msra.mxu0 %v4237
          %4411 = vmatpush.bf16.msra.mxu0 %v4235
          %4412 = vmatpush.bf16.msra.mxu0 %v4233
          %4413 = vmatpush.bf16.msra.mxu0 %v4231
          %4414 = vmatmul.bf16.gmra.mxu0 %v3924
          %v4415 = vpop.f32.mrf.mxu0
          %v4416 = vadd.f32 %v4403, %v4415
          %v4417 = vpop.f32.mrf.mxu0
          %4418 = vdwg.mxu0
          %v4419 = vmax.f32 %v4364, 0.0
          %v4420 = vmax.f32 %v4416, 0.0
          %v4421 = vpack.c.bf16 %v4419, %v4419
          %v4422 = vpack.c.bf16 %v4420, %v4420
          %v4423 = vld [vmem:[#allocation18] sm:$0xff]
          %v4424 = vld [vmem:[#allocation18 + $0x8] sm:$0xff]
          %v4425 = vld [vmem:[#allocation18 + $0x10] sm:$0xff]
          %v4426 = vld [vmem:[#allocation18 + $0x18] sm:$0xff]
          %v4427 = vld [vmem:[#allocation18 + $0x20] sm:$0xff]
          %v4428 = vld [vmem:[#allocation18 + $0x28] sm:$0xff]
          %v4429 = vld [vmem:[#allocation18 + $0x30] sm:$0xff]
          %v4430 = vld [vmem:[#allocation18 + $0x38] sm:$0xff]
          %v4431 = vld [vmem:[#allocation18 + $0x40] sm:$0xff]
          %v4432 = vld [vmem:[#allocation18 + $0x48] sm:$0xff]
          %v4433 = vld [vmem:[#allocation18 + $0x50] sm:$0xff]
          %v4434 = vld [vmem:[#allocation18 + $0x58] sm:$0xff]
          %v4435 = vld [vmem:[#allocation18 + $0x60] sm:$0xff]
          %v4436 = vld [vmem:[#allocation18 + $0x68] sm:$0xff]
          %v4437 = vld [vmem:[#allocation18 + $0x70] sm:$0xff]
          %v4438 = vld [vmem:[#allocation18 + $0x78] sm:$0xff]
          %v4439 = vld [vmem:[#allocation18 + $0x80] sm:$0xff]
          %v4440 = vld [vmem:[#allocation18 + $0x88] sm:$0xff]
          %v4441 = vld [vmem:[#allocation18 + $0x90] sm:$0xff]
          %v4442 = vld [vmem:[#allocation18 + $0x98] sm:$0xff]
          %v4443 = vld [vmem:[#allocation18 + $0xa0] sm:$0xff]
          %v4444 = vld [vmem:[#allocation18 + $0xa8] sm:$0xff]
          %v4445 = vld [vmem:[#allocation18 + $0xb0] sm:$0xff]
          %v4446 = vld [vmem:[#allocation18 + $0xb8] sm:$0xff]
          %v4447 = vld [vmem:[#allocation18 + $0xc0] sm:$0xff]
          %v4448 = vld [vmem:[#allocation18 + $0xc8] sm:$0xff]
          %v4449 = vld [vmem:[#allocation18 + $0xd0] sm:$0xff]
          %v4450 = vld [vmem:[#allocation18 + $0xd8] sm:$0xff]
          %v4451 = vld [vmem:[#allocation18 + $0xe0] sm:$0xff]
          %v4452 = vld [vmem:[#allocation18 + $0xe8] sm:$0xff]
          %v4453 = vld [vmem:[#allocation18 + $0xf0] sm:$0xff]
          %v4454 = vld [vmem:[#allocation18 + $0xf8] sm:$0xff]
          %v4455 = vld [vmem:[%s12] sm:$0x3]
          %v4488 = vunpack.c.l.b16 %v4423
          %v4489 = vunpack.c.h.b16 %v4423
          %v4490 = vunpack.c.l.b16 %v4424
          %v4491 = vunpack.c.h.b16 %v4424
          %v4492 = vunpack.c.l.b16 %v4425
          %v4493 = vunpack.c.h.b16 %v4425
          %v4494 = vunpack.c.l.b16 %v4426
          %v4495 = vunpack.c.h.b16 %v4426
          %v4496 = vunpack.c.l.b16 %v4427
          %v4497 = vunpack.c.h.b16 %v4427
          %v4498 = vunpack.c.l.b16 %v4428
          %v4499 = vunpack.c.h.b16 %v4428
          %v4500 = vunpack.c.l.b16 %v4429
          %v4501 = vunpack.c.h.b16 %v4429
          %v4502 = vunpack.c.l.b16 %v4430
          %v4503 = vunpack.c.h.b16 %v4430
          %v4504 = vunpack.c.l.b16 %v4431
          %v4505 = vunpack.c.h.b16 %v4431
          %v4506 = vunpack.c.l.b16 %v4432
          %v4507 = vunpack.c.h.b16 %v4432
          %v4508 = vunpack.c.l.b16 %v4433
          %v4509 = vunpack.c.h.b16 %v4433
          %v4510 = vunpack.c.l.b16 %v4434
          %v4511 = vunpack.c.h.b16 %v4434
          %v4512 = vunpack.c.l.b16 %v4435
          %v4513 = vunpack.c.h.b16 %v4435
          %v4514 = vunpack.c.l.b16 %v4436
          %v4515 = vunpack.c.h.b16 %v4436
          %v4516 = vunpack.c.l.b16 %v4437
          %v4517 = vunpack.c.h.b16 %v4437
          %v4518 = vunpack.c.l.b16 %v4438
          %v4519 = vunpack.c.h.b16 %v4438
          %v4520 = vunpack.c.l.b16 %v4439
          %v4521 = vunpack.c.h.b16 %v4439
          %v4522 = vunpack.c.l.b16 %v4440
          %v4523 = vunpack.c.h.b16 %v4440
          %v4524 = vunpack.c.l.b16 %v4441
          %v4525 = vunpack.c.h.b16 %v4441
          %v4526 = vunpack.c.l.b16 %v4442
          %v4527 = vunpack.c.h.b16 %v4442
          %v4528 = vunpack.c.l.b16 %v4443
          %v4529 = vunpack.c.h.b16 %v4443
          %v4530 = vunpack.c.l.b16 %v4444
          %v4531 = vunpack.c.h.b16 %v4444
          %v4532 = vunpack.c.l.b16 %v4445
          %v4533 = vunpack.c.h.b16 %v4445
          %v4534 = vunpack.c.l.b16 %v4446
          %v4535 = vunpack.c.h.b16 %v4446
          %v4536 = vunpack.c.l.b16 %v4447
          %v4537 = vunpack.c.h.b16 %v4447
          %v4538 = vunpack.c.l.b16 %v4448
          %v4539 = vunpack.c.h.b16 %v4448
          %v4540 = vunpack.c.l.b16 %v4449
          %v4541 = vunpack.c.h.b16 %v4449
          %v4542 = vunpack.c.l.b16 %v4450
          %v4543 = vunpack.c.h.b16 %v4450
          %v4544 = vunpack.c.l.b16 %v4451
          %v4545 = vunpack.c.h.b16 %v4451
          %v4546 = vunpack.c.l.b16 %v4452
          %v4547 = vunpack.c.h.b16 %v4452
          %v4548 = vunpack.c.l.b16 %v4453
          %v4549 = vunpack.c.h.b16 %v4453
          %v4550 = vunpack.c.l.b16 %v4454
          %v4551 = vunpack.c.h.b16 %v4454
          %v4552 = vpack.c.b16 %v4490, %v4488
          %v4553 = vpack.c.b16 %v4491, %v4489
          %v4554 = vpack.c.b16 %v4494, %v4492
          %v4555 = vpack.c.b16 %v4495, %v4493
          %v4556 = vpack.c.b16 %v4498, %v4496
          %v4557 = vpack.c.b16 %v4499, %v4497
          %v4558 = vpack.c.b16 %v4502, %v4500
          %v4559 = vpack.c.b16 %v4503, %v4501
          %v4560 = vpack.c.b16 %v4506, %v4504
          %v4561 = vpack.c.b16 %v4507, %v4505
          %v4562 = vpack.c.b16 %v4510, %v4508
          %v4563 = vpack.c.b16 %v4511, %v4509
          %v4564 = vpack.c.b16 %v4514, %v4512
          %v4565 = vpack.c.b16 %v4515, %v4513
          %v4566 = vpack.c.b16 %v4518, %v4516
          %v4567 = vpack.c.b16 %v4519, %v4517
          %v4568 = vpack.c.b16 %v4522, %v4520
          %v4569 = vpack.c.b16 %v4523, %v4521
          %v4570 = vpack.c.b16 %v4526, %v4524
          %v4571 = vpack.c.b16 %v4527, %v4525
          %v4572 = vpack.c.b16 %v4530, %v4528
          %v4573 = vpack.c.b16 %v4531, %v4529
          %v4574 = vpack.c.b16 %v4534, %v4532
          %v4575 = vpack.c.b16 %v4535, %v4533
          %v4576 = vpack.c.b16 %v4538, %v4536
          %v4577 = vpack.c.b16 %v4539, %v4537
          %v4578 = vpack.c.b16 %v4542, %v4540
          %v4579 = vpack.c.b16 %v4543, %v4541
          %v4580 = vpack.c.b16 %v4546, %v4544
          %v4581 = vpack.c.b16 %v4547, %v4545
          %v4582 = vpack.c.b16 %v4550, %v4548
          %v4583 = vpack.c.b16 %v4551, %v4549
          %v4617 = vperm.slane %v4455, 0
          %v4618 = vperm.slane %v4455, 1
          %4621 = vmatpush.bf16.msra.mxu0 %v4566
          %4622 = vmatpush.bf16.msra.mxu0 %v4564
          %4623 = vmatpush.bf16.msra.mxu0 %v4562
          %4624 = vmatpush.bf16.msra.mxu0 %v4560
          %4625 = vmatpush.bf16.msra.mxu0 %v4558
          %4626 = vmatpush.bf16.msra.mxu0 %v4556
          %4627 = vmatpush.bf16.msra.mxu0 %v4554
          %4628 = vmatpush.bf16.msra.mxu0 %v4552
          %4629 = vmatmul.bf16.gmra.mxu0 %v4421
          %v4630 = vpop.f32.mrf.mxu0
          %v4631 = vadd.f32 %v4617, %v4630
          %v4632 = vpop.f32.mrf.mxu0
          %4633 = vdwg.mxu0
          %4634 = vmatpush.bf16.msra.mxu0 %v4582
          %4635 = vmatpush.bf16.msra.mxu0 %v4580
          %4636 = vmatpush.bf16.msra.mxu0 %v4578
          %4637 = vmatpush.bf16.msra.mxu0 %v4576
          %4638 = vmatpush.bf16.msra.mxu0 %v4574
          %4639 = vmatpush.bf16.msra.mxu0 %v4572
          %4640 = vmatpush.bf16.msra.mxu0 %v4570
          %4641 = vmatpush.bf16.msra.mxu0 %v4568
          %4642 = vmatmul.bf16.gmra.mxu0 %v4422
          %v4643 = vpop.f32.mrf.mxu0
          %v4644 = vadd.f32 %v4631, %v4643
          %v4645 = vpop.f32.mrf.mxu0
          %4646 = vdwg.mxu0
          %4647 = vmatpush.bf16.msra.mxu0 %v4567
          %4648 = vmatpush.bf16.msra.mxu0 %v4565
          %4649 = vmatpush.bf16.msra.mxu0 %v4563
          %4650 = vmatpush.bf16.msra.mxu0 %v4561
          %4651 = vmatpush.bf16.msra.mxu0 %v4559
          %4652 = vmatpush.bf16.msra.mxu0 %v4557
          %4653 = vmatpush.bf16.msra.mxu0 %v4555
          %4654 = vmatpush.bf16.msra.mxu0 %v4553
          %4655 = vmatmul.bf16.gmra.mxu0 %v4421
          %v4656 = vpop.f32.mrf.mxu0
          %v4657 = vadd.f32 %v4618, %v4656
          %v4658 = vpop.f32.mrf.mxu0
          %4659 = vdwg.mxu0
          %4660 = vmatpush.bf16.msra.mxu0 %v4583
          %4661 = vmatpush.bf16.msra.mxu0 %v4581
          %4662 = vmatpush.bf16.msra.mxu0 %v4579
          %4663 = vmatpush.bf16.msra.mxu0 %v4577
          %4664 = vmatpush.bf16.msra.mxu0 %v4575
          %4665 = vmatpush.bf16.msra.mxu0 %v4573
          %4666 = vmatpush.bf16.msra.mxu0 %v4571
          %4667 = vmatpush.bf16.msra.mxu0 %v4569
          %4668 = vmatmul.bf16.gmra.mxu0 %v4422
          %v4669 = vpop.f32.mrf.mxu0
          %v4670 = vadd.f32 %v4657, %v4669
          %v4671 = vpop.f32.mrf.mxu0
          %4672 = vdwg.mxu0
          %v4675 = vrot.slane %v4670, 7
          %vm4676 = vcmask 1040384
          %v4677 = vsel %vm4676, %v4644, %v4675
          %v4679 = vlaneseq
          %vm4680 = vcmp.ge.s32.totalorder %v4679, 0
          %vm4681 = vcmp.lt.s32.totalorder %v4679, 256
          %vm4682 = vmand %vm4680, %vm4681
          %4683 = vst.msk [vmem:[%s618] sm:$0x3] %vm4682, %v4677
        $region124: #{tpu_custom_call.1} parent=71 // pred_fallthru
          _
        %s4684 = sand.u32 %s335, 1
        %s4685 = scalar_lea.sflag [#allocation5], %s4684
        %s4686 = sand.u32 %s335, 1
        %s4687 = smul.addr %s4686, 2
        %s4688 = scalar_lea.vmem [#allocation20], %s4687
        // Predicated region
        $region125: #{tpu_custom_call.1} parent=71 // pred_check
          %p4689 = pneg %p345
        $region126: #{tpu_custom_call.1} parent=71 // pred_check_branch
          %4691 = sbr.rel (%p4689) target = $region128
        $region127: #{tpu_custom_call.1} parent=71 // pred_region
          %4693 = vsyncadd %s4685, 0
          %s4694 = smul.addr %s39, 2
          %s4695 = scalar_lea.hbm %s13, %s4694
          %s4697 = sshll.u32 %s4688, 4
          %s4698 = int_to_ptr.vmem [resolvable:$true] %s4697
          %s4699 = sshll.u32 %s4695, 4
          %s4700 = int_to_ptr.hbm [resolvable:$true] %s4699
          %4702 = dma.vmem_to_hbm [thread:$0]  %s4698, 32, %s4700, %s4685
        $region128: #{tpu_custom_call.1} parent=71 // pred_fallthru
          _
      $region72: #{tpu_custom_call.1} parent=5 // pred_fallthru
        _
      %p4703 = scmp.le.s32.totalorder 2, %s30
      // Predicated region
      $region129: #{tpu_custom_call.1} parent=5 // pred_check
        %p4704 = pneg %p4703
      $region130: #{tpu_custom_call.1} parent=5 // pred_check_branch
        %4706 = sbr.rel (%p4704) target = $region132
      $region131: #{tpu_custom_call.1} parent=5 // pred_region
        %s4707 = ssub.s32 %s30, 2
        // Predicated region
        $region133: #{tpu_custom_call.1} parent=131 // pred_check
          %p4708 = pneg %p351
        $region134: #{tpu_custom_call.1} parent=131 // pred_check_branch
          %4710 = sbr.rel (%p4708) target = $region136
        $region135: #{tpu_custom_call.1} parent=131 // pred_region
          %s4711 = sand.u32 %s336, 1
          %s4712 = scalar_lea.sflag [#allocation5], %s4711
          %s4713 = sand.u32 %s336, 1
          %s4714 = smul.addr %s4713, 2
          %s4715 = scalar_lea.vmem [#allocation20], %s4714
          %4717 = dma.done %s4712, 32
        $region136: #{tpu_custom_call.1} parent=131 // pred_fallthru
          _
      $region132: #{tpu_custom_call.1} parent=5 // pred_fallthru
        _
    $region6: #{tpu_custom_call.1} parent=1 // loop_footer
      %s34 = sadd.s32 1, %s30
    $region7: #{tpu_custom_call.1} parent=1 // loop_footer_branch
      %29 = sbr.rel target = $region3
    $region8: #{tpu_custom_call.1} parent=1 // loop_exit
      _
    %4718 = vsyncpa [#allocation4], 1
    %s4719 = scalar_lea.sflag [#allocation4], 1
    %4720 = vsyncpa %s4719, 1
    %4721 = vsyncpa [#allocation7], 1
    %4722 = vsyncpa [#allocation10], 1
    %4723 = vsyncpa [#allocation13], 1
    %4724 = vsyncpa [#allocation16], 1
    %4725 = vsyncpa [#allocation19], 1
    %4726 = vsyncpa [#allocation5], 1
    %s4727 = scalar_lea.sflag [#allocation5], 1
    %4728 = vsyncpa %s4727, 1

</llo_original>
